<compile_context>
chip_gen: v7x
topology: tpu7x:2x2x1
jax: 0.10.0
libtpu: 0.0.40
codegen_flags: <defaults>
</compile_context>

<pallas_src>
import functools

import jax
import jax.numpy as jnp
from jax import lax
from jax.experimental import pallas as pl
from jax.experimental.pallas import tpu as pltpu


# ----------------------------------------------------------------------------
# Fused Pallas kernel
# ----------------------------------------------------------------------------
def _intern_block_kernel(x_ref, bw_ref, g1_ref, b1_ref, dw_ref, g2_ref, b2_ref,
                         o_ref, xpad_ref, *, depth, eps):
    """One image per grid step; the activation never leaves VMEM.

    x_ref   : (1, H, W, C)          input tile (NHWC)
    bw_ref  : (depth, 9*C, C)       per-layer im2col weights (block-diag groups)
    g1/b1   : (1, C)                GroupNorm(1, C) affine
    dw_ref  : (9*C, 2*C)            downsample im2col weight
    g2/b2   : (1, 2*C)              GroupNorm(1, 2C) affine
    o_ref   : (1, H//2, W//2, 2*C)  output tile
    xpad_ref: (H+2, W+2, C) f32     VMEM scratch: padded activation (halo = 0)
    """
    _, H, W, C = x_ref.shape
    _, Ho, Wo, C2 = o_ref.shape
    K = 9 * C

    # Zero-fill once; the 1-pixel halo stays zero for every layer.
    xpad_ref[...] = jnp.zeros_like(xpad_ref)

    act = x_ref[0].astype(jnp.float32)                            # (H, W, C)

    # --- depth x (grouped 3x3 conv, stride 1, pad 1) -------------------------
    # Groups are pre-folded into a dense block-diagonal weight and the 9 taps
    # are fused into the contraction dim (im2col) -> ONE MXU matmul per layer.
    for d in range(depth):
        xpad_ref[1:H + 1, 1:W + 1, :] = act                       # interior only
        slab = jnp.concatenate(
            [xpad_ref[kh:kh + H, kw:kw + W, :]
             for kh in range(3) for kw in range(3)], axis=-1)     # (H, W, 9C)
        act = jnp.dot(slab.reshape(H * W, K), bw_ref[d],
                      preferred_element_type=jnp.float32).reshape(H, W, C)

    # --- GroupNorm(num_groups=1) over (C, H, W): single-pass stats -----------
    inv_n = 1.0 / (H * W * C)
    s = jnp.sum(act)
    ss = jnp.sum(act * act)
    mean = s * inv_n
    var = ss * inv_n - mean * mean                                # biased (PyTorch GN)
    act = (act - mean) * lax.rsqrt(var + eps)
    act = act * g1_ref[...].astype(jnp.float32) + b1_ref[...].astype(jnp.float32)

    # --- DownsampleLayer: 3x3 stride-2 conv (C -> 2C), computed directly -----
    xpad_ref[1:H + 1, 1:W + 1, :] = act
    dslab = jnp.concatenate(
        [xpad_ref[pl.ds(kh, Ho, 2), pl.ds(kw, Wo, 2), :]          # stride-2 taps
         for kh in range(3) for kw in range(3)], axis=-1)         # (Ho, Wo, 9C)
    z = jnp.dot(dslab.reshape(Ho * Wo, K), dw_ref[...],
                preferred_element_type=jnp.float32)               # (Ho*Wo, 2C)

    # --- GroupNorm(num_groups=1) over (2C, Ho, Wo): single pass --------------
    inv_n2 = 1.0 / (Ho * Wo * C2)
    s2 = jnp.sum(z)
    ss2 = jnp.sum(z * z)
    mean2 = s2 * inv_n2
    var2 = ss2 * inv_n2 - mean2 * mean2
    z = (z - mean2) * lax.rsqrt(var2 + eps)
    z = z * g2_ref[...].astype(jnp.float32) + b2_ref[...].astype(jnp.float32)

    o_ref[0] = z.reshape(Ho, Wo, C2).astype(o_ref.dtype)


# ----------------------------------------------------------------------------
# Host-side weight packing (done once, outside the kernel)
# ----------------------------------------------------------------------------
def _expand_grouped_hwio(w, groups):
    """Grouped HWIO (3,3,Cin//g,Cout) -> dense block-diagonal (3,3,Cin,Cout)."""
    kh, kw, cig, cout = w.shape
    cin, cog = cig * groups, cout // groups
    wd = jnp.zeros((kh, kw, cin, cout), w.dtype)
    for g in range(groups):
        wd = wd.at[:, :, g * cig:(g + 1) * cig, g * cog:(g + 1) * cog].set(
            w[:, :, :, g * cog:(g + 1) * cog])
    return wd


def _im2col_weight(w_hwio):
    """(3,3,Cin,Cout) -> (9*Cin, Cout); row order matches the in-kernel concat."""
    kh, kw, cin, cout = w_hwio.shape
    return w_hwio.reshape(kh * kw * cin, cout)


# ----------------------------------------------------------------------------
# Public wrapper (NCHW in / NCHW out, like the PyTorch module)
# ----------------------------------------------------------------------------
def intern_image_block_forward(x_nchw, params, *, groups, eps=1e-5):
    x = jnp.transpose(x_nchw, (0, 2, 3, 1))                       # NCHW -> NHWC
    N, H, W, C = x.shape
    depth = len(params["blocks"])
    C2, Ho, Wo = 2 * C, H // 2, W // 2

    bw = jnp.stack([_im2col_weight(_expand_grouped_hwio(w, groups))
                    for w in params["blocks"]], axis=0)           # (depth, 9C, C)
    dw = _im2col_weight(params["down_w"])                         # (9C, 2C)

    kernel = functools.partial(_intern_block_kernel, depth=depth, eps=eps)
    out = pl.pallas_call(
        kernel,
        out_shape=jax.ShapeDtypeStruct((N, Ho, Wo, C2), x.dtype),
        grid=(N,),
        in_specs=[
            pl.BlockSpec((1, H, W, C), lambda n: (n, 0, 0, 0)),
            pl.BlockSpec((depth, 9 * C, C), lambda n: (0, 0, 0)),
            pl.BlockSpec((1, C), lambda n: (0, 0)),
            pl.BlockSpec((1, C), lambda n: (0, 0)),
            pl.BlockSpec((9 * C, C2), lambda n: (0, 0)),
            pl.BlockSpec((1, C2), lambda n: (0, 0)),
            pl.BlockSpec((1, C2), lambda n: (0, 0)),
        ],
        out_specs=pl.BlockSpec((1, Ho, Wo, C2), lambda n: (n, 0, 0, 0)),
        scratch_shapes=[pltpu.VMEM((H + 2, W + 2, C), jnp.float32)],
        compiler_params=pltpu.CompilerParams(
            dimension_semantics=("parallel",)),
    )(x, bw,
      params["norm_gamma"].reshape(1, C), params["norm_beta"].reshape(1, C),
      dw,
      params["down_gamma"].reshape(1, C2), params["down_beta"].reshape(1, C2))

    return jnp.transpose(out, (0, 3, 1, 2))                       # NHWC -> NCHW


# ----------------------------------------------------------------------------
# Pure-JAX reference (validation)
# ----------------------------------------------------------------------------
def _ref_gn(x_nhwc, gamma, beta, eps=1e-5):
    mean = jnp.mean(x_nhwc, axis=(1, 2, 3), keepdims=True)
    var = jnp.mean(jnp.square(x_nhwc - mean), axis=(1, 2, 3), keepdims=True)
    return (x_nhwc - mean) * lax.rsqrt(var + eps) * gamma + beta


def ref_forward(x_nchw, params, *, groups):
    dn = ("NHWC", "HWIO", "NHWC")
    x = jnp.transpose(x_nchw, (0, 2, 3, 1))
    for w in params["blocks"]:
        x = lax.conv_general_dilated(x, w, (1, 1), ((1, 1), (1, 1)),
                                     dimension_numbers=dn,
                                     feature_group_count=groups)
    x = _ref_gn(x, params["norm_gamma"], params["norm_beta"])
    x = lax.conv_general_dilated(x, params["down_w"], (2, 2), ((1, 1), (1, 1)),
                                 dimension_numbers=dn)
    x = _ref_gn(x, params["down_gamma"], params["down_beta"])
    return jnp.transpose(x, (0, 3, 1, 2))


# ----------------------------------------------------------------------------
# Main
# ----------------------------------------------------------------------------
if __name__ == "__main__":
    # Small, forward-consistent shapes: batch=2, channels=8, spatial=16,
    # depth=2, groups=2.
    N, C, H, W = 2, 8, 16, 16
    depth, groups = 2, 2

    key = jax.random.PRNGKey(0)
    keys = jax.random.split(key, depth + 2)

    # Grouped block convs: PyTorch (C, C//g, 3, 3) -> HWIO (3, 3, C//g, C)
    block_ws = [
        0.1 * jax.random.normal(keys[i], (3, 3, C // groups, C), jnp.float32)
        for i in range(depth)
    ]
    # Downsample conv: PyTorch (2C, C, 3, 3) -> HWIO (3, 3, C, 2C)
    down_w = 0.1 * jax.random.normal(keys[depth], (3, 3, C, 2 * C), jnp.float32)

    params = {
        "blocks": block_ws,
        "norm_gamma": jnp.ones((C,), jnp.float32),     # PyTorch GN default init
        "norm_beta": jnp.zeros((C,), jnp.float32),
        "down_w": down_w,
        "down_gamma": jnp.ones((2 * C,), jnp.float32),
        "down_beta": jnp.zeros((2 * C,), jnp.float32),
    }

    x = jax.random.normal(keys[depth + 1], (N, C, H, W), jnp.float32)

    out = intern_image_block_forward(x, params, groups=groups)
    out = jax.block_until_ready(out)

    # sanity: shape (N, 2C, H/2, W/2) and match the pure-JAX reference
    assert out.shape == (N, 2 * C, H // 2, W // 2), out.shape
    ref = jax.block_until_ready(ref_forward(x, params, groups=groups))
    max_err = float(jnp.max(jnp.abs(out - ref)))
    assert max_err < 1e-3, f"mismatch vs reference: {max_err}"

    print("KERNEL_OK")
</pallas_src>

<mosaic_0001>
module attributes {stable_mosaic.version = 11 : i64} {
  func.func @_intern_block_kernel(%arg0: i32, %arg1: memref<1x16x16x8xf32, #tpu.memory_space<vmem>>, %arg2: memref<2x72x8xf32, #tpu.memory_space<vmem>>, %arg3: memref<1x8xf32, #tpu.memory_space<vmem>>, %arg4: memref<1x8xf32, #tpu.memory_space<vmem>>, %arg5: memref<72x16xf32, #tpu.memory_space<vmem>>, %arg6: memref<1x16xf32, #tpu.memory_space<vmem>>, %arg7: memref<1x16xf32, #tpu.memory_space<vmem>>, %arg8: memref<1x8x8x16xf32, #tpu.memory_space<vmem>>, %arg9: memref<18x18x8xf32, #tpu.memory_space<vmem>>) attributes {dimension_semantics = [#tpu.dimension_semantics<parallel>], iteration_bounds = array<i64: 2>, scalar_prefetch = 0 : i64, scratch_operands = 1 : i64, tpu.core_type = #tpu.core_type<tc>, window_params = [{transform_indices = @transform_0, window_bounds = array<i64: 1, 16, 16, 8>}, {pipeline_mode = #tpu.pipeline_mode<synchronous>, transform_indices = @transform_1, window_bounds = array<i64: 2, 72, 8>}, {pipeline_mode = #tpu.pipeline_mode<synchronous>, transform_indices = @transform_2, window_bounds = array<i64: 1, 8>}, {pipeline_mode = #tpu.pipeline_mode<synchronous>, transform_indices = @transform_3, window_bounds = array<i64: 1, 8>}, {pipeline_mode = #tpu.pipeline_mode<synchronous>, transform_indices = @transform_4, window_bounds = array<i64: 72, 16>}, {pipeline_mode = #tpu.pipeline_mode<synchronous>, transform_indices = @transform_5, window_bounds = array<i64: 1, 16>}, {pipeline_mode = #tpu.pipeline_mode<synchronous>, transform_indices = @transform_6, window_bounds = array<i64: 1, 16>}, {transform_indices = @transform_7, window_bounds = array<i64: 1, 8, 8, 16>}]} {
    %cst = arith.constant 0.000000e+00 : f32
    %0 = vector.broadcast %cst : f32 to vector<18x18x8xf32>
    %c0 = arith.constant 0 : index
    %c0_0 = arith.constant 0 : index
    %c0_1 = arith.constant 0 : index
    %1 = vector.load %arg9[%c0, %c0_0, %c0_1] : memref<18x18x8xf32, #tpu.memory_space<vmem>>, vector<18x18x8xf32>
    tpu.vector_store %arg9[%c0, %c0_0, %c0_1], %0 {strides = array<i32>} : memref<18x18x8xf32, #tpu.memory_space<vmem>>, vector<18x18x8xf32>,
    %c0_2 = arith.constant 0 : index
    %c0_3 = arith.constant 0 : index
    %c0_4 = arith.constant 0 : index
    %c0_5 = arith.constant 0 : index
    %2 = vector.load %arg1[%c0_2, %c0_3, %c0_4, %c0_5] : memref<1x16x16x8xf32, #tpu.memory_space<vmem>>, vector<1x16x16x8xf32>
    %3 = vector.shape_cast %2 : vector<1x16x16x8xf32> to vector<16x16x8xf32>
    %c1 = arith.constant 1 : index
    %c1_6 = arith.constant 1 : index
    %c0_7 = arith.constant 0 : index
    %4 = vector.load %arg9[%c1, %c1_6, %c0_7] : memref<18x18x8xf32, #tpu.memory_space<vmem>>, vector<16x16x8xf32>
    tpu.vector_store %arg9[%c1, %c1_6, %c0_7], %3 {strides = array<i32>} : memref<18x18x8xf32, #tpu.memory_space<vmem>>, vector<16x16x8xf32>,
    %c0_8 = arith.constant 0 : index
    %c0_9 = arith.constant 0 : index
    %c0_10 = arith.constant 0 : index
    %5 = vector.load %arg9[%c0_8, %c0_9, %c0_10] : memref<18x18x8xf32, #tpu.memory_space<vmem>>, vector<16x16x8xf32>
    %c0_11 = arith.constant 0 : index
    %c1_12 = arith.constant 1 : index
    %c0_13 = arith.constant 0 : index
    %6 = vector.load %arg9[%c0_11, %c1_12, %c0_13] : memref<18x18x8xf32, #tpu.memory_space<vmem>>, vector<16x16x8xf32>
    %c0_14 = arith.constant 0 : index
    %c2 = arith.constant 2 : index
    %c0_15 = arith.constant 0 : index
    %7 = vector.load %arg9[%c0_14, %c2, %c0_15] : memref<18x18x8xf32, #tpu.memory_space<vmem>>, vector<16x16x8xf32>
    %c1_16 = arith.constant 1 : index
    %c0_17 = arith.constant 0 : index
    %c0_18 = arith.constant 0 : index
    %8 = vector.load %arg9[%c1_16, %c0_17, %c0_18] : memref<18x18x8xf32, #tpu.memory_space<vmem>>, vector<16x16x8xf32>
    %c1_19 = arith.constant 1 : index
    %c1_20 = arith.constant 1 : index
    %c0_21 = arith.constant 0 : index
    %9 = vector.load %arg9[%c1_19, %c1_20, %c0_21] : memref<18x18x8xf32, #tpu.memory_space<vmem>>, vector<16x16x8xf32>
    %c1_22 = arith.constant 1 : index
    %c2_23 = arith.constant 2 : index
    %c0_24 = arith.constant 0 : index
    %10 = vector.load %arg9[%c1_22, %c2_23, %c0_24] : memref<18x18x8xf32, #tpu.memory_space<vmem>>, vector<16x16x8xf32>
    %c2_25 = arith.constant 2 : index
    %c0_26 = arith.constant 0 : index
    %c0_27 = arith.constant 0 : index
    %11 = vector.load %arg9[%c2_25, %c0_26, %c0_27] : memref<18x18x8xf32, #tpu.memory_space<vmem>>, vector<16x16x8xf32>
    %c2_28 = arith.constant 2 : index
    %c1_29 = arith.constant 1 : index
    %c0_30 = arith.constant 0 : index
    %12 = vector.load %arg9[%c2_28, %c1_29, %c0_30] : memref<18x18x8xf32, #tpu.memory_space<vmem>>, vector<16x16x8xf32>
    %c2_31 = arith.constant 2 : index
    %c2_32 = arith.constant 2 : index
    %c0_33 = arith.constant 0 : index
    %13 = vector.load %arg9[%c2_31, %c2_32, %c0_33] : memref<18x18x8xf32, #tpu.memory_space<vmem>>, vector<16x16x8xf32>
    %14 = tpu.concatenate %5, %6, %7, %8, %9, %10, %11, %12, %13 in 2 : vector<16x16x8xf32>, vector<16x16x8xf32>, vector<16x16x8xf32>, vector<16x16x8xf32>, vector<16x16x8xf32>, vector<16x16x8xf32>, vector<16x16x8xf32>, vector<16x16x8xf32>, vector<16x16x8xf32> -> vector<16x16x72xf32>
    %15 = vector.shape_cast %14 : vector<16x16x72xf32> to vector<256x72xf32>
    %c0_34 = arith.constant 0 : index
    %c0_35 = arith.constant 0 : index
    %c0_36 = arith.constant 0 : index
    %16 = vector.load %arg2[%c0_34, %c0_35, %c0_36] : memref<2x72x8xf32, #tpu.memory_space<vmem>>, vector<1x72x8xf32>
    %17 = vector.shape_cast %16 : vector<1x72x8xf32> to vector<72x8xf32>
    %cst_37 = arith.constant dense<0.000000e+00> : vector<256x8xf32>
    %18 = tpu.matmul %15, %17, %cst_37 {dimension_numbers = #tpu.dot_dimension_numbers<[1], [0], [0], [1], [0, 0, 1, 1], [], []>} : vector<256x72xf32>, vector<72x8xf32>, vector<256x8xf32> -> vector<256x8xf32>
    %19 = vector.shape_cast %18 : vector<256x8xf32> to vector<16x16x8xf32>
    %c1_38 = arith.constant 1 : index
    %c1_39 = arith.constant 1 : index
    %c0_40 = arith.constant 0 : index
    %20 = vector.load %arg9[%c1_38, %c1_39, %c0_40] : memref<18x18x8xf32, #tpu.memory_space<vmem>>, vector<16x16x8xf32>
    tpu.vector_store %arg9[%c1_38, %c1_39, %c0_40], %19 {strides = array<i32>} : memref<18x18x8xf32, #tpu.memory_space<vmem>>, vector<16x16x8xf32>,
    %c0_41 = arith.constant 0 : index
    %c0_42 = arith.constant 0 : index
    %c0_43 = arith.constant 0 : index
    %21 = vector.load %arg9[%c0_41, %c0_42, %c0_43] : memref<18x18x8xf32, #tpu.memory_space<vmem>>, vector<16x16x8xf32>
    %c0_44 = arith.constant 0 : index
    %c1_45 = arith.constant 1 : index
    %c0_46 = arith.constant 0 : index
    %22 = vector.load %arg9[%c0_44, %c1_45, %c0_46] : memref<18x18x8xf32, #tpu.memory_space<vmem>>, vector<16x16x8xf32>
    %c0_47 = arith.constant 0 : index
    %c2_48 = arith.constant 2 : index
    %c0_49 = arith.constant 0 : index
    %23 = vector.load %arg9[%c0_47, %c2_48, %c0_49] : memref<18x18x8xf32, #tpu.memory_space<vmem>>, vector<16x16x8xf32>
    %c1_50 = arith.constant 1 : index
    %c0_51 = arith.constant 0 : index
    %c0_52 = arith.constant 0 : index
    %24 = vector.load %arg9[%c1_50, %c0_51, %c0_52] : memref<18x18x8xf32, #tpu.memory_space<vmem>>, vector<16x16x8xf32>
    %c1_53 = arith.constant 1 : index
    %c1_54 = arith.constant 1 : index
    %c0_55 = arith.constant 0 : index
    %25 = vector.load %arg9[%c1_53, %c1_54, %c0_55] : memref<18x18x8xf32, #tpu.memory_space<vmem>>, vector<16x16x8xf32>
    %c1_56 = arith.constant 1 : index
    %c2_57 = arith.constant 2 : index
    %c0_58 = arith.constant 0 : index
    %26 = vector.load %arg9[%c1_56, %c2_57, %c0_58] : memref<18x18x8xf32, #tpu.memory_space<vmem>>, vector<16x16x8xf32>
    %c2_59 = arith.constant 2 : index
    %c0_60 = arith.constant 0 : index
    %c0_61 = arith.constant 0 : index
    %27 = vector.load %arg9[%c2_59, %c0_60, %c0_61] : memref<18x18x8xf32, #tpu.memory_space<vmem>>, vector<16x16x8xf32>
    %c2_62 = arith.constant 2 : index
    %c1_63 = arith.constant 1 : index
    %c0_64 = arith.constant 0 : index
    %28 = vector.load %arg9[%c2_62, %c1_63, %c0_64] : memref<18x18x8xf32, #tpu.memory_space<vmem>>, vector<16x16x8xf32>
    %c2_65 = arith.constant 2 : index
    %c2_66 = arith.constant 2 : index
    %c0_67 = arith.constant 0 : index
    %29 = vector.load %arg9[%c2_65, %c2_66, %c0_67] : memref<18x18x8xf32, #tpu.memory_space<vmem>>, vector<16x16x8xf32>
    %30 = tpu.concatenate %21, %22, %23, %24, %25, %26, %27, %28, %29 in 2 : vector<16x16x8xf32>, vector<16x16x8xf32>, vector<16x16x8xf32>, vector<16x16x8xf32>, vector<16x16x8xf32>, vector<16x16x8xf32>, vector<16x16x8xf32>, vector<16x16x8xf32>, vector<16x16x8xf32> -> vector<16x16x72xf32>
    %31 = vector.shape_cast %30 : vector<16x16x72xf32> to vector<256x72xf32>
    %c1_68 = arith.constant 1 : index
    %c0_69 = arith.constant 0 : index
    %c0_70 = arith.constant 0 : index
    %32 = vector.load %arg2[%c1_68, %c0_69, %c0_70] : memref<2x72x8xf32, #tpu.memory_space<vmem>>, vector<1x72x8xf32>
    %33 = vector.shape_cast %32 : vector<1x72x8xf32> to vector<72x8xf32>
    %cst_71 = arith.constant dense<0.000000e+00> : vector<256x8xf32>
    %34 = tpu.matmul %31, %33, %cst_71 {dimension_numbers = #tpu.dot_dimension_numbers<[1], [0], [0], [1], [0, 0, 1, 1], [], []>} : vector<256x72xf32>, vector<72x8xf32>, vector<256x8xf32> -> vector<256x8xf32>
    %35 = vector.shape_cast %34 : vector<256x8xf32> to vector<16x16x8xf32>
    %36 = vector.shape_cast %35 : vector<16x16x8xf32> to vector<1x16x16x8xf32>
    %cst_72 = arith.constant dense<0.000000e+00> : vector<1xf32>
    %37 = vector.multi_reduction <add>, %36, %cst_72 [1, 2, 3] : vector<1x16x16x8xf32> to vector<1xf32>
    %38 = vector.shape_cast %37 : vector<1xf32> to vector<1x1x1x1xf32>
    %39 = vector.extract %38[0, 0, 0, 0] : f32 from vector<1x1x1x1xf32>
    %40 = arith.mulf %35, %35 : vector<16x16x8xf32>
    %41 = vector.shape_cast %40 : vector<16x16x8xf32> to vector<1x16x16x8xf32>
    %cst_73 = arith.constant dense<0.000000e+00> : vector<1xf32>
    %42 = vector.multi_reduction <add>, %41, %cst_73 [1, 2, 3] : vector<1x16x16x8xf32> to vector<1xf32>
    %43 = vector.shape_cast %42 : vector<1xf32> to vector<1x1x1x1xf32>
    %44 = vector.extract %43[0, 0, 0, 0] : f32 from vector<1x1x1x1xf32>
    %cst_74 = arith.constant 4.8828125E-4 : f32
    %45 = arith.mulf %39, %cst_74 : f32
    %cst_75 = arith.constant 4.8828125E-4 : f32
    %46 = arith.mulf %44, %cst_75 : f32
    %47 = arith.mulf %45, %45 : f32
    %48 = arith.subf %46, %47 : f32
    %49 = vector.broadcast %45 : f32 to vector<16x16x8xf32>
    %50 = arith.subf %35, %49 : vector<16x16x8xf32>
    %cst_76 = arith.constant 9.99999974E-6 : f32
    %51 = arith.addf %48, %cst_76 : f32
    %52 = math.rsqrt %51 : f32
    %53 = vector.broadcast %52 : f32 to vector<16x16x8xf32>
    %54 = arith.mulf %50, %53 : vector<16x16x8xf32>
    %c0_77 = arith.constant 0 : index
    %c0_78 = arith.constant 0 : index
    %55 = vector.load %arg3[%c0_77, %c0_78] : memref<1x8xf32, #tpu.memory_space<vmem>>, vector<1x8xf32>
    %56 = vector.shape_cast %55 : vector<1x8xf32> to vector<1x1x8xf32>
    %57 = vector.broadcast %56 : vector<1x1x8xf32> to vector<16x16x8xf32>
    %58 = arith.mulf %54, %57 : vector<16x16x8xf32>
    %c0_79 = arith.constant 0 : index
    %c0_80 = arith.constant 0 : index
    %59 = vector.load %arg4[%c0_79, %c0_80] : memref<1x8xf32, #tpu.memory_space<vmem>>, vector<1x8xf32>
    %60 = vector.shape_cast %59 : vector<1x8xf32> to vector<1x1x8xf32>
    %61 = vector.broadcast %60 : vector<1x1x8xf32> to vector<16x16x8xf32>
    %62 = arith.addf %58, %61 : vector<16x16x8xf32>
    %c1_81 = arith.constant 1 : index
    %c1_82 = arith.constant 1 : index
    %c0_83 = arith.constant 0 : index
    %63 = vector.load %arg9[%c1_81, %c1_82, %c0_83] : memref<18x18x8xf32, #tpu.memory_space<vmem>>, vector<16x16x8xf32>
    tpu.vector_store %arg9[%c1_81, %c1_82, %c0_83], %62 {strides = array<i32>} : memref<18x18x8xf32, #tpu.memory_space<vmem>>, vector<16x16x8xf32>,
    %c0_84 = arith.constant 0 : index
    %c0_85 = arith.constant 0 : index
    %c0_86 = arith.constant 0 : index
    %64 = tpu.strided_load %arg9[%c0_84, %c0_85, %c0_86] {strides = array<i32: 2, 2, 1>} : memref<18x18x8xf32, #tpu.memory_space<vmem>>, vector<8x8x8xf32>
    %c0_87 = arith.constant 0 : index
    %c1_88 = arith.constant 1 : index
    %c0_89 = arith.constant 0 : index
    %65 = tpu.strided_load %arg9[%c0_87, %c1_88, %c0_89] {strides = array<i32: 2, 2, 1>} : memref<18x18x8xf32, #tpu.memory_space<vmem>>, vector<8x8x8xf32>
    %c0_90 = arith.constant 0 : index
    %c2_91 = arith.constant 2 : index
    %c0_92 = arith.constant 0 : index
    %66 = tpu.strided_load %arg9[%c0_90, %c2_91, %c0_92] {strides = array<i32: 2, 2, 1>} : memref<18x18x8xf32, #tpu.memory_space<vmem>>, vector<8x8x8xf32>
    %c1_93 = arith.constant 1 : index
    %c0_94 = arith.constant 0 : index
    %c0_95 = arith.constant 0 : index
    %67 = tpu.strided_load %arg9[%c1_93, %c0_94, %c0_95] {strides = array<i32: 2, 2, 1>} : memref<18x18x8xf32, #tpu.memory_space<vmem>>, vector<8x8x8xf32>
    %c1_96 = arith.constant 1 : index
    %c1_97 = arith.constant 1 : index
    %c0_98 = arith.constant 0 : index
    %68 = tpu.strided_load %arg9[%c1_96, %c1_97, %c0_98] {strides = array<i32: 2, 2, 1>} : memref<18x18x8xf32, #tpu.memory_space<vmem>>, vector<8x8x8xf32>
    %c1_99 = arith.constant 1 : index
    %c2_100 = arith.constant 2 : index
    %c0_101 = arith.constant 0 : index
    %69 = tpu.strided_load %arg9[%c1_99, %c2_100, %c0_101] {strides = array<i32: 2, 2, 1>} : memref<18x18x8xf32, #tpu.memory_space<vmem>>, vector<8x8x8xf32>
    %c2_102 = arith.constant 2 : index
    %c0_103 = arith.constant 0 : index
    %c0_104 = arith.constant 0 : index
    %70 = tpu.strided_load %arg9[%c2_102, %c0_103, %c0_104] {strides = array<i32: 2, 2, 1>} : memref<18x18x8xf32, #tpu.memory_space<vmem>>, vector<8x8x8xf32>
    %c2_105 = arith.constant 2 : index
    %c1_106 = arith.constant 1 : index
    %c0_107 = arith.constant 0 : index
    %71 = tpu.strided_load %arg9[%c2_105, %c1_106, %c0_107] {strides = array<i32: 2, 2, 1>} : memref<18x18x8xf32, #tpu.memory_space<vmem>>, vector<8x8x8xf32>
    %c2_108 = arith.constant 2 : index
    %c2_109 = arith.constant 2 : index
    %c0_110 = arith.constant 0 : index
    %72 = tpu.strided_load %arg9[%c2_108, %c2_109, %c0_110] {strides = array<i32: 2, 2, 1>} : memref<18x18x8xf32, #tpu.memory_space<vmem>>, vector<8x8x8xf32>
    %73 = tpu.concatenate %64, %65, %66, %67, %68, %69, %70, %71, %72 in 2 : vector<8x8x8xf32>, vector<8x8x8xf32>, vector<8x8x8xf32>, vector<8x8x8xf32>, vector<8x8x8xf32>, vector<8x8x8xf32>, vector<8x8x8xf32>, vector<8x8x8xf32>, vector<8x8x8xf32> -> vector<8x8x72xf32>
    %74 = vector.shape_cast %73 : vector<8x8x72xf32> to vector<64x72xf32>
    %c0_111 = arith.constant 0 : index
    %c0_112 = arith.constant 0 : index
    %75 = vector.load %arg5[%c0_111, %c0_112] : memref<72x16xf32, #tpu.memory_space<vmem>>, vector<72x16xf32>
    %cst_113 = arith.constant dense<0.000000e+00> : vector<64x16xf32>
    %76 = tpu.matmul %74, %75, %cst_113 {dimension_numbers = #tpu.dot_dimension_numbers<[1], [0], [0], [1], [0, 0, 1, 1], [], []>} : vector<64x72xf32>, vector<72x16xf32>, vector<64x16xf32> -> vector<64x16xf32>
    %77 = vector.shape_cast %76 : vector<64x16xf32> to vector<1x64x16xf32>
    %cst_114 = arith.constant dense<0.000000e+00> : vector<1xf32>
    %78 = vector.multi_reduction <add>, %77, %cst_114 [1, 2] : vector<1x64x16xf32> to vector<1xf32>
    %79 = vector.shape_cast %78 : vector<1xf32> to vector<1x1x1xf32>
    %80 = vector.extract %79[0, 0, 0] : f32 from vector<1x1x1xf32>
    %81 = arith.mulf %76, %76 : vector<64x16xf32>
    %82 = vector.shape_cast %81 : vector<64x16xf32> to vector<1x64x16xf32>
    %cst_115 = arith.constant dense<0.000000e+00> : vector<1xf32>
    %83 = vector.multi_reduction <add>, %82, %cst_115 [1, 2] : vector<1x64x16xf32> to vector<1xf32>
    %84 = vector.shape_cast %83 : vector<1xf32> to vector<1x1x1xf32>
    %85 = vector.extract %84[0, 0, 0] : f32 from vector<1x1x1xf32>
    %cst_116 = arith.constant 9.765625E-4 : f32
    %86 = arith.mulf %80, %cst_116 : f32
    %cst_117 = arith.constant 9.765625E-4 : f32
    %87 = arith.mulf %85, %cst_117 : f32
    %88 = arith.mulf %86, %86 : f32
    %89 = arith.subf %87, %88 : f32
    %90 = vector.broadcast %86 : f32 to vector<64x16xf32>
    %91 = arith.subf %76, %90 : vector<64x16xf32>
    %cst_118 = arith.constant 9.99999974E-6 : f32
    %92 = arith.addf %89, %cst_118 : f32
    %93 = math.rsqrt %92 : f32
    %94 = vector.broadcast %93 : f32 to vector<64x16xf32>
    %95 = arith.mulf %91, %94 : vector<64x16xf32>
    %c0_119 = arith.constant 0 : index
    %c0_120 = arith.constant 0 : index
    %96 = vector.load %arg6[%c0_119, %c0_120] : memref<1x16xf32, #tpu.memory_space<vmem>>, vector<1x16xf32>
    %97 = vector.broadcast %96 : vector<1x16xf32> to vector<64x16xf32>
    %98 = arith.mulf %95, %97 : vector<64x16xf32>
    %c0_121 = arith.constant 0 : index
    %c0_122 = arith.constant 0 : index
    %99 = vector.load %arg7[%c0_121, %c0_122] : memref<1x16xf32, #tpu.memory_space<vmem>>, vector<1x16xf32>
    %100 = vector.broadcast %99 : vector<1x16xf32> to vector<64x16xf32>
    %101 = arith.addf %98, %100 : vector<64x16xf32>
    %102 = vector.shape_cast %101 : vector<64x16xf32> to vector<8x8x16xf32>
    %c0_123 = arith.constant 0 : index
    %c0_124 = arith.constant 0 : index
    %c0_125 = arith.constant 0 : index
    %c0_126 = arith.constant 0 : index
    %103 = vector.load %arg8[%c0_123, %c0_124, %c0_125, %c0_126] : memref<1x8x8x16xf32, #tpu.memory_space<vmem>>, vector<1x8x8x16xf32>
    %104 = vector.shape_cast %103 : vector<1x8x8x16xf32> to vector<8x8x16xf32>
    %105 = vector.shape_cast %102 : vector<8x8x16xf32> to vector<1x8x8x16xf32>
    tpu.vector_store %arg8[%c0_123, %c0_124, %c0_125, %c0_126], %105 {strides = array<i32>} : memref<1x8x8x16xf32, #tpu.memory_space<vmem>>, vector<1x8x8x16xf32>,
    return
  }
  func.func @transform_0(%arg0: i32) -> (i32, i32, i32, i32) {
    %c0_i32 = arith.constant 0 : i32
    %c0_i32_0 = arith.constant 0 : i32
    %c0_i32_1 = arith.constant 0 : i32
    %c0_i32_2 = arith.constant 0 : i32
    return %arg0, %c0_i32, %c0_i32_0, %c0_i32_1 : i32, i32, i32, i32
  }
  func.func @transform_1(%arg0: i32) -> (i32, i32, i32) {
    %c0_i32 = arith.constant 0 : i32
    %c0_i32_0 = arith.constant 0 : i32
    %c0_i32_1 = arith.constant 0 : i32
    %c0_i32_2 = arith.constant 0 : i32
    return %c0_i32, %c0_i32_0, %c0_i32_1 : i32, i32, i32
  }
  func.func @transform_2(%arg0: i32) -> (i32, i32) {
    %c0_i32 = arith.constant 0 : i32
    %c0_i32_0 = arith.constant 0 : i32
    %c0_i32_1 = arith.constant 0 : i32
    return %c0_i32, %c0_i32_0 : i32, i32
  }
  func.func @transform_3(%arg0: i32) -> (i32, i32) {
    %c0_i32 = arith.constant 0 : i32
    %c0_i32_0 = arith.constant 0 : i32
    %c0_i32_1 = arith.constant 0 : i32
    return %c0_i32, %c0_i32_0 : i32, i32
  }
  func.func @transform_4(%arg0: i32) -> (i32, i32) {
    %c0_i32 = arith.constant 0 : i32
    %c0_i32_0 = arith.constant 0 : i32
    %c0_i32_1 = arith.constant 0 : i32
    return %c0_i32, %c0_i32_0 : i32, i32
  }
  func.func @transform_5(%arg0: i32) -> (i32, i32) {
    %c0_i32 = arith.constant 0 : i32
    %c0_i32_0 = arith.constant 0 : i32
    %c0_i32_1 = arith.constant 0 : i32
    return %c0_i32, %c0_i32_0 : i32, i32
  }
  func.func @transform_6(%arg0: i32) -> (i32, i32) {
    %c0_i32 = arith.constant 0 : i32
    %c0_i32_0 = arith.constant 0 : i32
    %c0_i32_1 = arith.constant 0 : i32
    return %c0_i32, %c0_i32_0 : i32, i32
  }
  func.func @transform_7(%arg0: i32) -> (i32, i32, i32, i32) {
    %c0_i32 = arith.constant 0 : i32
    %c0_i32_0 = arith.constant 0 : i32
    %c0_i32_1 = arith.constant 0 : i32
    %c0_i32_2 = arith.constant 0 : i32
    return %arg0, %c0_i32, %c0_i32_0, %c0_i32_1 : i32, i32, i32, i32
  }
}

</mosaic_0001>

<llo_original>
// kernel: tpu_custom_call.1
$region0: #{tpu_custom_call.1}
  #allocation0 [shape = 'u32[]', space=smem, size = 0x4, offset = 0x4, fixed_abs, tag = 'smem constant byte address 0x4 - core index']
  #allocation1 [shape = 'u32[144,128]{1,0:T(1,128)}', space=vmem, size = 0x12000, scoped, tag = 'internal scratch']
  #allocation2 [shape = 'f32[18,18,8]{2,1,0:T(8,128)}', space=vmem, size = 0x36000, scoped, tag = 'scratch operand']
  %s0 = inlined_call_operand.vmem [shape: f32[2,16,16,8], index: 0, kind: input, shape index: {}]
  %s1 = inlined_call_operand.vmem [shape: f32[2,72,8], index: 1, kind: input, shape index: {}]
  %s2 = inlined_call_operand.vmem [shape: f32[1,8], index: 2, kind: input, shape index: {}]
  %s3 = inlined_call_operand.vmem [shape: f32[1,8], index: 3, kind: input, shape index: {}]
  %s4 = inlined_call_operand.vmem [shape: f32[72,16], index: 4, kind: input, shape index: {}]
  %s5 = inlined_call_operand.vmem [shape: f32[1,16], index: 5, kind: input, shape index: {}]
  %s6 = inlined_call_operand.vmem [shape: f32[1,16], index: 6, kind: input, shape index: {}]
  %s7 = inlined_call_operand.hbm [shape: f32[2,8,8,16], index: 7, kind: output, shape index: {}]
  %s8 = sld [smem:[#allocation0]]
  $region61: #{tpu_custom_call.1} parent=0
    _
  %s10 = ssub.s32 1, %s8
  %s11 = scalar_select 0, %s10, %s8
  $region1: #{tpu_custom_call.1} parent=0
    #allocation3 [shape = 'u8[65536]{0}', space=vmem, size = 0x10000, scoped, tag = 'output window, operand 0']
    #allocation4 [shape = 's32[2]{0}', space=sflag, size = 0x8, scoped, tag = 'scoped memory for tpu_custom_call.1']
    %12 = vsyncpa [#allocation4], 0
    %s13 = scalar_lea.sflag [#allocation4], 1
    %14 = vsyncpa %s13, 0
    loop: start=0, step=1, limit=4
    $region2: #{tpu_custom_call.1} parent=1 // loop_pre_header
      _
    $region3: #{tpu_custom_call.1} parent=1 // loop_header
      %s16 = sphi 0, %s20
      %p17 = scmp.ge.s32.totalorder %s16, 4
      %s26 = sphi 0, %s28
      %s29 = sphi 0, %s26
      %s30 = sphi 0, %s29
      %s46 = sphi 0, %s30
      %s50 = sphi 0, %s50
      %s52 = sphi 0, %s50
      %s53 = sphi 0, %s52
      %s67 = sphi 0, %s53
      %s71 = sphi 0, %s71
      %s73 = sphi 0, %s71
      %s74 = sphi 0, %s73
      %s88 = sphi 0, %s74
      %s92 = sphi 0, %s92
      %s94 = sphi 0, %s92
      %s95 = sphi 0, %s94
      %s109 = sphi 0, %s95
      %s113 = sphi 0, %s113
      %s115 = sphi 0, %s113
      %s116 = sphi 0, %s115
      %s130 = sphi 0, %s116
      %s134 = sphi 0, %s134
      %s136 = sphi 0, %s134
      %s137 = sphi 0, %s136
      %s151 = sphi 0, %s137
      %s155 = sphi 0, %s155
      %s157 = sphi 0, %s155
      %s158 = sphi 0, %s157
      %s172 = sphi 0, %s158
      %s178 = sphi 0, %s180
      %s181 = sphi 0, %s178
      %s182 = sphi 0, %s181
      %s198 = sphi 0, %s182
    $region4: #{tpu_custom_call.1} parent=1 // loop_header_branch
      %19 = sbr.rel (%p17) target = $region8
    $region5: #{tpu_custom_call.1} parent=1 // loop_body
      %s21 = ssub.s32 %s16, 1
      %s22 = ssub.s32 %s16, 2
      %s23 = sadd.s32 %s16, 1
      %s24 = ssub.s32 %s16, %s23
      %p25 = scmp.eq.s32.totalorder %s24, 0
      %s27 = sadd.s32 %s26, 1
      %s28 = scalar_select %p25, %s26, %s27
      %p31 = pneg %p25
      %p32 = scmp.eq.s32.totalorder %s16, 1
      %p33 = por %p31, %p32
      %p34 = scmp.ne.s32.totalorder %s26, %s29
      %p35 = scmp.eq.s32.totalorder %s16, 0
      %p36 = por %p34, %p35
      %p37 = scmp.ne.s32.totalorder %s26, %s29
      %p38 = scmp.eq.s32.totalorder %s21, 1
      %p39 = por %p37, %p38
      %p40 = scmp.ne.s32.totalorder %s29, %s30
      %p41 = scmp.eq.s32.totalorder %s21, 0
      %p42 = por %p40, %p41
      %p43 = scmp.ne.s32.totalorder %s29, %s30
      %p44 = scmp.eq.s32.totalorder %s22, 1
      %p45 = por %p43, %p44
      %p47 = scmp.ne.s32.totalorder %s30, %s46
      %p48 = scmp.eq.s32.totalorder %s22, 0
      %p49 = por %p47, %p48
      %s51 = sadd.s32 %s50, 1
      %p54 = scmp.eq.s32.totalorder %s16, 1
      %p55 = scmp.ne.s32.totalorder %s50, %s52
      %p56 = scmp.eq.s32.totalorder %s16, 0
      %p57 = por %p55, %p56
      %p58 = scmp.ne.s32.totalorder %s50, %s52
      %p59 = scmp.eq.s32.totalorder %s21, 1
      %p60 = por %p58, %p59
      %p61 = scmp.ne.s32.totalorder %s52, %s53
      %p62 = scmp.eq.s32.totalorder %s21, 0
      %p63 = por %p61, %p62
      %p64 = scmp.ne.s32.totalorder %s52, %s53
      %p65 = scmp.eq.s32.totalorder %s22, 1
      %p66 = por %p64, %p65
      %p68 = scmp.ne.s32.totalorder %s53, %s67
      %p69 = scmp.eq.s32.totalorder %s22, 0
      %p70 = por %p68, %p69
      %s72 = sadd.s32 %s71, 1
      %p75 = scmp.eq.s32.totalorder %s16, 1
      %p76 = scmp.ne.s32.totalorder %s71, %s73
      %p77 = scmp.eq.s32.totalorder %s16, 0
      %p78 = por %p76, %p77
      %p79 = scmp.ne.s32.totalorder %s71, %s73
      %p80 = scmp.eq.s32.totalorder %s21, 1
      %p81 = por %p79, %p80
      %p82 = scmp.ne.s32.totalorder %s73, %s74
      %p83 = scmp.eq.s32.totalorder %s21, 0
      %p84 = por %p82, %p83
      %p85 = scmp.ne.s32.totalorder %s73, %s74
      %p86 = scmp.eq.s32.totalorder %s22, 1
      %p87 = por %p85, %p86
      %p89 = scmp.ne.s32.totalorder %s74, %s88
      %p90 = scmp.eq.s32.totalorder %s22, 0
      %p91 = por %p89, %p90
      %s93 = sadd.s32 %s92, 1
      %p96 = scmp.eq.s32.totalorder %s16, 1
      %p97 = scmp.ne.s32.totalorder %s92, %s94
      %p98 = scmp.eq.s32.totalorder %s16, 0
      %p99 = por %p97, %p98
      %p100 = scmp.ne.s32.totalorder %s92, %s94
      %p101 = scmp.eq.s32.totalorder %s21, 1
      %p102 = por %p100, %p101
      %p103 = scmp.ne.s32.totalorder %s94, %s95
      %p104 = scmp.eq.s32.totalorder %s21, 0
      %p105 = por %p103, %p104
      %p106 = scmp.ne.s32.totalorder %s94, %s95
      %p107 = scmp.eq.s32.totalorder %s22, 1
      %p108 = por %p106, %p107
      %p110 = scmp.ne.s32.totalorder %s95, %s109
      %p111 = scmp.eq.s32.totalorder %s22, 0
      %p112 = por %p110, %p111
      %s114 = sadd.s32 %s113, 1
      %p117 = scmp.eq.s32.totalorder %s16, 1
      %p118 = scmp.ne.s32.totalorder %s113, %s115
      %p119 = scmp.eq.s32.totalorder %s16, 0
      %p120 = por %p118, %p119
      %p121 = scmp.ne.s32.totalorder %s113, %s115
      %p122 = scmp.eq.s32.totalorder %s21, 1
      %p123 = por %p121, %p122
      %p124 = scmp.ne.s32.totalorder %s115, %s116
      %p125 = scmp.eq.s32.totalorder %s21, 0
      %p126 = por %p124, %p125
      %p127 = scmp.ne.s32.totalorder %s115, %s116
      %p128 = scmp.eq.s32.totalorder %s22, 1
      %p129 = por %p127, %p128
      %p131 = scmp.ne.s32.totalorder %s116, %s130
      %p132 = scmp.eq.s32.totalorder %s22, 0
      %p133 = por %p131, %p132
      %s135 = sadd.s32 %s134, 1
      %p138 = scmp.eq.s32.totalorder %s16, 1
      %p139 = scmp.ne.s32.totalorder %s134, %s136
      %p140 = scmp.eq.s32.totalorder %s16, 0
      %p141 = por %p139, %p140
      %p142 = scmp.ne.s32.totalorder %s134, %s136
      %p143 = scmp.eq.s32.totalorder %s21, 1
      %p144 = por %p142, %p143
      %p145 = scmp.ne.s32.totalorder %s136, %s137
      %p146 = scmp.eq.s32.totalorder %s21, 0
      %p147 = por %p145, %p146
      %p148 = scmp.ne.s32.totalorder %s136, %s137
      %p149 = scmp.eq.s32.totalorder %s22, 1
      %p150 = por %p148, %p149
      %p152 = scmp.ne.s32.totalorder %s137, %s151
      %p153 = scmp.eq.s32.totalorder %s22, 0
      %p154 = por %p152, %p153
      %s156 = sadd.s32 %s155, 1
      %p159 = scmp.eq.s32.totalorder %s16, 1
      %p160 = scmp.ne.s32.totalorder %s155, %s157
      %p161 = scmp.eq.s32.totalorder %s16, 0
      %p162 = por %p160, %p161
      %p163 = scmp.ne.s32.totalorder %s155, %s157
      %p164 = scmp.eq.s32.totalorder %s21, 1
      %p165 = por %p163, %p164
      %p166 = scmp.ne.s32.totalorder %s157, %s158
      %p167 = scmp.eq.s32.totalorder %s21, 0
      %p168 = por %p166, %p167
      %p169 = scmp.ne.s32.totalorder %s157, %s158
      %p170 = scmp.eq.s32.totalorder %s22, 1
      %p171 = por %p169, %p170
      %p173 = scmp.ne.s32.totalorder %s158, %s172
      %p174 = scmp.eq.s32.totalorder %s22, 0
      %p175 = por %p173, %p174
      %s176 = ssub.s32 %s16, %s23
      %p177 = scmp.eq.s32.totalorder %s176, 0
      %s179 = sadd.s32 %s178, 1
      %s180 = scalar_select %p177, %s178, %s179
      %p183 = pneg %p177
      %p184 = scmp.eq.s32.totalorder %s16, 1
      %p185 = por %p183, %p184
      %p186 = scmp.ne.s32.totalorder %s178, %s181
      %p187 = scmp.eq.s32.totalorder %s16, 0
      %p188 = por %p186, %p187
      %p189 = scmp.ne.s32.totalorder %s178, %s181
      %p190 = scmp.eq.s32.totalorder %s21, 1
      %p191 = por %p189, %p190
      %p192 = scmp.ne.s32.totalorder %s181, %s182
      %p193 = scmp.eq.s32.totalorder %s21, 0
      %p194 = por %p192, %p193
      %p195 = scmp.ne.s32.totalorder %s181, %s182
      %p196 = scmp.eq.s32.totalorder %s22, 1
      %p197 = por %p195, %p196
      %p199 = scmp.ne.s32.totalorder %s182, %s198
      %p200 = scmp.eq.s32.totalorder %s22, 0
      %p201 = por %p199, %p200
      %p202 = scmp.le.s32.totalorder 1, %s16
      %p203 = scmp.lt.s32.totalorder %s16, 3
      %p204 = pnand %p202, %p203
      %p205 = pneg %p204
      // Predicated region
      $region9: #{tpu_custom_call.1} parent=5 // pred_check
        _
      $region10: #{tpu_custom_call.1} parent=5 // pred_check_branch
        %207 = sbr.rel (%p204) target = $region12
      $region11: #{tpu_custom_call.1} parent=5 // pred_region
        %s208 = ssub.s32 %s16, 1
        // Predicated region
        $region13: #{tpu_custom_call.1} parent=11 // pred_check
          %p209 = pneg %p63
        $region14: #{tpu_custom_call.1} parent=11 // pred_check_branch
          %211 = sbr.rel (%p209) target = $region16
        $region15: #{tpu_custom_call.1} parent=11 // pred_region
          _
        $region16: #{tpu_custom_call.1} parent=11 // pred_fallthru
          _
        // Predicated region
        $region17: #{tpu_custom_call.1} parent=11 // pred_check
          %p212 = pneg %p84
        $region18: #{tpu_custom_call.1} parent=11 // pred_check_branch
          %214 = sbr.rel (%p212) target = $region20
        $region19: #{tpu_custom_call.1} parent=11 // pred_region
          _
        $region20: #{tpu_custom_call.1} parent=11 // pred_fallthru
          _
        // Predicated region
        $region21: #{tpu_custom_call.1} parent=11 // pred_check
          %p215 = pneg %p105
        $region22: #{tpu_custom_call.1} parent=11 // pred_check_branch
          %217 = sbr.rel (%p215) target = $region24
        $region23: #{tpu_custom_call.1} parent=11 // pred_region
          _
        $region24: #{tpu_custom_call.1} parent=11 // pred_fallthru
          _
        // Predicated region
        $region25: #{tpu_custom_call.1} parent=11 // pred_check
          %p218 = pneg %p126
        $region26: #{tpu_custom_call.1} parent=11 // pred_check_branch
          %220 = sbr.rel (%p218) target = $region28
        $region27: #{tpu_custom_call.1} parent=11 // pred_region
          _
        $region28: #{tpu_custom_call.1} parent=11 // pred_fallthru
          _
        // Predicated region
        $region29: #{tpu_custom_call.1} parent=11 // pred_check
          %p221 = pneg %p147
        $region30: #{tpu_custom_call.1} parent=11 // pred_check_branch
          %223 = sbr.rel (%p221) target = $region32
        $region31: #{tpu_custom_call.1} parent=11 // pred_region
          _
        $region32: #{tpu_custom_call.1} parent=11 // pred_fallthru
          _
        // Predicated region
        $region33: #{tpu_custom_call.1} parent=11 // pred_check
          %p224 = pneg %p168
        $region34: #{tpu_custom_call.1} parent=11 // pred_check_branch
          %226 = sbr.rel (%p224) target = $region36
        $region35: #{tpu_custom_call.1} parent=11 // pred_region
          _
        $region36: #{tpu_custom_call.1} parent=11 // pred_fallthru
          _
      $region12: #{tpu_custom_call.1} parent=5 // pred_fallthru
        _
      %p227 = scmp.lt.s32.totalorder %s16, 2
      // Predicated region
      $region37: #{tpu_custom_call.1} parent=5 // pred_check
        %p228 = pneg %p227
      $region38: #{tpu_custom_call.1} parent=5 // pred_check_branch
        %230 = sbr.rel (%p228) target = $region40
      $region39: #{tpu_custom_call.1} parent=5 // pred_region
        // Predicated region
        $region41: #{tpu_custom_call.1} parent=39 // pred_check
          %p231 = pneg %p36
        $region42: #{tpu_custom_call.1} parent=39 // pred_check_branch
          %233 = sbr.rel (%p231) target = $region44
        $region43: #{tpu_custom_call.1} parent=39 // pred_region
          %p234 = scmp.lt.s32.totalorder %s16, 1
          %s235 = scalar_select %p234, %s16, 1
          %s236 = smul.addr %s235, 32
          %s237 = smul.addr %s236, 8
          %s238 = scalar_lea.vmem %s0, %s237
        $region44: #{tpu_custom_call.1} parent=39 // pred_fallthru
          _
      $region40: #{tpu_custom_call.1} parent=5 // pred_fallthru
        _
      %p239 = scmp.le.s32.totalorder 1, %s16
      %p240 = scmp.lt.s32.totalorder %s16, 3
      %p241 = pnand %p239, %p240
      %p242 = pneg %p241
      // Predicated region
      $region45: #{tpu_custom_call.1} parent=5 // pred_check
        _
      $region46: #{tpu_custom_call.1} parent=5 // pred_check_branch
        %244 = sbr.rel (%p241) target = $region48
      $region47: #{tpu_custom_call.1} parent=5 // pred_region
        %s245 = ssub.s32 %s16, 1
        %p246 = scmp.lt.s32.totalorder %s21, 1
        %s247 = scalar_select %p246, %s21, 1
        %s248 = smul.addr %s247, 32
        %s249 = smul.addr %s248, 8
        %s250 = scalar_lea.vmem %s0, %s249
        %p251 = pneg %p42
        %p252 = pneg %p39
        %p253 = pneg %p63
        %p254 = pneg %p60
        %p255 = pneg %p84
        %p256 = pneg %p81
        %p257 = pneg %p105
        %p258 = pneg %p102
        %p259 = pneg %p126
        %p260 = pneg %p123
        %p261 = pneg %p147
        %p262 = pneg %p144
        %p263 = pneg %p168
        %p264 = pneg %p165
        %p265 = pneg %p194
        %p266 = pneg %p191
        %s267 = sand.u32 %s181, 1
        %s268 = scalar_lea.sflag [#allocation4], %s267
        %s269 = sand.u32 %s181, 1
        %s270 = smul.addr %s269, 64
        %s271 = scalar_lea.vmem [#allocation3], %s270
        %p272 = scmp.lt.s32.totalorder %s21, 1
        %s273 = scalar_select %p272, %s21, 1
        %s274 = smul.addr %s273, 32
        %s275 = smul.addr %s274, 8
        %s276 = scalar_lea.vmem %s0, %s275
        %vm277 = vcmask 64512
        %278 = vst.msk [vmem:[#allocation2] sm:$0xff] %vm277, 0.0
        %279 = vst.msk [vmem:[#allocation2 + $0x8] sm:$0xff] %vm277, 0.0
        %vm280 = vcmask 58368
        %281 = vst.msk [vmem:[#allocation2 + $0x10] sm:$0x3] %vm280, 0.0
        %282 = vst.msk [vmem:[#allocation2 + $0x18] sm:$0xff] %vm277, 0.0
        %283 = vst.msk [vmem:[#allocation2 + $0x20] sm:$0xff] %vm277, 0.0
        %284 = vst.msk [vmem:[#allocation2 + $0x28] sm:$0x3] %vm280, 0.0
        %285 = vst.msk [vmem:[#allocation2 + $0x30] sm:$0xff] %vm277, 0.0
        %286 = vst.msk [vmem:[#allocation2 + $0x38] sm:$0xff] %vm277, 0.0
        %287 = vst.msk [vmem:[#allocation2 + $0x40] sm:$0x3] %vm280, 0.0
        %288 = vst.msk [vmem:[#allocation2 + $0x48] sm:$0xff] %vm277, 0.0
        %289 = vst.msk [vmem:[#allocation2 + $0x50] sm:$0xff] %vm277, 0.0
        %290 = vst.msk [vmem:[#allocation2 + $0x58] sm:$0x3] %vm280, 0.0
        %291 = vst.msk [vmem:[#allocation2 + $0x60] sm:$0xff] %vm277, 0.0
        %292 = vst.msk [vmem:[#allocation2 + $0x68] sm:$0xff] %vm277, 0.0
        %293 = vst.msk [vmem:[#allocation2 + $0x70] sm:$0x3] %vm280, 0.0
        %294 = vst.msk [vmem:[#allocation2 + $0x78] sm:$0xff] %vm277, 0.0
        %295 = vst.msk [vmem:[#allocation2 + $0x80] sm:$0xff] %vm277, 0.0
        %296 = vst.msk [vmem:[#allocation2 + $0x88] sm:$0x3] %vm280, 0.0
        %297 = vst.msk [vmem:[#allocation2 + $0x90] sm:$0xff] %vm277, 0.0
        %298 = vst.msk [vmem:[#allocation2 + $0x98] sm:$0xff] %vm277, 0.0
        %299 = vst.msk [vmem:[#allocation2 + $0xa0] sm:$0x3] %vm280, 0.0
        %300 = vst.msk [vmem:[#allocation2 + $0xa8] sm:$0xff] %vm277, 0.0
        %301 = vst.msk [vmem:[#allocation2 + $0xb0] sm:$0xff] %vm277, 0.0
        %302 = vst.msk [vmem:[#allocation2 + $0xb8] sm:$0x3] %vm280, 0.0
        %303 = vst.msk [vmem:[#allocation2 + $0xc0] sm:$0xff] %vm277, 0.0
        %304 = vst.msk [vmem:[#allocation2 + $0xc8] sm:$0xff] %vm277, 0.0
        %305 = vst.msk [vmem:[#allocation2 + $0xd0] sm:$0x3] %vm280, 0.0
        %306 = vst.msk [vmem:[#allocation2 + $0xd8] sm:$0xff] %vm277, 0.0
        %307 = vst.msk [vmem:[#allocation2 + $0xe0] sm:$0xff] %vm277, 0.0
        %308 = vst.msk [vmem:[#allocation2 + $0xe8] sm:$0x3] %vm280, 0.0
        %309 = vst.msk [vmem:[#allocation2 + $0xf0] sm:$0xff] %vm277, 0.0
        %310 = vst.msk [vmem:[#allocation2 + $0xf8] sm:$0xff] %vm277, 0.0
        %311 = vst.msk [vmem:[#allocation2 + $0x100] sm:$0x3] %vm280, 0.0
        %312 = vst.msk [vmem:[#allocation2 + $0x108] sm:$0xff] %vm277, 0.0
        %313 = vst.msk [vmem:[#allocation2 + $0x110] sm:$0xff] %vm277, 0.0
        %314 = vst.msk [vmem:[#allocation2 + $0x118] sm:$0x3] %vm280, 0.0
        %315 = vst.msk [vmem:[#allocation2 + $0x120] sm:$0xff] %vm277, 0.0
        %316 = vst.msk [vmem:[#allocation2 + $0x128] sm:$0xff] %vm277, 0.0
        %317 = vst.msk [vmem:[#allocation2 + $0x130] sm:$0x3] %vm280, 0.0
        %318 = vst.msk [vmem:[#allocation2 + $0x138] sm:$0xff] %vm277, 0.0
        %319 = vst.msk [vmem:[#allocation2 + $0x140] sm:$0xff] %vm277, 0.0
        %320 = vst.msk [vmem:[#allocation2 + $0x148] sm:$0x3] %vm280, 0.0
        %321 = vst.msk [vmem:[#allocation2 + $0x150] sm:$0xff] %vm277, 0.0
        %322 = vst.msk [vmem:[#allocation2 + $0x158] sm:$0xff] %vm277, 0.0
        %323 = vst.msk [vmem:[#allocation2 + $0x160] sm:$0x3] %vm280, 0.0
        %324 = vst.msk [vmem:[#allocation2 + $0x168] sm:$0xff] %vm277, 0.0
        %325 = vst.msk [vmem:[#allocation2 + $0x170] sm:$0xff] %vm277, 0.0
        %326 = vst.msk [vmem:[#allocation2 + $0x178] sm:$0x3] %vm280, 0.0
        %327 = vst.msk [vmem:[#allocation2 + $0x180] sm:$0xff] %vm277, 0.0
        %328 = vst.msk [vmem:[#allocation2 + $0x188] sm:$0xff] %vm277, 0.0
        %329 = vst.msk [vmem:[#allocation2 + $0x190] sm:$0x3] %vm280, 0.0
        %330 = vst.msk [vmem:[#allocation2 + $0x198] sm:$0xff] %vm277, 0.0
        %331 = vst.msk [vmem:[#allocation2 + $0x1a0] sm:$0xff] %vm277, 0.0
        %332 = vst.msk [vmem:[#allocation2 + $0x1a8] sm:$0x3] %vm280, 0.0
        %v333 = vld [vmem:[%s276] sm:$0xff]
        %v334 = vld [vmem:[%s276 + $0x8] sm:$0xff]
        %v335 = vld [vmem:[%s276 + $0x10] sm:$0xff]
        %v336 = vld [vmem:[%s276 + $0x18] sm:$0xff]
        %v337 = vld [vmem:[%s276 + $0x20] sm:$0xff]
        %v338 = vld [vmem:[%s276 + $0x28] sm:$0xff]
        %v339 = vld [vmem:[%s276 + $0x30] sm:$0xff]
        %v340 = vld [vmem:[%s276 + $0x38] sm:$0xff]
        %v341 = vld [vmem:[%s276 + $0x40] sm:$0xff]
        %v342 = vld [vmem:[%s276 + $0x48] sm:$0xff]
        %v343 = vld [vmem:[%s276 + $0x50] sm:$0xff]
        %v344 = vld [vmem:[%s276 + $0x58] sm:$0xff]
        %v345 = vld [vmem:[%s276 + $0x60] sm:$0xff]
        %v346 = vld [vmem:[%s276 + $0x68] sm:$0xff]
        %v347 = vld [vmem:[%s276 + $0x70] sm:$0xff]
        %v348 = vld [vmem:[%s276 + $0x78] sm:$0xff]
        %v349 = vld [vmem:[%s276 + $0x80] sm:$0xff]
        %v350 = vld [vmem:[%s276 + $0x88] sm:$0xff]
        %v351 = vld [vmem:[%s276 + $0x90] sm:$0xff]
        %v352 = vld [vmem:[%s276 + $0x98] sm:$0xff]
        %v353 = vld [vmem:[%s276 + $0xa0] sm:$0xff]
        %v354 = vld [vmem:[%s276 + $0xa8] sm:$0xff]
        %v355 = vld [vmem:[%s276 + $0xb0] sm:$0xff]
        %v356 = vld [vmem:[%s276 + $0xb8] sm:$0xff]
        %v357 = vld [vmem:[%s276 + $0xc0] sm:$0xff]
        %v358 = vld [vmem:[%s276 + $0xc8] sm:$0xff]
        %v359 = vld [vmem:[%s276 + $0xd0] sm:$0xff]
        %v360 = vld [vmem:[%s276 + $0xd8] sm:$0xff]
        %v361 = vld [vmem:[%s276 + $0xe0] sm:$0xff]
        %v362 = vld [vmem:[%s276 + $0xe8] sm:$0xff]
        %v363 = vld [vmem:[%s276 + $0xf0] sm:$0xff]
        %v364 = vld [vmem:[%s276 + $0xf8] sm:$0xff]
        %s365 = scalar_lea.vmem [#allocation2], 24
        %366 = vst.msk [vmem:[%s365 + $0x1] sm:$0xff] %vm277, %v333
        %367 = vst.msk [vmem:[%s365 + $0x9] sm:$0xff] %vm277, %v334
        %368 = vst.msk [vmem:[%s365 + $0x19] sm:$0xff] %vm277, %v335
        %369 = vst.msk [vmem:[%s365 + $0x21] sm:$0xff] %vm277, %v336
        %370 = vst.msk [vmem:[%s365 + $0x31] sm:$0xff] %vm277, %v337
        %371 = vst.msk [vmem:[%s365 + $0x39] sm:$0xff] %vm277, %v338
        %372 = vst.msk [vmem:[%s365 + $0x49] sm:$0xff] %vm277, %v339
        %373 = vst.msk [vmem:[%s365 + $0x51] sm:$0xff] %vm277, %v340
        %374 = vst.msk [vmem:[%s365 + $0x61] sm:$0xff] %vm277, %v341
        %375 = vst.msk [vmem:[%s365 + $0x69] sm:$0xff] %vm277, %v342
        %376 = vst.msk [vmem:[%s365 + $0x79] sm:$0xff] %vm277, %v343
        %377 = vst.msk [vmem:[%s365 + $0x81] sm:$0xff] %vm277, %v344
        %378 = vst.msk [vmem:[%s365 + $0x91] sm:$0xff] %vm277, %v345
        %379 = vst.msk [vmem:[%s365 + $0x99] sm:$0xff] %vm277, %v346
        %380 = vst.msk [vmem:[%s365 + $0xa9] sm:$0xff] %vm277, %v347
        %381 = vst.msk [vmem:[%s365 + $0xb1] sm:$0xff] %vm277, %v348
        %382 = vst.msk [vmem:[%s365 + $0xc1] sm:$0xff] %vm277, %v349
        %383 = vst.msk [vmem:[%s365 + $0xc9] sm:$0xff] %vm277, %v350
        %384 = vst.msk [vmem:[%s365 + $0xd9] sm:$0xff] %vm277, %v351
        %385 = vst.msk [vmem:[%s365 + $0xe1] sm:$0xff] %vm277, %v352
        %386 = vst.msk [vmem:[%s365 + $0xf1] sm:$0xff] %vm277, %v353
        %387 = vst.msk [vmem:[%s365 + $0xf9] sm:$0xff] %vm277, %v354
        %388 = vst.msk [vmem:[%s365 + $0x109] sm:$0xff] %vm277, %v355
        %389 = vst.msk [vmem:[%s365 + $0x111] sm:$0xff] %vm277, %v356
        %390 = vst.msk [vmem:[%s365 + $0x121] sm:$0xff] %vm277, %v357
        %391 = vst.msk [vmem:[%s365 + $0x129] sm:$0xff] %vm277, %v358
        %392 = vst.msk [vmem:[%s365 + $0x139] sm:$0xff] %vm277, %v359
        %393 = vst.msk [vmem:[%s365 + $0x141] sm:$0xff] %vm277, %v360
        %394 = vst.msk [vmem:[%s365 + $0x151] sm:$0xff] %vm277, %v361
        %395 = vst.msk [vmem:[%s365 + $0x159] sm:$0xff] %vm277, %v362
        %396 = vst.msk [vmem:[%s365 + $0x169] sm:$0xff] %vm277, %v363
        %397 = vst.msk [vmem:[%s365 + $0x171] sm:$0xff] %vm277, %v364
        %v398 = vld [vmem:[#allocation2] sm:$0xff]
        %v399 = vld [vmem:[#allocation2 + $0x8] sm:$0xff]
        %v400 = vld [vmem:[#allocation2 + $0x18] sm:$0xff]
        %v401 = vld [vmem:[#allocation2 + $0x20] sm:$0xff]
        %v402 = vld [vmem:[#allocation2 + $0x30] sm:$0xff]
        %v403 = vld [vmem:[#allocation2 + $0x38] sm:$0xff]
        %v404 = vld [vmem:[#allocation2 + $0x48] sm:$0xff]
        %v405 = vld [vmem:[#allocation2 + $0x50] sm:$0xff]
        %v406 = vld [vmem:[#allocation2 + $0x60] sm:$0xff]
        %v407 = vld [vmem:[#allocation2 + $0x68] sm:$0xff]
        %v408 = vld [vmem:[#allocation2 + $0x78] sm:$0xff]
        %v409 = vld [vmem:[#allocation2 + $0x80] sm:$0xff]
        %v410 = vld [vmem:[#allocation2 + $0x90] sm:$0xff]
        %v411 = vld [vmem:[#allocation2 + $0x98] sm:$0xff]
        %v412 = vld [vmem:[#allocation2 + $0xa8] sm:$0xff]
        %v413 = vld [vmem:[#allocation2 + $0xb0] sm:$0xff]
        %v414 = vld [vmem:[#allocation2 + $0xc0] sm:$0xff]
        %v415 = vld [vmem:[#allocation2 + $0xc8] sm:$0xff]
        %v416 = vld [vmem:[#allocation2 + $0xd8] sm:$0xff]
        %v417 = vld [vmem:[#allocation2 + $0xe0] sm:$0xff]
        %v418 = vld [vmem:[#allocation2 + $0xf0] sm:$0xff]
        %v419 = vld [vmem:[#allocation2 + $0xf8] sm:$0xff]
        %v420 = vld [vmem:[#allocation2 + $0x108] sm:$0xff]
        %v421 = vld [vmem:[#allocation2 + $0x110] sm:$0xff]
        %v422 = vld [vmem:[#allocation2 + $0x120] sm:$0xff]
        %v423 = vld [vmem:[#allocation2 + $0x128] sm:$0xff]
        %v424 = vld [vmem:[#allocation2 + $0x138] sm:$0xff]
        %v425 = vld [vmem:[#allocation2 + $0x140] sm:$0xff]
        %v426 = vld [vmem:[#allocation2 + $0x150] sm:$0xff]
        %v427 = vld [vmem:[#allocation2 + $0x158] sm:$0xff]
        %v428 = vld [vmem:[#allocation2 + $0x168] sm:$0xff]
        %v429 = vld [vmem:[#allocation2 + $0x170] sm:$0xff]
        %v430 = vld [vmem:[#allocation2 + $0x1] sm:$0xff]
        %v431 = vld [vmem:[#allocation2 + $0x9] sm:$0xff]
        %v432 = vld [vmem:[#allocation2 + $0x19] sm:$0xff]
        %v433 = vld [vmem:[#allocation2 + $0x21] sm:$0xff]
        %v434 = vld [vmem:[#allocation2 + $0x31] sm:$0xff]
        %v435 = vld [vmem:[#allocation2 + $0x39] sm:$0xff]
        %v436 = vld [vmem:[#allocation2 + $0x49] sm:$0xff]
        %v437 = vld [vmem:[#allocation2 + $0x51] sm:$0xff]
        %v438 = vld [vmem:[#allocation2 + $0x61] sm:$0xff]
        %v439 = vld [vmem:[#allocation2 + $0x69] sm:$0xff]
        %v440 = vld [vmem:[#allocation2 + $0x79] sm:$0xff]
        %v441 = vld [vmem:[#allocation2 + $0x81] sm:$0xff]
        %v442 = vld [vmem:[#allocation2 + $0x91] sm:$0xff]
        %v443 = vld [vmem:[#allocation2 + $0x99] sm:$0xff]
        %v444 = vld [vmem:[#allocation2 + $0xa9] sm:$0xff]
        %v445 = vld [vmem:[#allocation2 + $0xb1] sm:$0xff]
        %v446 = vld [vmem:[#allocation2 + $0xc1] sm:$0xff]
        %v447 = vld [vmem:[#allocation2 + $0xc9] sm:$0xff]
        %v448 = vld [vmem:[#allocation2 + $0xd9] sm:$0xff]
        %v449 = vld [vmem:[#allocation2 + $0xe1] sm:$0xff]
        %v450 = vld [vmem:[#allocation2 + $0xf1] sm:$0xff]
        %v451 = vld [vmem:[#allocation2 + $0xf9] sm:$0xff]
        %v452 = vld [vmem:[#allocation2 + $0x109] sm:$0xff]
        %v453 = vld [vmem:[#allocation2 + $0x111] sm:$0xff]
        %v454 = vld [vmem:[#allocation2 + $0x121] sm:$0xff]
        %v455 = vld [vmem:[#allocation2 + $0x129] sm:$0xff]
        %v456 = vld [vmem:[#allocation2 + $0x139] sm:$0xff]
        %v457 = vld [vmem:[#allocation2 + $0x141] sm:$0xff]
        %v458 = vld [vmem:[#allocation2 + $0x151] sm:$0xff]
        %v459 = vld [vmem:[#allocation2 + $0x159] sm:$0xff]
        %v460 = vld [vmem:[#allocation2 + $0x169] sm:$0xff]
        %v461 = vld [vmem:[#allocation2 + $0x171] sm:$0xff]
        %v462 = vld [vmem:[#allocation2 + $0x2] sm:$0xff]
        %v463 = vld [vmem:[#allocation2 + $0xa] sm:$0xff]
        %v464 = vld [vmem:[#allocation2 + $0x1a] sm:$0xff]
        %v465 = vld [vmem:[#allocation2 + $0x22] sm:$0xff]
        %v466 = vld [vmem:[#allocation2 + $0x32] sm:$0xff]
        %v467 = vld [vmem:[#allocation2 + $0x3a] sm:$0xff]
        %v468 = vld [vmem:[#allocation2 + $0x4a] sm:$0xff]
        %v469 = vld [vmem:[#allocation2 + $0x52] sm:$0xff]
        %v470 = vld [vmem:[#allocation2 + $0x62] sm:$0xff]
        %v471 = vld [vmem:[#allocation2 + $0x6a] sm:$0xff]
        %v472 = vld [vmem:[#allocation2 + $0x7a] sm:$0xff]
        %v473 = vld [vmem:[#allocation2 + $0x82] sm:$0xff]
        %v474 = vld [vmem:[#allocation2 + $0x92] sm:$0xff]
        %v475 = vld [vmem:[#allocation2 + $0x9a] sm:$0xff]
        %v476 = vld [vmem:[#allocation2 + $0xaa] sm:$0xff]
        %v477 = vld [vmem:[#allocation2 + $0xb2] sm:$0xff]
        %v478 = vld [vmem:[#allocation2 + $0xc2] sm:$0xff]
        %v479 = vld [vmem:[#allocation2 + $0xca] sm:$0xff]
        %v480 = vld [vmem:[#allocation2 + $0xda] sm:$0xff]
        %v481 = vld [vmem:[#allocation2 + $0xe2] sm:$0xff]
        %v482 = vld [vmem:[#allocation2 + $0xf2] sm:$0xff]
        %v483 = vld [vmem:[#allocation2 + $0xfa] sm:$0xff]
        %v484 = vld [vmem:[#allocation2 + $0x10a] sm:$0xff]
        %v485 = vld [vmem:[#allocation2 + $0x112] sm:$0xff]
        %v486 = vld [vmem:[#allocation2 + $0x122] sm:$0xff]
        %v487 = vld [vmem:[#allocation2 + $0x12a] sm:$0xff]
        %v488 = vld [vmem:[#allocation2 + $0x13a] sm:$0xff]
        %v489 = vld [vmem:[#allocation2 + $0x142] sm:$0xff]
        %v490 = vld [vmem:[#allocation2 + $0x152] sm:$0xff]
        %v491 = vld [vmem:[#allocation2 + $0x15a] sm:$0xff]
        %v492 = vld [vmem:[#allocation2 + $0x16a] sm:$0xff]
        %v493 = vld [vmem:[#allocation2 + $0x172] sm:$0xff]
        %v494 = vld [vmem:[%s365] sm:$0xff]
        %v495 = vld [vmem:[%s365 + $0x8] sm:$0xff]
        %v496 = vld [vmem:[%s365 + $0x18] sm:$0xff]
        %v497 = vld [vmem:[%s365 + $0x20] sm:$0xff]
        %v498 = vld [vmem:[%s365 + $0x30] sm:$0xff]
        %v499 = vld [vmem:[%s365 + $0x38] sm:$0xff]
        %v500 = vld [vmem:[%s365 + $0x48] sm:$0xff]
        %v501 = vld [vmem:[%s365 + $0x50] sm:$0xff]
        %v502 = vld [vmem:[%s365 + $0x60] sm:$0xff]
        %v503 = vld [vmem:[%s365 + $0x68] sm:$0xff]
        %v504 = vld [vmem:[%s365 + $0x78] sm:$0xff]
        %v505 = vld [vmem:[%s365 + $0x80] sm:$0xff]
        %v506 = vld [vmem:[%s365 + $0x90] sm:$0xff]
        %v507 = vld [vmem:[%s365 + $0x98] sm:$0xff]
        %v508 = vld [vmem:[%s365 + $0xa8] sm:$0xff]
        %v509 = vld [vmem:[%s365 + $0xb0] sm:$0xff]
        %v510 = vld [vmem:[%s365 + $0xc0] sm:$0xff]
        %v511 = vld [vmem:[%s365 + $0xc8] sm:$0xff]
        %v512 = vld [vmem:[%s365 + $0xd8] sm:$0xff]
        %v513 = vld [vmem:[%s365 + $0xe0] sm:$0xff]
        %v514 = vld [vmem:[%s365 + $0xf0] sm:$0xff]
        %v515 = vld [vmem:[%s365 + $0xf8] sm:$0xff]
        %v516 = vld [vmem:[%s365 + $0x108] sm:$0xff]
        %v517 = vld [vmem:[%s365 + $0x110] sm:$0xff]
        %v518 = vld [vmem:[%s365 + $0x120] sm:$0xff]
        %v519 = vld [vmem:[%s365 + $0x128] sm:$0xff]
        %v520 = vld [vmem:[%s365 + $0x138] sm:$0xff]
        %v521 = vld [vmem:[%s365 + $0x140] sm:$0xff]
        %v522 = vld [vmem:[%s365 + $0x150] sm:$0xff]
        %v523 = vld [vmem:[%s365 + $0x158] sm:$0xff]
        %v524 = vld [vmem:[%s365 + $0x168] sm:$0xff]
        %v525 = vld [vmem:[%s365 + $0x170] sm:$0xff]
        %v526 = vld [vmem:[%s365 + $0x1] sm:$0xff]
        %v527 = vld [vmem:[%s365 + $0x9] sm:$0xff]
        %v528 = vld [vmem:[%s365 + $0x19] sm:$0xff]
        %v529 = vld [vmem:[%s365 + $0x21] sm:$0xff]
        %v530 = vld [vmem:[%s365 + $0x31] sm:$0xff]
        %v531 = vld [vmem:[%s365 + $0x39] sm:$0xff]
        %v532 = vld [vmem:[%s365 + $0x49] sm:$0xff]
        %v533 = vld [vmem:[%s365 + $0x51] sm:$0xff]
        %v534 = vld [vmem:[%s365 + $0x61] sm:$0xff]
        %v535 = vld [vmem:[%s365 + $0x69] sm:$0xff]
        %v536 = vld [vmem:[%s365 + $0x79] sm:$0xff]
        %v537 = vld [vmem:[%s365 + $0x81] sm:$0xff]
        %v538 = vld [vmem:[%s365 + $0x91] sm:$0xff]
        %v539 = vld [vmem:[%s365 + $0x99] sm:$0xff]
        %v540 = vld [vmem:[%s365 + $0xa9] sm:$0xff]
        %v541 = vld [vmem:[%s365 + $0xb1] sm:$0xff]
        %v542 = vld [vmem:[%s365 + $0xc1] sm:$0xff]
        %v543 = vld [vmem:[%s365 + $0xc9] sm:$0xff]
        %v544 = vld [vmem:[%s365 + $0xd9] sm:$0xff]
        %v545 = vld [vmem:[%s365 + $0xe1] sm:$0xff]
        %v546 = vld [vmem:[%s365 + $0xf1] sm:$0xff]
        %v547 = vld [vmem:[%s365 + $0xf9] sm:$0xff]
        %v548 = vld [vmem:[%s365 + $0x109] sm:$0xff]
        %v549 = vld [vmem:[%s365 + $0x111] sm:$0xff]
        %v550 = vld [vmem:[%s365 + $0x121] sm:$0xff]
        %v551 = vld [vmem:[%s365 + $0x129] sm:$0xff]
        %v552 = vld [vmem:[%s365 + $0x139] sm:$0xff]
        %v553 = vld [vmem:[%s365 + $0x141] sm:$0xff]
        %v554 = vld [vmem:[%s365 + $0x151] sm:$0xff]
        %v555 = vld [vmem:[%s365 + $0x159] sm:$0xff]
        %v556 = vld [vmem:[%s365 + $0x169] sm:$0xff]
        %v557 = vld [vmem:[%s365 + $0x171] sm:$0xff]
        %v558 = vld [vmem:[%s365 + $0x2] sm:$0xff]
        %v559 = vld [vmem:[%s365 + $0xa] sm:$0xff]
        %v560 = vld [vmem:[%s365 + $0x1a] sm:$0xff]
        %v561 = vld [vmem:[%s365 + $0x22] sm:$0xff]
        %v562 = vld [vmem:[%s365 + $0x32] sm:$0xff]
        %v563 = vld [vmem:[%s365 + $0x3a] sm:$0xff]
        %v564 = vld [vmem:[%s365 + $0x4a] sm:$0xff]
        %v565 = vld [vmem:[%s365 + $0x52] sm:$0xff]
        %v566 = vld [vmem:[%s365 + $0x62] sm:$0xff]
        %v567 = vld [vmem:[%s365 + $0x6a] sm:$0xff]
        %v568 = vld [vmem:[%s365 + $0x7a] sm:$0xff]
        %v569 = vld [vmem:[%s365 + $0x82] sm:$0xff]
        %v570 = vld [vmem:[%s365 + $0x92] sm:$0xff]
        %v571 = vld [vmem:[%s365 + $0x9a] sm:$0xff]
        %v572 = vld [vmem:[%s365 + $0xaa] sm:$0xff]
        %v573 = vld [vmem:[%s365 + $0xb2] sm:$0xff]
        %v574 = vld [vmem:[%s365 + $0xc2] sm:$0xff]
        %v575 = vld [vmem:[%s365 + $0xca] sm:$0xff]
        %v576 = vld [vmem:[%s365 + $0xda] sm:$0xff]
        %v577 = vld [vmem:[%s365 + $0xe2] sm:$0xff]
        %v578 = vld [vmem:[%s365 + $0xf2] sm:$0xff]
        %v579 = vld [vmem:[%s365 + $0xfa] sm:$0xff]
        %v580 = vld [vmem:[%s365 + $0x10a] sm:$0xff]
        %v581 = vld [vmem:[%s365 + $0x112] sm:$0xff]
        %v582 = vld [vmem:[%s365 + $0x122] sm:$0xff]
        %v583 = vld [vmem:[%s365 + $0x12a] sm:$0xff]
        %v584 = vld [vmem:[%s365 + $0x13a] sm:$0xff]
        %v585 = vld [vmem:[%s365 + $0x142] sm:$0xff]
        %v586 = vld [vmem:[%s365 + $0x152] sm:$0xff]
        %v587 = vld [vmem:[%s365 + $0x15a] sm:$0xff]
        %v588 = vld [vmem:[%s365 + $0x16a] sm:$0xff]
        %v589 = vld [vmem:[%s365 + $0x172] sm:$0xff]
        %s590 = scalar_lea.vmem [#allocation2], 48
        %v591 = vld [vmem:[%s590] sm:$0xff]
        %v592 = vld [vmem:[%s590 + $0x8] sm:$0xff]
        %v593 = vld [vmem:[%s590 + $0x18] sm:$0xff]
        %v594 = vld [vmem:[%s590 + $0x20] sm:$0xff]
        %v595 = vld [vmem:[%s590 + $0x30] sm:$0xff]
        %v596 = vld [vmem:[%s590 + $0x38] sm:$0xff]
        %v597 = vld [vmem:[%s590 + $0x48] sm:$0xff]
        %v598 = vld [vmem:[%s590 + $0x50] sm:$0xff]
        %v599 = vld [vmem:[%s590 + $0x60] sm:$0xff]
        %v600 = vld [vmem:[%s590 + $0x68] sm:$0xff]
        %v601 = vld [vmem:[%s590 + $0x78] sm:$0xff]
        %v602 = vld [vmem:[%s590 + $0x80] sm:$0xff]
        %v603 = vld [vmem:[%s590 + $0x90] sm:$0xff]
        %v604 = vld [vmem:[%s590 + $0x98] sm:$0xff]
        %v605 = vld [vmem:[%s590 + $0xa8] sm:$0xff]
        %v606 = vld [vmem:[%s590 + $0xb0] sm:$0xff]
        %v607 = vld [vmem:[%s590 + $0xc0] sm:$0xff]
        %v608 = vld [vmem:[%s590 + $0xc8] sm:$0xff]
        %v609 = vld [vmem:[%s590 + $0xd8] sm:$0xff]
        %v610 = vld [vmem:[%s590 + $0xe0] sm:$0xff]
        %v611 = vld [vmem:[%s590 + $0xf0] sm:$0xff]
        %v612 = vld [vmem:[%s590 + $0xf8] sm:$0xff]
        %v613 = vld [vmem:[%s590 + $0x108] sm:$0xff]
        %v614 = vld [vmem:[%s590 + $0x110] sm:$0xff]
        %v615 = vld [vmem:[%s590 + $0x120] sm:$0xff]
        %v616 = vld [vmem:[%s590 + $0x128] sm:$0xff]
        %v617 = vld [vmem:[%s590 + $0x138] sm:$0xff]
        %v618 = vld [vmem:[%s590 + $0x140] sm:$0xff]
        %v619 = vld [vmem:[%s590 + $0x150] sm:$0xff]
        %v620 = vld [vmem:[%s590 + $0x158] sm:$0xff]
        %v621 = vld [vmem:[%s590 + $0x168] sm:$0xff]
        %v622 = vld [vmem:[%s590 + $0x170] sm:$0xff]
        %v623 = vld [vmem:[%s590 + $0x1] sm:$0xff]
        %v624 = vld [vmem:[%s590 + $0x9] sm:$0xff]
        %v625 = vld [vmem:[%s590 + $0x19] sm:$0xff]
        %v626 = vld [vmem:[%s590 + $0x21] sm:$0xff]
        %v627 = vld [vmem:[%s590 + $0x31] sm:$0xff]
        %v628 = vld [vmem:[%s590 + $0x39] sm:$0xff]
        %v629 = vld [vmem:[%s590 + $0x49] sm:$0xff]
        %v630 = vld [vmem:[%s590 + $0x51] sm:$0xff]
        %v631 = vld [vmem:[%s590 + $0x61] sm:$0xff]
        %v632 = vld [vmem:[%s590 + $0x69] sm:$0xff]
        %v633 = vld [vmem:[%s590 + $0x79] sm:$0xff]
        %v634 = vld [vmem:[%s590 + $0x81] sm:$0xff]
        %v635 = vld [vmem:[%s590 + $0x91] sm:$0xff]
        %v636 = vld [vmem:[%s590 + $0x99] sm:$0xff]
        %v637 = vld [vmem:[%s590 + $0xa9] sm:$0xff]
        %v638 = vld [vmem:[%s590 + $0xb1] sm:$0xff]
        %v639 = vld [vmem:[%s590 + $0xc1] sm:$0xff]
        %v640 = vld [vmem:[%s590 + $0xc9] sm:$0xff]
        %v641 = vld [vmem:[%s590 + $0xd9] sm:$0xff]
        %v642 = vld [vmem:[%s590 + $0xe1] sm:$0xff]
        %v643 = vld [vmem:[%s590 + $0xf1] sm:$0xff]
        %v644 = vld [vmem:[%s590 + $0xf9] sm:$0xff]
        %v645 = vld [vmem:[%s590 + $0x109] sm:$0xff]
        %v646 = vld [vmem:[%s590 + $0x111] sm:$0xff]
        %v647 = vld [vmem:[%s590 + $0x121] sm:$0xff]
        %v648 = vld [vmem:[%s590 + $0x129] sm:$0xff]
        %v649 = vld [vmem:[%s590 + $0x139] sm:$0xff]
        %v650 = vld [vmem:[%s590 + $0x141] sm:$0xff]
        %v651 = vld [vmem:[%s590 + $0x151] sm:$0xff]
        %v652 = vld [vmem:[%s590 + $0x159] sm:$0xff]
        %v653 = vld [vmem:[%s590 + $0x169] sm:$0xff]
        %v654 = vld [vmem:[%s590 + $0x171] sm:$0xff]
        %v655 = vld [vmem:[%s590 + $0x2] sm:$0xff]
        %v656 = vld [vmem:[%s590 + $0xa] sm:$0xff]
        %v657 = vld [vmem:[%s590 + $0x1a] sm:$0xff]
        %v658 = vld [vmem:[%s590 + $0x22] sm:$0xff]
        %v659 = vld [vmem:[%s590 + $0x32] sm:$0xff]
        %v660 = vld [vmem:[%s590 + $0x3a] sm:$0xff]
        %v661 = vld [vmem:[%s590 + $0x4a] sm:$0xff]
        %v662 = vld [vmem:[%s590 + $0x52] sm:$0xff]
        %v663 = vld [vmem:[%s590 + $0x62] sm:$0xff]
        %v664 = vld [vmem:[%s590 + $0x6a] sm:$0xff]
        %v665 = vld [vmem:[%s590 + $0x7a] sm:$0xff]
        %v666 = vld [vmem:[%s590 + $0x82] sm:$0xff]
        %v667 = vld [vmem:[%s590 + $0x92] sm:$0xff]
        %v668 = vld [vmem:[%s590 + $0x9a] sm:$0xff]
        %v669 = vld [vmem:[%s590 + $0xaa] sm:$0xff]
        %v670 = vld [vmem:[%s590 + $0xb2] sm:$0xff]
        %v671 = vld [vmem:[%s590 + $0xc2] sm:$0xff]
        %v672 = vld [vmem:[%s590 + $0xca] sm:$0xff]
        %v673 = vld [vmem:[%s590 + $0xda] sm:$0xff]
        %v674 = vld [vmem:[%s590 + $0xe2] sm:$0xff]
        %v675 = vld [vmem:[%s590 + $0xf2] sm:$0xff]
        %v676 = vld [vmem:[%s590 + $0xfa] sm:$0xff]
        %v677 = vld [vmem:[%s590 + $0x10a] sm:$0xff]
        %v678 = vld [vmem:[%s590 + $0x112] sm:$0xff]
        %v679 = vld [vmem:[%s590 + $0x122] sm:$0xff]
        %v680 = vld [vmem:[%s590 + $0x12a] sm:$0xff]
        %v681 = vld [vmem:[%s590 + $0x13a] sm:$0xff]
        %v682 = vld [vmem:[%s590 + $0x142] sm:$0xff]
        %v683 = vld [vmem:[%s590 + $0x152] sm:$0xff]
        %v684 = vld [vmem:[%s590 + $0x15a] sm:$0xff]
        %v685 = vld [vmem:[%s590 + $0x16a] sm:$0xff]
        %v686 = vld [vmem:[%s590 + $0x172] sm:$0xff]
        %719 = vrot.lane.b32.xlu0 %v430, 8
        %v720 = vpop.permute.xlu0 %719
        %721 = vrot.lane.b32.xlu0 %v431, 8
        %v722 = vpop.permute.xlu0 %721
        %723 = vrot.lane.b32.xlu0 %v432, 8
        %v724 = vpop.permute.xlu0 %723
        %725 = vrot.lane.b32.xlu0 %v433, 8
        %v726 = vpop.permute.xlu0 %725
        %727 = vrot.lane.b32.xlu0 %v434, 8
        %v728 = vpop.permute.xlu0 %727
        %729 = vrot.lane.b32.xlu0 %v435, 8
        %v730 = vpop.permute.xlu0 %729
        %731 = vrot.lane.b32.xlu0 %v436, 8
        %v732 = vpop.permute.xlu0 %731
        %733 = vrot.lane.b32.xlu0 %v437, 8
        %v734 = vpop.permute.xlu0 %733
        %735 = vrot.lane.b32.xlu0 %v438, 8
        %v736 = vpop.permute.xlu0 %735
        %737 = vrot.lane.b32.xlu0 %v439, 8
        %v738 = vpop.permute.xlu0 %737
        %739 = vrot.lane.b32.xlu0 %v440, 8
        %v740 = vpop.permute.xlu0 %739
        %741 = vrot.lane.b32.xlu0 %v441, 8
        %v742 = vpop.permute.xlu0 %741
        %743 = vrot.lane.b32.xlu0 %v442, 8
        %v744 = vpop.permute.xlu0 %743
        %745 = vrot.lane.b32.xlu0 %v443, 8
        %v746 = vpop.permute.xlu0 %745
        %747 = vrot.lane.b32.xlu0 %v444, 8
        %v748 = vpop.permute.xlu0 %747
        %749 = vrot.lane.b32.xlu0 %v445, 8
        %v750 = vpop.permute.xlu0 %749
        %751 = vrot.lane.b32.xlu0 %v446, 8
        %v752 = vpop.permute.xlu0 %751
        %753 = vrot.lane.b32.xlu0 %v447, 8
        %v754 = vpop.permute.xlu0 %753
        %755 = vrot.lane.b32.xlu0 %v448, 8
        %v756 = vpop.permute.xlu0 %755
        %757 = vrot.lane.b32.xlu0 %v449, 8
        %v758 = vpop.permute.xlu0 %757
        %759 = vrot.lane.b32.xlu0 %v450, 8
        %v760 = vpop.permute.xlu0 %759
        %761 = vrot.lane.b32.xlu0 %v451, 8
        %v762 = vpop.permute.xlu0 %761
        %763 = vrot.lane.b32.xlu0 %v452, 8
        %v764 = vpop.permute.xlu0 %763
        %765 = vrot.lane.b32.xlu0 %v453, 8
        %v766 = vpop.permute.xlu0 %765
        %767 = vrot.lane.b32.xlu0 %v454, 8
        %v768 = vpop.permute.xlu0 %767
        %769 = vrot.lane.b32.xlu0 %v455, 8
        %v770 = vpop.permute.xlu0 %769
        %771 = vrot.lane.b32.xlu0 %v456, 8
        %v772 = vpop.permute.xlu0 %771
        %773 = vrot.lane.b32.xlu0 %v457, 8
        %v774 = vpop.permute.xlu0 %773
        %775 = vrot.lane.b32.xlu0 %v458, 8
        %v776 = vpop.permute.xlu0 %775
        %777 = vrot.lane.b32.xlu0 %v459, 8
        %v778 = vpop.permute.xlu0 %777
        %779 = vrot.lane.b32.xlu0 %v460, 8
        %v780 = vpop.permute.xlu0 %779
        %781 = vrot.lane.b32.xlu0 %v461, 8
        %v782 = vpop.permute.xlu0 %781
        %847 = vrot.lane.b32.xlu0 %v462, 16
        %v848 = vpop.permute.xlu0 %847
        %849 = vrot.lane.b32.xlu0 %v463, 16
        %v850 = vpop.permute.xlu0 %849
        %851 = vrot.lane.b32.xlu0 %v464, 16
        %v852 = vpop.permute.xlu0 %851
        %853 = vrot.lane.b32.xlu0 %v465, 16
        %v854 = vpop.permute.xlu0 %853
        %855 = vrot.lane.b32.xlu0 %v466, 16
        %v856 = vpop.permute.xlu0 %855
        %857 = vrot.lane.b32.xlu0 %v467, 16
        %v858 = vpop.permute.xlu0 %857
        %859 = vrot.lane.b32.xlu0 %v468, 16
        %v860 = vpop.permute.xlu0 %859
        %861 = vrot.lane.b32.xlu0 %v469, 16
        %v862 = vpop.permute.xlu0 %861
        %863 = vrot.lane.b32.xlu0 %v470, 16
        %v864 = vpop.permute.xlu0 %863
        %865 = vrot.lane.b32.xlu0 %v471, 16
        %v866 = vpop.permute.xlu0 %865
        %867 = vrot.lane.b32.xlu0 %v472, 16
        %v868 = vpop.permute.xlu0 %867
        %869 = vrot.lane.b32.xlu0 %v473, 16
        %v870 = vpop.permute.xlu0 %869
        %871 = vrot.lane.b32.xlu0 %v474, 16
        %v872 = vpop.permute.xlu0 %871
        %873 = vrot.lane.b32.xlu0 %v475, 16
        %v874 = vpop.permute.xlu0 %873
        %875 = vrot.lane.b32.xlu0 %v476, 16
        %v876 = vpop.permute.xlu0 %875
        %877 = vrot.lane.b32.xlu0 %v477, 16
        %v878 = vpop.permute.xlu0 %877
        %879 = vrot.lane.b32.xlu0 %v478, 16
        %v880 = vpop.permute.xlu0 %879
        %881 = vrot.lane.b32.xlu0 %v479, 16
        %v882 = vpop.permute.xlu0 %881
        %883 = vrot.lane.b32.xlu0 %v480, 16
        %v884 = vpop.permute.xlu0 %883
        %885 = vrot.lane.b32.xlu0 %v481, 16
        %v886 = vpop.permute.xlu0 %885
        %887 = vrot.lane.b32.xlu0 %v482, 16
        %v888 = vpop.permute.xlu0 %887
        %889 = vrot.lane.b32.xlu0 %v483, 16
        %v890 = vpop.permute.xlu0 %889
        %891 = vrot.lane.b32.xlu0 %v484, 16
        %v892 = vpop.permute.xlu0 %891
        %893 = vrot.lane.b32.xlu0 %v485, 16
        %v894 = vpop.permute.xlu0 %893
        %895 = vrot.lane.b32.xlu0 %v486, 16
        %v896 = vpop.permute.xlu0 %895
        %897 = vrot.lane.b32.xlu0 %v487, 16
        %v898 = vpop.permute.xlu0 %897
        %899 = vrot.lane.b32.xlu0 %v488, 16
        %v900 = vpop.permute.xlu0 %899
        %901 = vrot.lane.b32.xlu0 %v489, 16
        %v902 = vpop.permute.xlu0 %901
        %903 = vrot.lane.b32.xlu0 %v490, 16
        %v904 = vpop.permute.xlu0 %903
        %905 = vrot.lane.b32.xlu0 %v491, 16
        %v906 = vpop.permute.xlu0 %905
        %907 = vrot.lane.b32.xlu0 %v492, 16
        %v908 = vpop.permute.xlu0 %907
        %909 = vrot.lane.b32.xlu0 %v493, 16
        %v910 = vpop.permute.xlu0 %909
        %975 = vrot.lane.b32.xlu0 %v494, 24
        %v976 = vpop.permute.xlu0 %975
        %977 = vrot.lane.b32.xlu0 %v495, 24
        %v978 = vpop.permute.xlu0 %977
        %979 = vrot.lane.b32.xlu0 %v496, 24
        %v980 = vpop.permute.xlu0 %979
        %981 = vrot.lane.b32.xlu0 %v497, 24
        %v982 = vpop.permute.xlu0 %981
        %983 = vrot.lane.b32.xlu0 %v498, 24
        %v984 = vpop.permute.xlu0 %983
        %985 = vrot.lane.b32.xlu0 %v499, 24
        %v986 = vpop.permute.xlu0 %985
        %987 = vrot.lane.b32.xlu0 %v500, 24
        %v988 = vpop.permute.xlu0 %987
        %989 = vrot.lane.b32.xlu0 %v501, 24
        %v990 = vpop.permute.xlu0 %989
        %991 = vrot.lane.b32.xlu0 %v502, 24
        %v992 = vpop.permute.xlu0 %991
        %993 = vrot.lane.b32.xlu0 %v503, 24
        %v994 = vpop.permute.xlu0 %993
        %995 = vrot.lane.b32.xlu0 %v504, 24
        %v996 = vpop.permute.xlu0 %995
        %997 = vrot.lane.b32.xlu0 %v505, 24
        %v998 = vpop.permute.xlu0 %997
        %999 = vrot.lane.b32.xlu0 %v506, 24
        %v1000 = vpop.permute.xlu0 %999
        %1001 = vrot.lane.b32.xlu0 %v507, 24
        %v1002 = vpop.permute.xlu0 %1001
        %1003 = vrot.lane.b32.xlu0 %v508, 24
        %v1004 = vpop.permute.xlu0 %1003
        %1005 = vrot.lane.b32.xlu0 %v509, 24
        %v1006 = vpop.permute.xlu0 %1005
        %1007 = vrot.lane.b32.xlu0 %v510, 24
        %v1008 = vpop.permute.xlu0 %1007
        %1009 = vrot.lane.b32.xlu0 %v511, 24
        %v1010 = vpop.permute.xlu0 %1009
        %1011 = vrot.lane.b32.xlu0 %v512, 24
        %v1012 = vpop.permute.xlu0 %1011
        %1013 = vrot.lane.b32.xlu0 %v513, 24
        %v1014 = vpop.permute.xlu0 %1013
        %1015 = vrot.lane.b32.xlu0 %v514, 24
        %v1016 = vpop.permute.xlu0 %1015
        %1017 = vrot.lane.b32.xlu0 %v515, 24
        %v1018 = vpop.permute.xlu0 %1017
        %1019 = vrot.lane.b32.xlu0 %v516, 24
        %v1020 = vpop.permute.xlu0 %1019
        %1021 = vrot.lane.b32.xlu0 %v517, 24
        %v1022 = vpop.permute.xlu0 %1021
        %1023 = vrot.lane.b32.xlu0 %v518, 24
        %v1024 = vpop.permute.xlu0 %1023
        %1025 = vrot.lane.b32.xlu0 %v519, 24
        %v1026 = vpop.permute.xlu0 %1025
        %1027 = vrot.lane.b32.xlu0 %v520, 24
        %v1028 = vpop.permute.xlu0 %1027
        %1029 = vrot.lane.b32.xlu0 %v521, 24
        %v1030 = vpop.permute.xlu0 %1029
        %1031 = vrot.lane.b32.xlu0 %v522, 24
        %v1032 = vpop.permute.xlu0 %1031
        %1033 = vrot.lane.b32.xlu0 %v523, 24
        %v1034 = vpop.permute.xlu0 %1033
        %1035 = vrot.lane.b32.xlu0 %v524, 24
        %v1036 = vpop.permute.xlu0 %1035
        %1037 = vrot.lane.b32.xlu0 %v525, 24
        %v1038 = vpop.permute.xlu0 %1037
        %1103 = vrot.lane.b32.xlu0 %v526, 32
        %v1104 = vpop.permute.xlu0 %1103
        %1105 = vrot.lane.b32.xlu0 %v527, 32
        %v1106 = vpop.permute.xlu0 %1105
        %1107 = vrot.lane.b32.xlu0 %v528, 32
        %v1108 = vpop.permute.xlu0 %1107
        %1109 = vrot.lane.b32.xlu0 %v529, 32
        %v1110 = vpop.permute.xlu0 %1109
        %1111 = vrot.lane.b32.xlu0 %v530, 32
        %v1112 = vpop.permute.xlu0 %1111
        %1113 = vrot.lane.b32.xlu0 %v531, 32
        %v1114 = vpop.permute.xlu0 %1113
        %1115 = vrot.lane.b32.xlu0 %v532, 32
        %v1116 = vpop.permute.xlu0 %1115
        %1117 = vrot.lane.b32.xlu0 %v533, 32
        %v1118 = vpop.permute.xlu0 %1117
        %1119 = vrot.lane.b32.xlu0 %v534, 32
        %v1120 = vpop.permute.xlu0 %1119
        %1121 = vrot.lane.b32.xlu0 %v535, 32
        %v1122 = vpop.permute.xlu0 %1121
        %1123 = vrot.lane.b32.xlu0 %v536, 32
        %v1124 = vpop.permute.xlu0 %1123
        %1125 = vrot.lane.b32.xlu0 %v537, 32
        %v1126 = vpop.permute.xlu0 %1125
        %1127 = vrot.lane.b32.xlu0 %v538, 32
        %v1128 = vpop.permute.xlu0 %1127
        %1129 = vrot.lane.b32.xlu0 %v539, 32
        %v1130 = vpop.permute.xlu0 %1129
        %1131 = vrot.lane.b32.xlu0 %v540, 32
        %v1132 = vpop.permute.xlu0 %1131
        %1133 = vrot.lane.b32.xlu0 %v541, 32
        %v1134 = vpop.permute.xlu0 %1133
        %1135 = vrot.lane.b32.xlu0 %v542, 32
        %v1136 = vpop.permute.xlu0 %1135
        %1137 = vrot.lane.b32.xlu0 %v543, 32
        %v1138 = vpop.permute.xlu0 %1137
        %1139 = vrot.lane.b32.xlu0 %v544, 32
        %v1140 = vpop.permute.xlu0 %1139
        %1141 = vrot.lane.b32.xlu0 %v545, 32
        %v1142 = vpop.permute.xlu0 %1141
        %1143 = vrot.lane.b32.xlu0 %v546, 32
        %v1144 = vpop.permute.xlu0 %1143
        %1145 = vrot.lane.b32.xlu0 %v547, 32
        %v1146 = vpop.permute.xlu0 %1145
        %1147 = vrot.lane.b32.xlu0 %v548, 32
        %v1148 = vpop.permute.xlu0 %1147
        %1149 = vrot.lane.b32.xlu0 %v549, 32
        %v1150 = vpop.permute.xlu0 %1149
        %1151 = vrot.lane.b32.xlu0 %v550, 32
        %v1152 = vpop.permute.xlu0 %1151
        %1153 = vrot.lane.b32.xlu0 %v551, 32
        %v1154 = vpop.permute.xlu0 %1153
        %1155 = vrot.lane.b32.xlu0 %v552, 32
        %v1156 = vpop.permute.xlu0 %1155
        %1157 = vrot.lane.b32.xlu0 %v553, 32
        %v1158 = vpop.permute.xlu0 %1157
        %1159 = vrot.lane.b32.xlu0 %v554, 32
        %v1160 = vpop.permute.xlu0 %1159
        %1161 = vrot.lane.b32.xlu0 %v555, 32
        %v1162 = vpop.permute.xlu0 %1161
        %1163 = vrot.lane.b32.xlu0 %v556, 32
        %v1164 = vpop.permute.xlu0 %1163
        %1165 = vrot.lane.b32.xlu0 %v557, 32
        %v1166 = vpop.permute.xlu0 %1165
        %1231 = vrot.lane.b32.xlu0 %v558, 40
        %v1232 = vpop.permute.xlu0 %1231
        %1233 = vrot.lane.b32.xlu0 %v559, 40
        %v1234 = vpop.permute.xlu0 %1233
        %1235 = vrot.lane.b32.xlu0 %v560, 40
        %v1236 = vpop.permute.xlu0 %1235
        %1237 = vrot.lane.b32.xlu0 %v561, 40
        %v1238 = vpop.permute.xlu0 %1237
        %1239 = vrot.lane.b32.xlu0 %v562, 40
        %v1240 = vpop.permute.xlu0 %1239
        %1241 = vrot.lane.b32.xlu0 %v563, 40
        %v1242 = vpop.permute.xlu0 %1241
        %1243 = vrot.lane.b32.xlu0 %v564, 40
        %v1244 = vpop.permute.xlu0 %1243
        %1245 = vrot.lane.b32.xlu0 %v565, 40
        %v1246 = vpop.permute.xlu0 %1245
        %1247 = vrot.lane.b32.xlu0 %v566, 40
        %v1248 = vpop.permute.xlu0 %1247
        %1249 = vrot.lane.b32.xlu0 %v567, 40
        %v1250 = vpop.permute.xlu0 %1249
        %1251 = vrot.lane.b32.xlu0 %v568, 40
        %v1252 = vpop.permute.xlu0 %1251
        %1253 = vrot.lane.b32.xlu0 %v569, 40
        %v1254 = vpop.permute.xlu0 %1253
        %1255 = vrot.lane.b32.xlu0 %v570, 40
        %v1256 = vpop.permute.xlu0 %1255
        %1257 = vrot.lane.b32.xlu0 %v571, 40
        %v1258 = vpop.permute.xlu0 %1257
        %1259 = vrot.lane.b32.xlu0 %v572, 40
        %v1260 = vpop.permute.xlu0 %1259
        %1261 = vrot.lane.b32.xlu0 %v573, 40
        %v1262 = vpop.permute.xlu0 %1261
        %1263 = vrot.lane.b32.xlu0 %v574, 40
        %v1264 = vpop.permute.xlu0 %1263
        %1265 = vrot.lane.b32.xlu0 %v575, 40
        %v1266 = vpop.permute.xlu0 %1265
        %1267 = vrot.lane.b32.xlu0 %v576, 40
        %v1268 = vpop.permute.xlu0 %1267
        %1269 = vrot.lane.b32.xlu0 %v577, 40
        %v1270 = vpop.permute.xlu0 %1269
        %1271 = vrot.lane.b32.xlu0 %v578, 40
        %v1272 = vpop.permute.xlu0 %1271
        %1273 = vrot.lane.b32.xlu0 %v579, 40
        %v1274 = vpop.permute.xlu0 %1273
        %1275 = vrot.lane.b32.xlu0 %v580, 40
        %v1276 = vpop.permute.xlu0 %1275
        %1277 = vrot.lane.b32.xlu0 %v581, 40
        %v1278 = vpop.permute.xlu0 %1277
        %1279 = vrot.lane.b32.xlu0 %v582, 40
        %v1280 = vpop.permute.xlu0 %1279
        %1281 = vrot.lane.b32.xlu0 %v583, 40
        %v1282 = vpop.permute.xlu0 %1281
        %1283 = vrot.lane.b32.xlu0 %v584, 40
        %v1284 = vpop.permute.xlu0 %1283
        %1285 = vrot.lane.b32.xlu0 %v585, 40
        %v1286 = vpop.permute.xlu0 %1285
        %1287 = vrot.lane.b32.xlu0 %v586, 40
        %v1288 = vpop.permute.xlu0 %1287
        %1289 = vrot.lane.b32.xlu0 %v587, 40
        %v1290 = vpop.permute.xlu0 %1289
        %1291 = vrot.lane.b32.xlu0 %v588, 40
        %v1292 = vpop.permute.xlu0 %1291
        %1293 = vrot.lane.b32.xlu0 %v589, 40
        %v1294 = vpop.permute.xlu0 %1293
        %1359 = vrot.lane.b32.xlu0 %v591, 48
        %v1360 = vpop.permute.xlu0 %1359
        %1361 = vrot.lane.b32.xlu0 %v592, 48
        %v1362 = vpop.permute.xlu0 %1361
        %1363 = vrot.lane.b32.xlu0 %v593, 48
        %v1364 = vpop.permute.xlu0 %1363
        %1365 = vrot.lane.b32.xlu0 %v594, 48
        %v1366 = vpop.permute.xlu0 %1365
        %1367 = vrot.lane.b32.xlu0 %v595, 48
        %v1368 = vpop.permute.xlu0 %1367
        %1369 = vrot.lane.b32.xlu0 %v596, 48
        %v1370 = vpop.permute.xlu0 %1369
        %1371 = vrot.lane.b32.xlu0 %v597, 48
        %v1372 = vpop.permute.xlu0 %1371
        %1373 = vrot.lane.b32.xlu0 %v598, 48
        %v1374 = vpop.permute.xlu0 %1373
        %1375 = vrot.lane.b32.xlu0 %v599, 48
        %v1376 = vpop.permute.xlu0 %1375
        %1377 = vrot.lane.b32.xlu0 %v600, 48
        %v1378 = vpop.permute.xlu0 %1377
        %1379 = vrot.lane.b32.xlu0 %v601, 48
        %v1380 = vpop.permute.xlu0 %1379
        %1381 = vrot.lane.b32.xlu0 %v602, 48
        %v1382 = vpop.permute.xlu0 %1381
        %1383 = vrot.lane.b32.xlu0 %v603, 48
        %v1384 = vpop.permute.xlu0 %1383
        %1385 = vrot.lane.b32.xlu0 %v604, 48
        %v1386 = vpop.permute.xlu0 %1385
        %1387 = vrot.lane.b32.xlu0 %v605, 48
        %v1388 = vpop.permute.xlu0 %1387
        %1389 = vrot.lane.b32.xlu0 %v606, 48
        %v1390 = vpop.permute.xlu0 %1389
        %1391 = vrot.lane.b32.xlu0 %v607, 48
        %v1392 = vpop.permute.xlu0 %1391
        %1393 = vrot.lane.b32.xlu0 %v608, 48
        %v1394 = vpop.permute.xlu0 %1393
        %1395 = vrot.lane.b32.xlu0 %v609, 48
        %v1396 = vpop.permute.xlu0 %1395
        %1397 = vrot.lane.b32.xlu0 %v610, 48
        %v1398 = vpop.permute.xlu0 %1397
        %1399 = vrot.lane.b32.xlu0 %v611, 48
        %v1400 = vpop.permute.xlu0 %1399
        %1401 = vrot.lane.b32.xlu0 %v612, 48
        %v1402 = vpop.permute.xlu0 %1401
        %1403 = vrot.lane.b32.xlu0 %v613, 48
        %v1404 = vpop.permute.xlu0 %1403
        %1405 = vrot.lane.b32.xlu0 %v614, 48
        %v1406 = vpop.permute.xlu0 %1405
        %1407 = vrot.lane.b32.xlu0 %v615, 48
        %v1408 = vpop.permute.xlu0 %1407
        %1409 = vrot.lane.b32.xlu0 %v616, 48
        %v1410 = vpop.permute.xlu0 %1409
        %1411 = vrot.lane.b32.xlu0 %v617, 48
        %v1412 = vpop.permute.xlu0 %1411
        %1413 = vrot.lane.b32.xlu0 %v618, 48
        %v1414 = vpop.permute.xlu0 %1413
        %1415 = vrot.lane.b32.xlu0 %v619, 48
        %v1416 = vpop.permute.xlu0 %1415
        %1417 = vrot.lane.b32.xlu0 %v620, 48
        %v1418 = vpop.permute.xlu0 %1417
        %1419 = vrot.lane.b32.xlu0 %v621, 48
        %v1420 = vpop.permute.xlu0 %1419
        %1421 = vrot.lane.b32.xlu0 %v622, 48
        %v1422 = vpop.permute.xlu0 %1421
        %1487 = vrot.lane.b32.xlu0 %v623, 56
        %v1488 = vpop.permute.xlu0 %1487
        %1489 = vrot.lane.b32.xlu0 %v624, 56
        %v1490 = vpop.permute.xlu0 %1489
        %1491 = vrot.lane.b32.xlu0 %v625, 56
        %v1492 = vpop.permute.xlu0 %1491
        %1493 = vrot.lane.b32.xlu0 %v626, 56
        %v1494 = vpop.permute.xlu0 %1493
        %1495 = vrot.lane.b32.xlu0 %v627, 56
        %v1496 = vpop.permute.xlu0 %1495
        %1497 = vrot.lane.b32.xlu0 %v628, 56
        %v1498 = vpop.permute.xlu0 %1497
        %1499 = vrot.lane.b32.xlu0 %v629, 56
        %v1500 = vpop.permute.xlu0 %1499
        %1501 = vrot.lane.b32.xlu0 %v630, 56
        %v1502 = vpop.permute.xlu0 %1501
        %1503 = vrot.lane.b32.xlu0 %v631, 56
        %v1504 = vpop.permute.xlu0 %1503
        %1505 = vrot.lane.b32.xlu0 %v632, 56
        %v1506 = vpop.permute.xlu0 %1505
        %1507 = vrot.lane.b32.xlu0 %v633, 56
        %v1508 = vpop.permute.xlu0 %1507
        %1509 = vrot.lane.b32.xlu0 %v634, 56
        %v1510 = vpop.permute.xlu0 %1509
        %1511 = vrot.lane.b32.xlu0 %v635, 56
        %v1512 = vpop.permute.xlu0 %1511
        %1513 = vrot.lane.b32.xlu0 %v636, 56
        %v1514 = vpop.permute.xlu0 %1513
        %1515 = vrot.lane.b32.xlu0 %v637, 56
        %v1516 = vpop.permute.xlu0 %1515
        %1517 = vrot.lane.b32.xlu0 %v638, 56
        %v1518 = vpop.permute.xlu0 %1517
        %1519 = vrot.lane.b32.xlu0 %v639, 56
        %v1520 = vpop.permute.xlu0 %1519
        %1521 = vrot.lane.b32.xlu0 %v640, 56
        %v1522 = vpop.permute.xlu0 %1521
        %1523 = vrot.lane.b32.xlu0 %v641, 56
        %v1524 = vpop.permute.xlu0 %1523
        %1525 = vrot.lane.b32.xlu0 %v642, 56
        %v1526 = vpop.permute.xlu0 %1525
        %1527 = vrot.lane.b32.xlu0 %v643, 56
        %v1528 = vpop.permute.xlu0 %1527
        %1529 = vrot.lane.b32.xlu0 %v644, 56
        %v1530 = vpop.permute.xlu0 %1529
        %1531 = vrot.lane.b32.xlu0 %v645, 56
        %v1532 = vpop.permute.xlu0 %1531
        %1533 = vrot.lane.b32.xlu0 %v646, 56
        %v1534 = vpop.permute.xlu0 %1533
        %1535 = vrot.lane.b32.xlu0 %v647, 56
        %v1536 = vpop.permute.xlu0 %1535
        %1537 = vrot.lane.b32.xlu0 %v648, 56
        %v1538 = vpop.permute.xlu0 %1537
        %1539 = vrot.lane.b32.xlu0 %v649, 56
        %v1540 = vpop.permute.xlu0 %1539
        %1541 = vrot.lane.b32.xlu0 %v650, 56
        %v1542 = vpop.permute.xlu0 %1541
        %1543 = vrot.lane.b32.xlu0 %v651, 56
        %v1544 = vpop.permute.xlu0 %1543
        %1545 = vrot.lane.b32.xlu0 %v652, 56
        %v1546 = vpop.permute.xlu0 %1545
        %1547 = vrot.lane.b32.xlu0 %v653, 56
        %v1548 = vpop.permute.xlu0 %1547
        %1549 = vrot.lane.b32.xlu0 %v654, 56
        %v1550 = vpop.permute.xlu0 %1549
        %1615 = vrot.lane.b32.xlu0 %v655, 64
        %v1616 = vpop.permute.xlu0 %1615
        %1617 = vrot.lane.b32.xlu0 %v656, 64
        %v1618 = vpop.permute.xlu0 %1617
        %1619 = vrot.lane.b32.xlu0 %v657, 64
        %v1620 = vpop.permute.xlu0 %1619
        %1621 = vrot.lane.b32.xlu0 %v658, 64
        %v1622 = vpop.permute.xlu0 %1621
        %1623 = vrot.lane.b32.xlu0 %v659, 64
        %v1624 = vpop.permute.xlu0 %1623
        %1625 = vrot.lane.b32.xlu0 %v660, 64
        %v1626 = vpop.permute.xlu0 %1625
        %1627 = vrot.lane.b32.xlu0 %v661, 64
        %v1628 = vpop.permute.xlu0 %1627
        %1629 = vrot.lane.b32.xlu0 %v662, 64
        %v1630 = vpop.permute.xlu0 %1629
        %1631 = vrot.lane.b32.xlu0 %v663, 64
        %v1632 = vpop.permute.xlu0 %1631
        %1633 = vrot.lane.b32.xlu0 %v664, 64
        %v1634 = vpop.permute.xlu0 %1633
        %1635 = vrot.lane.b32.xlu0 %v665, 64
        %v1636 = vpop.permute.xlu0 %1635
        %1637 = vrot.lane.b32.xlu0 %v666, 64
        %v1638 = vpop.permute.xlu0 %1637
        %1639 = vrot.lane.b32.xlu0 %v667, 64
        %v1640 = vpop.permute.xlu0 %1639
        %1641 = vrot.lane.b32.xlu0 %v668, 64
        %v1642 = vpop.permute.xlu0 %1641
        %1643 = vrot.lane.b32.xlu0 %v669, 64
        %v1644 = vpop.permute.xlu0 %1643
        %1645 = vrot.lane.b32.xlu0 %v670, 64
        %v1646 = vpop.permute.xlu0 %1645
        %1647 = vrot.lane.b32.xlu0 %v671, 64
        %v1648 = vpop.permute.xlu0 %1647
        %1649 = vrot.lane.b32.xlu0 %v672, 64
        %v1650 = vpop.permute.xlu0 %1649
        %1651 = vrot.lane.b32.xlu0 %v673, 64
        %v1652 = vpop.permute.xlu0 %1651
        %1653 = vrot.lane.b32.xlu0 %v674, 64
        %v1654 = vpop.permute.xlu0 %1653
        %1655 = vrot.lane.b32.xlu0 %v675, 64
        %v1656 = vpop.permute.xlu0 %1655
        %1657 = vrot.lane.b32.xlu0 %v676, 64
        %v1658 = vpop.permute.xlu0 %1657
        %1659 = vrot.lane.b32.xlu0 %v677, 64
        %v1660 = vpop.permute.xlu0 %1659
        %1661 = vrot.lane.b32.xlu0 %v678, 64
        %v1662 = vpop.permute.xlu0 %1661
        %1663 = vrot.lane.b32.xlu0 %v679, 64
        %v1664 = vpop.permute.xlu0 %1663
        %1665 = vrot.lane.b32.xlu0 %v680, 64
        %v1666 = vpop.permute.xlu0 %1665
        %1667 = vrot.lane.b32.xlu0 %v681, 64
        %v1668 = vpop.permute.xlu0 %1667
        %1669 = vrot.lane.b32.xlu0 %v682, 64
        %v1670 = vpop.permute.xlu0 %1669
        %1671 = vrot.lane.b32.xlu0 %v683, 64
        %v1672 = vpop.permute.xlu0 %1671
        %1673 = vrot.lane.b32.xlu0 %v684, 64
        %v1674 = vpop.permute.xlu0 %1673
        %1675 = vrot.lane.b32.xlu0 %v685, 64
        %v1676 = vpop.permute.xlu0 %1675
        %1677 = vrot.lane.b32.xlu0 %v686, 64
        %v1678 = vpop.permute.xlu0 %1677
        %v1711 = vsel %vm277, %v398, %v720
        %v1712 = vsel %vm277, %v399, %v722
        %v1713 = vsel %vm277, %v400, %v724
        %v1714 = vsel %vm277, %v401, %v726
        %v1715 = vsel %vm277, %v402, %v728
        %v1716 = vsel %vm277, %v403, %v730
        %v1717 = vsel %vm277, %v404, %v732
        %v1718 = vsel %vm277, %v405, %v734
        %v1719 = vsel %vm277, %v406, %v736
        %v1720 = vsel %vm277, %v407, %v738
        %v1721 = vsel %vm277, %v408, %v740
        %v1722 = vsel %vm277, %v409, %v742
        %v1723 = vsel %vm277, %v410, %v744
        %v1724 = vsel %vm277, %v411, %v746
        %v1725 = vsel %vm277, %v412, %v748
        %v1726 = vsel %vm277, %v413, %v750
        %v1727 = vsel %vm277, %v414, %v752
        %v1728 = vsel %vm277, %v415, %v754
        %v1729 = vsel %vm277, %v416, %v756
        %v1730 = vsel %vm277, %v417, %v758
        %v1731 = vsel %vm277, %v418, %v760
        %v1732 = vsel %vm277, %v419, %v762
        %v1733 = vsel %vm277, %v420, %v764
        %v1734 = vsel %vm277, %v421, %v766
        %v1735 = vsel %vm277, %v422, %v768
        %v1736 = vsel %vm277, %v423, %v770
        %v1737 = vsel %vm277, %v424, %v772
        %v1738 = vsel %vm277, %v425, %v774
        %v1739 = vsel %vm277, %v426, %v776
        %v1740 = vsel %vm277, %v427, %v778
        %v1741 = vsel %vm277, %v428, %v780
        %v1742 = vsel %vm277, %v429, %v782
        %vm1743 = vcmask 130048
        %v1744 = vsel %vm1743, %v1711, %v848
        %v1745 = vsel %vm1743, %v1712, %v850
        %v1746 = vsel %vm1743, %v1713, %v852
        %v1747 = vsel %vm1743, %v1714, %v854
        %v1748 = vsel %vm1743, %v1715, %v856
        %v1749 = vsel %vm1743, %v1716, %v858
        %v1750 = vsel %vm1743, %v1717, %v860
        %v1751 = vsel %vm1743, %v1718, %v862
        %v1752 = vsel %vm1743, %v1719, %v864
        %v1753 = vsel %vm1743, %v1720, %v866
        %v1754 = vsel %vm1743, %v1721, %v868
        %v1755 = vsel %vm1743, %v1722, %v870
        %v1756 = vsel %vm1743, %v1723, %v872
        %v1757 = vsel %vm1743, %v1724, %v874
        %v1758 = vsel %vm1743, %v1725, %v876
        %v1759 = vsel %vm1743, %v1726, %v878
        %v1760 = vsel %vm1743, %v1727, %v880
        %v1761 = vsel %vm1743, %v1728, %v882
        %v1762 = vsel %vm1743, %v1729, %v884
        %v1763 = vsel %vm1743, %v1730, %v886
        %v1764 = vsel %vm1743, %v1731, %v888
        %v1765 = vsel %vm1743, %v1732, %v890
        %v1766 = vsel %vm1743, %v1733, %v892
        %v1767 = vsel %vm1743, %v1734, %v894
        %v1768 = vsel %vm1743, %v1735, %v896
        %v1769 = vsel %vm1743, %v1736, %v898
        %v1770 = vsel %vm1743, %v1737, %v900
        %v1771 = vsel %vm1743, %v1738, %v902
        %v1772 = vsel %vm1743, %v1739, %v904
        %v1773 = vsel %vm1743, %v1740, %v906
        %v1774 = vsel %vm1743, %v1741, %v908
        %v1775 = vsel %vm1743, %v1742, %v910
        %vm1776 = vcmask 195584
        %v1777 = vsel %vm1776, %v1744, %v976
        %v1778 = vsel %vm1776, %v1745, %v978
        %v1779 = vsel %vm1776, %v1746, %v980
        %v1780 = vsel %vm1776, %v1747, %v982
        %v1781 = vsel %vm1776, %v1748, %v984
        %v1782 = vsel %vm1776, %v1749, %v986
        %v1783 = vsel %vm1776, %v1750, %v988
        %v1784 = vsel %vm1776, %v1751, %v990
        %v1785 = vsel %vm1776, %v1752, %v992
        %v1786 = vsel %vm1776, %v1753, %v994
        %v1787 = vsel %vm1776, %v1754, %v996
        %v1788 = vsel %vm1776, %v1755, %v998
        %v1789 = vsel %vm1776, %v1756, %v1000
        %v1790 = vsel %vm1776, %v1757, %v1002
        %v1791 = vsel %vm1776, %v1758, %v1004
        %v1792 = vsel %vm1776, %v1759, %v1006
        %v1793 = vsel %vm1776, %v1760, %v1008
        %v1794 = vsel %vm1776, %v1761, %v1010
        %v1795 = vsel %vm1776, %v1762, %v1012
        %v1796 = vsel %vm1776, %v1763, %v1014
        %v1797 = vsel %vm1776, %v1764, %v1016
        %v1798 = vsel %vm1776, %v1765, %v1018
        %v1799 = vsel %vm1776, %v1766, %v1020
        %v1800 = vsel %vm1776, %v1767, %v1022
        %v1801 = vsel %vm1776, %v1768, %v1024
        %v1802 = vsel %vm1776, %v1769, %v1026
        %v1803 = vsel %vm1776, %v1770, %v1028
        %v1804 = vsel %vm1776, %v1771, %v1030
        %v1805 = vsel %vm1776, %v1772, %v1032
        %v1806 = vsel %vm1776, %v1773, %v1034
        %v1807 = vsel %vm1776, %v1774, %v1036
        %v1808 = vsel %vm1776, %v1775, %v1038
        %vm1809 = vcmask 261120
        %v1810 = vsel %vm1809, %v1777, %v1104
        %v1811 = vsel %vm1809, %v1778, %v1106
        %v1812 = vsel %vm1809, %v1779, %v1108
        %v1813 = vsel %vm1809, %v1780, %v1110
        %v1814 = vsel %vm1809, %v1781, %v1112
        %v1815 = vsel %vm1809, %v1782, %v1114
        %v1816 = vsel %vm1809, %v1783, %v1116
        %v1817 = vsel %vm1809, %v1784, %v1118
        %v1818 = vsel %vm1809, %v1785, %v1120
        %v1819 = vsel %vm1809, %v1786, %v1122
        %v1820 = vsel %vm1809, %v1787, %v1124
        %v1821 = vsel %vm1809, %v1788, %v1126
        %v1822 = vsel %vm1809, %v1789, %v1128
        %v1823 = vsel %vm1809, %v1790, %v1130
        %v1824 = vsel %vm1809, %v1791, %v1132
        %v1825 = vsel %vm1809, %v1792, %v1134
        %v1826 = vsel %vm1809, %v1793, %v1136
        %v1827 = vsel %vm1809, %v1794, %v1138
        %v1828 = vsel %vm1809, %v1795, %v1140
        %v1829 = vsel %vm1809, %v1796, %v1142
        %v1830 = vsel %vm1809, %v1797, %v1144
        %v1831 = vsel %vm1809, %v1798, %v1146
        %v1832 = vsel %vm1809, %v1799, %v1148
        %v1833 = vsel %vm1809, %v1800, %v1150
        %v1834 = vsel %vm1809, %v1801, %v1152
        %v1835 = vsel %vm1809, %v1802, %v1154
        %v1836 = vsel %vm1809, %v1803, %v1156
        %v1837 = vsel %vm1809, %v1804, %v1158
        %v1838 = vsel %vm1809, %v1805, %v1160
        %v1839 = vsel %vm1809, %v1806, %v1162
        %v1840 = vsel %vm1809, %v1807, %v1164
        %v1841 = vsel %vm1809, %v1808, %v1166
        %vm1842 = vcmask 326656
        %v1843 = vsel %vm1842, %v1810, %v1232
        %v1844 = vsel %vm1842, %v1811, %v1234
        %v1845 = vsel %vm1842, %v1812, %v1236
        %v1846 = vsel %vm1842, %v1813, %v1238
        %v1847 = vsel %vm1842, %v1814, %v1240
        %v1848 = vsel %vm1842, %v1815, %v1242
        %v1849 = vsel %vm1842, %v1816, %v1244
        %v1850 = vsel %vm1842, %v1817, %v1246
        %v1851 = vsel %vm1842, %v1818, %v1248
        %v1852 = vsel %vm1842, %v1819, %v1250
        %v1853 = vsel %vm1842, %v1820, %v1252
        %v1854 = vsel %vm1842, %v1821, %v1254
        %v1855 = vsel %vm1842, %v1822, %v1256
        %v1856 = vsel %vm1842, %v1823, %v1258
        %v1857 = vsel %vm1842, %v1824, %v1260
        %v1858 = vsel %vm1842, %v1825, %v1262
        %v1859 = vsel %vm1842, %v1826, %v1264
        %v1860 = vsel %vm1842, %v1827, %v1266
        %v1861 = vsel %vm1842, %v1828, %v1268
        %v1862 = vsel %vm1842, %v1829, %v1270
        %v1863 = vsel %vm1842, %v1830, %v1272
        %v1864 = vsel %vm1842, %v1831, %v1274
        %v1865 = vsel %vm1842, %v1832, %v1276
        %v1866 = vsel %vm1842, %v1833, %v1278
        %v1867 = vsel %vm1842, %v1834, %v1280
        %v1868 = vsel %vm1842, %v1835, %v1282
        %v1869 = vsel %vm1842, %v1836, %v1284
        %v1870 = vsel %vm1842, %v1837, %v1286
        %v1871 = vsel %vm1842, %v1838, %v1288
        %v1872 = vsel %vm1842, %v1839, %v1290
        %v1873 = vsel %vm1842, %v1840, %v1292
        %v1874 = vsel %vm1842, %v1841, %v1294
        %vm1875 = vcmask 392192
        %v1876 = vsel %vm1875, %v1843, %v1360
        %v1877 = vsel %vm1875, %v1844, %v1362
        %v1878 = vsel %vm1875, %v1845, %v1364
        %v1879 = vsel %vm1875, %v1846, %v1366
        %v1880 = vsel %vm1875, %v1847, %v1368
        %v1881 = vsel %vm1875, %v1848, %v1370
        %v1882 = vsel %vm1875, %v1849, %v1372
        %v1883 = vsel %vm1875, %v1850, %v1374
        %v1884 = vsel %vm1875, %v1851, %v1376
        %v1885 = vsel %vm1875, %v1852, %v1378
        %v1886 = vsel %vm1875, %v1853, %v1380
        %v1887 = vsel %vm1875, %v1854, %v1382
        %v1888 = vsel %vm1875, %v1855, %v1384
        %v1889 = vsel %vm1875, %v1856, %v1386
        %v1890 = vsel %vm1875, %v1857, %v1388
        %v1891 = vsel %vm1875, %v1858, %v1390
        %v1892 = vsel %vm1875, %v1859, %v1392
        %v1893 = vsel %vm1875, %v1860, %v1394
        %v1894 = vsel %vm1875, %v1861, %v1396
        %v1895 = vsel %vm1875, %v1862, %v1398
        %v1896 = vsel %vm1875, %v1863, %v1400
        %v1897 = vsel %vm1875, %v1864, %v1402
        %v1898 = vsel %vm1875, %v1865, %v1404
        %v1899 = vsel %vm1875, %v1866, %v1406
        %v1900 = vsel %vm1875, %v1867, %v1408
        %v1901 = vsel %vm1875, %v1868, %v1410
        %v1902 = vsel %vm1875, %v1869, %v1412
        %v1903 = vsel %vm1875, %v1870, %v1414
        %v1904 = vsel %vm1875, %v1871, %v1416
        %v1905 = vsel %vm1875, %v1872, %v1418
        %v1906 = vsel %vm1875, %v1873, %v1420
        %v1907 = vsel %vm1875, %v1874, %v1422
        %vm1908 = vcmask 457728
        %v1909 = vsel %vm1908, %v1876, %v1488
        %v1910 = vsel %vm1908, %v1877, %v1490
        %v1911 = vsel %vm1908, %v1878, %v1492
        %v1912 = vsel %vm1908, %v1879, %v1494
        %v1913 = vsel %vm1908, %v1880, %v1496
        %v1914 = vsel %vm1908, %v1881, %v1498
        %v1915 = vsel %vm1908, %v1882, %v1500
        %v1916 = vsel %vm1908, %v1883, %v1502
        %v1917 = vsel %vm1908, %v1884, %v1504
        %v1918 = vsel %vm1908, %v1885, %v1506
        %v1919 = vsel %vm1908, %v1886, %v1508
        %v1920 = vsel %vm1908, %v1887, %v1510
        %v1921 = vsel %vm1908, %v1888, %v1512
        %v1922 = vsel %vm1908, %v1889, %v1514
        %v1923 = vsel %vm1908, %v1890, %v1516
        %v1924 = vsel %vm1908, %v1891, %v1518
        %v1925 = vsel %vm1908, %v1892, %v1520
        %v1926 = vsel %vm1908, %v1893, %v1522
        %v1927 = vsel %vm1908, %v1894, %v1524
        %v1928 = vsel %vm1908, %v1895, %v1526
        %v1929 = vsel %vm1908, %v1896, %v1528
        %v1930 = vsel %vm1908, %v1897, %v1530
        %v1931 = vsel %vm1908, %v1898, %v1532
        %v1932 = vsel %vm1908, %v1899, %v1534
        %v1933 = vsel %vm1908, %v1900, %v1536
        %v1934 = vsel %vm1908, %v1901, %v1538
        %v1935 = vsel %vm1908, %v1902, %v1540
        %v1936 = vsel %vm1908, %v1903, %v1542
        %v1937 = vsel %vm1908, %v1904, %v1544
        %v1938 = vsel %vm1908, %v1905, %v1546
        %v1939 = vsel %vm1908, %v1906, %v1548
        %v1940 = vsel %vm1908, %v1907, %v1550
        %vm1941 = vcmask 523264
        %v1942 = vsel %vm1941, %v1909, %v1616
        %v1943 = vsel %vm1941, %v1910, %v1618
        %v1944 = vsel %vm1941, %v1911, %v1620
        %v1945 = vsel %vm1941, %v1912, %v1622
        %v1946 = vsel %vm1941, %v1913, %v1624
        %v1947 = vsel %vm1941, %v1914, %v1626
        %v1948 = vsel %vm1941, %v1915, %v1628
        %v1949 = vsel %vm1941, %v1916, %v1630
        %v1950 = vsel %vm1941, %v1917, %v1632
        %v1951 = vsel %vm1941, %v1918, %v1634
        %v1952 = vsel %vm1941, %v1919, %v1636
        %v1953 = vsel %vm1941, %v1920, %v1638
        %v1954 = vsel %vm1941, %v1921, %v1640
        %v1955 = vsel %vm1941, %v1922, %v1642
        %v1956 = vsel %vm1941, %v1923, %v1644
        %v1957 = vsel %vm1941, %v1924, %v1646
        %v1958 = vsel %vm1941, %v1925, %v1648
        %v1959 = vsel %vm1941, %v1926, %v1650
        %v1960 = vsel %vm1941, %v1927, %v1652
        %v1961 = vsel %vm1941, %v1928, %v1654
        %v1962 = vsel %vm1941, %v1929, %v1656
        %v1963 = vsel %vm1941, %v1930, %v1658
        %v1964 = vsel %vm1941, %v1931, %v1660
        %v1965 = vsel %vm1941, %v1932, %v1662
        %v1966 = vsel %vm1941, %v1933, %v1664
        %v1967 = vsel %vm1941, %v1934, %v1666
        %v1968 = vsel %vm1941, %v1935, %v1668
        %v1969 = vsel %vm1941, %v1936, %v1670
        %v1970 = vsel %vm1941, %v1937, %v1672
        %v1971 = vsel %vm1941, %v1938, %v1674
        %v1972 = vsel %vm1941, %v1939, %v1676
        %v1973 = vsel %vm1941, %v1940, %v1678
        %v1974 = vld [vmem:[%s1] sm:$0xff]
        %v1975 = vld [vmem:[%s1 + $0x8] sm:$0xff]
        %v1976 = vld [vmem:[%s1 + $0x10] sm:$0xff]
        %v1977 = vld [vmem:[%s1 + $0x18] sm:$0xff]
        %v1978 = vld [vmem:[%s1 + $0x20] sm:$0xff]
        %v1979 = vld [vmem:[%s1 + $0x28] sm:$0xff]
        %v1980 = vld [vmem:[%s1 + $0x30] sm:$0xff]
        %v1981 = vld [vmem:[%s1 + $0x38] sm:$0xff]
        %v1982 = vld [vmem:[%s1 + $0x40] sm:$0xff]
        %vm1983 = vcmask 588800
        %v1985 = vsel %vm1983, %v1942, 0
        %v1988 = vsel %vm1983, %v1943, 0
        %v1991 = vsel %vm1983, %v1944, 0
        %v1994 = vsel %vm1983, %v1945, 0
        %v1997 = vsel %vm1983, %v1946, 0
        %v2000 = vsel %vm1983, %v1947, 0
        %v2003 = vsel %vm1983, %v1948, 0
        %v2006 = vsel %vm1983, %v1949, 0
        %v2009 = vsel %vm1983, %v1950, 0
        %v2012 = vsel %vm1983, %v1951, 0
        %v2015 = vsel %vm1983, %v1952, 0
        %v2018 = vsel %vm1983, %v1953, 0
        %v2021 = vsel %vm1983, %v1954, 0
        %v2024 = vsel %vm1983, %v1955, 0
        %v2027 = vsel %vm1983, %v1956, 0
        %v2030 = vsel %vm1983, %v1957, 0
        %v2033 = vsel %vm1983, %v1958, 0
        %v2036 = vsel %vm1983, %v1959, 0
        %v2039 = vsel %vm1983, %v1960, 0
        %v2042 = vsel %vm1983, %v1961, 0
        %v2045 = vsel %vm1983, %v1962, 0
        %v2048 = vsel %vm1983, %v1963, 0
        %v2051 = vsel %vm1983, %v1964, 0
        %v2054 = vsel %vm1983, %v1965, 0
        %v2057 = vsel %vm1983, %v1966, 0
        %v2060 = vsel %vm1983, %v1967, 0
        %v2063 = vsel %vm1983, %v1968, 0
        %v2066 = vsel %vm1983, %v1969, 0
        %v2069 = vsel %vm1983, %v1970, 0
        %v2072 = vsel %vm1983, %v1971, 0
        %v2075 = vsel %vm1983, %v1972, 0
        %v2078 = vsel %vm1983, %v1973, 0
        %2080 = vmatprep.subr.mxu0 0.0
        %2081 = vmatpush1.msra.mxu0 %v1974
        %2082 = vmatprep.subr.mxu0 0.0
        %2083 = vmatpush1.msra.mxu0 %v1975
        %2084 = vmatprep.subr.mxu0 0.0
        %2085 = vmatpush1.msra.mxu0 %v1976
        %2086 = vmatprep.subr.mxu0 0.0
        %2087 = vmatpush1.msra.mxu0 %v1977
        %2088 = vmatprep.subr.mxu0 0.0
        %2089 = vmatpush1.msra.mxu0 %v1978
        %2090 = vmatprep.subr.mxu0 0.0
        %2091 = vmatpush1.msra.mxu0 %v1979
        %2092 = vmatprep.subr.mxu0 0.0
        %2093 = vmatpush1.msra.mxu0 %v1980
        %2094 = vmatprep.subr.mxu0 0.0
        %2095 = vmatpush1.msra.mxu0 %v1981
        %2096 = vmatprep.subr.mxu0 0.0
        %2097 = vmatpush1.msra.mxu0 %v1982
        %2098 = vmatprep.subr.mxu0 0.0
        %2099 = vmatpush1.msra.mxu0 0.0
        %2100 = vmatprep.subr.mxu0 0.0
        %2101 = vmatpush1.msra.mxu0 0.0
        %2102 = vmatprep.subr.mxu0 0.0
        %2103 = vmatpush1.msra.mxu0 0.0
        %2104 = vmatprep.subr.mxu0 0.0
        %2105 = vmatpush1.msra.mxu0 0.0
        %2106 = vmatprep.subr.mxu0 0.0
        %2107 = vmatpush1.msra.mxu0 0.0
        %2108 = vmatprep.subr.mxu0 0.0
        %2109 = vmatpush1.msra.mxu0 0.0
        %2110 = vmatprep.subr.mxu0 0.0
        %2111 = vmatpush1.msra.mxu0 0.0
        %2112 = vmatprep.subr.mxu0 0.0
        %2113 = vmatpush1.msra.mxu0 0.0
        %2114 = vmatprep.subr.mxu0 0.0
        %2115 = vmatpush1.msra.mxu0 0.0
        %2116 = vmatprep.subr.mxu0 0.0
        %2117 = vmatpush1.msra.mxu0 0.0
        %2118 = vmatprep.subr.mxu0 0.0
        %2119 = vmatpush1.msra.mxu0 0.0
        %2120 = vmatprep.subr.mxu0 0.0
        %2121 = vmatpush1.msra.mxu0 0.0
        %2122 = vmatprep.subr.mxu0 0.0
        %2123 = vmatpush1.msra.mxu0 0.0
        %2124 = vmatprep.subr.mxu0 0.0
        %2125 = vmatpush1.msra.mxu0 0.0
        %2126 = vmatprep.subr.mxu0 0.0
        %2127 = vmatpush1.msra.mxu0 0.0
        %2128 = vmatprep.subr.mxu0 0.0
        %2129 = vmatpush1.msra.mxu0 0.0
        %2130 = vmatprep.subr.mxu0 0.0
        %2131 = vmatpush1.msra.mxu0 0.0
        %2132 = vmatprep.subr.mxu0 0.0
        %2133 = vmatpush1.msra.mxu0 0.0
        %2134 = vmatprep.subr.mxu0 0.0
        %2135 = vmatpush1.msra.mxu0 0.0
        %2136 = vmatprep.subr.mxu0 0.0
        %2137 = vmatpush1.msra.mxu0 0.0
        %2138 = vmatprep.subr.mxu0 0.0
        %2139 = vmatpush1.msra.mxu0 0.0
        %2140 = vmatprep.subr.mxu0 0.0
        %2141 = vmatpush1.msra.mxu0 0.0
        %2142 = vmatprep.subr.mxu0 0.0
        %2143 = vmatpush1.msra.mxu0 0.0
        %2144 = vmatprep.mubr.f32.mxu0 0.0
        %2145 = vmatmul.mubr.f32.gmra.mrb[0].mxu0 %v1985
        %v2146 = vpop.f32.mrb[0].mxu0
        %v2147 = vadd.f32 0.0, %v2146
        %v2148 = vpop.f32.mrb[0].mxu0
        %2149 = vmatprep.mubr.f32.mxu0 0.0
        %2150 = vmatmul.mubr.f32.gmra.mrb[0].mxu0 %v1988
        %v2151 = vpop.f32.mrb[0].mxu0
        %v2152 = vadd.f32 0.0, %v2151
        %v2153 = vpop.f32.mrb[0].mxu0
        %2154 = vmatprep.mubr.f32.mxu0 0.0
        %2155 = vmatmul.mubr.f32.gmra.mrb[0].mxu0 %v1991
        %v2156 = vpop.f32.mrb[0].mxu0
        %v2157 = vadd.f32 0.0, %v2156
        %v2158 = vpop.f32.mrb[0].mxu0
        %2159 = vmatprep.mubr.f32.mxu0 0.0
        %2160 = vmatmul.mubr.f32.gmra.mrb[0].mxu0 %v1994
        %v2161 = vpop.f32.mrb[0].mxu0
        %v2162 = vadd.f32 0.0, %v2161
        %v2163 = vpop.f32.mrb[0].mxu0
        %2164 = vmatprep.mubr.f32.mxu0 0.0
        %2165 = vmatmul.mubr.f32.gmra.mrb[0].mxu0 %v1997
        %v2166 = vpop.f32.mrb[0].mxu0
        %v2167 = vadd.f32 0.0, %v2166
        %v2168 = vpop.f32.mrb[0].mxu0
        %2169 = vmatprep.mubr.f32.mxu0 0.0
        %2170 = vmatmul.mubr.f32.gmra.mrb[0].mxu0 %v2000
        %v2171 = vpop.f32.mrb[0].mxu0
        %v2172 = vadd.f32 0.0, %v2171
        %v2173 = vpop.f32.mrb[0].mxu0
        %2174 = vmatprep.mubr.f32.mxu0 0.0
        %2175 = vmatmul.mubr.f32.gmra.mrb[0].mxu0 %v2003
        %v2176 = vpop.f32.mrb[0].mxu0
        %v2177 = vadd.f32 0.0, %v2176
        %v2178 = vpop.f32.mrb[0].mxu0
        %2179 = vmatprep.mubr.f32.mxu0 0.0
        %2180 = vmatmul.mubr.f32.gmra.mrb[0].mxu0 %v2006
        %v2181 = vpop.f32.mrb[0].mxu0
        %v2182 = vadd.f32 0.0, %v2181
        %v2183 = vpop.f32.mrb[0].mxu0
        %2184 = vmatprep.mubr.f32.mxu0 0.0
        %2185 = vmatmul.mubr.f32.gmra.mrb[0].mxu0 %v2009
        %v2186 = vpop.f32.mrb[0].mxu0
        %v2187 = vadd.f32 0.0, %v2186
        %v2188 = vpop.f32.mrb[0].mxu0
        %2189 = vmatprep.mubr.f32.mxu0 0.0
        %2190 = vmatmul.mubr.f32.gmra.mrb[0].mxu0 %v2012
        %v2191 = vpop.f32.mrb[0].mxu0
        %v2192 = vadd.f32 0.0, %v2191
        %v2193 = vpop.f32.mrb[0].mxu0
        %2194 = vmatprep.mubr.f32.mxu0 0.0
        %2195 = vmatmul.mubr.f32.gmra.mrb[0].mxu0 %v2015
        %v2196 = vpop.f32.mrb[0].mxu0
        %v2197 = vadd.f32 0.0, %v2196
        %v2198 = vpop.f32.mrb[0].mxu0
        %2199 = vmatprep.mubr.f32.mxu0 0.0
        %2200 = vmatmul.mubr.f32.gmra.mrb[0].mxu0 %v2018
        %v2201 = vpop.f32.mrb[0].mxu0
        %v2202 = vadd.f32 0.0, %v2201
        %v2203 = vpop.f32.mrb[0].mxu0
        %2204 = vmatprep.mubr.f32.mxu0 0.0
        %2205 = vmatmul.mubr.f32.gmra.mrb[0].mxu0 %v2021
        %v2206 = vpop.f32.mrb[0].mxu0
        %v2207 = vadd.f32 0.0, %v2206
        %v2208 = vpop.f32.mrb[0].mxu0
        %2209 = vmatprep.mubr.f32.mxu0 0.0
        %2210 = vmatmul.mubr.f32.gmra.mrb[0].mxu0 %v2024
        %v2211 = vpop.f32.mrb[0].mxu0
        %v2212 = vadd.f32 0.0, %v2211
        %v2213 = vpop.f32.mrb[0].mxu0
        %2214 = vmatprep.mubr.f32.mxu0 0.0
        %2215 = vmatmul.mubr.f32.gmra.mrb[0].mxu0 %v2027
        %v2216 = vpop.f32.mrb[0].mxu0
        %v2217 = vadd.f32 0.0, %v2216
        %v2218 = vpop.f32.mrb[0].mxu0
        %2219 = vmatprep.mubr.f32.mxu0 0.0
        %2220 = vmatmul.mubr.f32.gmra.mrb[0].mxu0 %v2030
        %v2221 = vpop.f32.mrb[0].mxu0
        %v2222 = vadd.f32 0.0, %v2221
        %v2223 = vpop.f32.mrb[0].mxu0
        %2224 = vmatprep.mubr.f32.mxu0 0.0
        %2225 = vmatmul.mubr.f32.gmra.mrb[0].mxu0 %v2033
        %v2226 = vpop.f32.mrb[0].mxu0
        %v2227 = vadd.f32 0.0, %v2226
        %v2228 = vpop.f32.mrb[0].mxu0
        %2229 = vmatprep.mubr.f32.mxu0 0.0
        %2230 = vmatmul.mubr.f32.gmra.mrb[0].mxu0 %v2036
        %v2231 = vpop.f32.mrb[0].mxu0
        %v2232 = vadd.f32 0.0, %v2231
        %v2233 = vpop.f32.mrb[0].mxu0
        %2234 = vmatprep.mubr.f32.mxu0 0.0
        %2235 = vmatmul.mubr.f32.gmra.mrb[0].mxu0 %v2039
        %v2236 = vpop.f32.mrb[0].mxu0
        %v2237 = vadd.f32 0.0, %v2236
        %v2238 = vpop.f32.mrb[0].mxu0
        %2239 = vmatprep.mubr.f32.mxu0 0.0
        %2240 = vmatmul.mubr.f32.gmra.mrb[0].mxu0 %v2042
        %v2241 = vpop.f32.mrb[0].mxu0
        %v2242 = vadd.f32 0.0, %v2241
        %v2243 = vpop.f32.mrb[0].mxu0
        %2244 = vmatprep.mubr.f32.mxu0 0.0
        %2245 = vmatmul.mubr.f32.gmra.mrb[0].mxu0 %v2045
        %v2246 = vpop.f32.mrb[0].mxu0
        %v2247 = vadd.f32 0.0, %v2246
        %v2248 = vpop.f32.mrb[0].mxu0
        %2249 = vmatprep.mubr.f32.mxu0 0.0
        %2250 = vmatmul.mubr.f32.gmra.mrb[0].mxu0 %v2048
        %v2251 = vpop.f32.mrb[0].mxu0
        %v2252 = vadd.f32 0.0, %v2251
        %v2253 = vpop.f32.mrb[0].mxu0
        %2254 = vmatprep.mubr.f32.mxu0 0.0
        %2255 = vmatmul.mubr.f32.gmra.mrb[0].mxu0 %v2051
        %v2256 = vpop.f32.mrb[0].mxu0
        %v2257 = vadd.f32 0.0, %v2256
        %v2258 = vpop.f32.mrb[0].mxu0
        %2259 = vmatprep.mubr.f32.mxu0 0.0
        %2260 = vmatmul.mubr.f32.gmra.mrb[0].mxu0 %v2054
        %v2261 = vpop.f32.mrb[0].mxu0
        %v2262 = vadd.f32 0.0, %v2261
        %v2263 = vpop.f32.mrb[0].mxu0
        %2264 = vmatprep.mubr.f32.mxu0 0.0
        %2265 = vmatmul.mubr.f32.gmra.mrb[0].mxu0 %v2057
        %v2266 = vpop.f32.mrb[0].mxu0
        %v2267 = vadd.f32 0.0, %v2266
        %v2268 = vpop.f32.mrb[0].mxu0
        %2269 = vmatprep.mubr.f32.mxu0 0.0
        %2270 = vmatmul.mubr.f32.gmra.mrb[0].mxu0 %v2060
        %v2271 = vpop.f32.mrb[0].mxu0
        %v2272 = vadd.f32 0.0, %v2271
        %v2273 = vpop.f32.mrb[0].mxu0
        %2274 = vmatprep.mubr.f32.mxu0 0.0
        %2275 = vmatmul.mubr.f32.gmra.mrb[0].mxu0 %v2063
        %v2276 = vpop.f32.mrb[0].mxu0
        %v2277 = vadd.f32 0.0, %v2276
        %v2278 = vpop.f32.mrb[0].mxu0
        %2279 = vmatprep.mubr.f32.mxu0 0.0
        %2280 = vmatmul.mubr.f32.gmra.mrb[0].mxu0 %v2066
        %v2281 = vpop.f32.mrb[0].mxu0
        %v2282 = vadd.f32 0.0, %v2281
        %v2283 = vpop.f32.mrb[0].mxu0
        %2284 = vmatprep.mubr.f32.mxu0 0.0
        %2285 = vmatmul.mubr.f32.gmra.mrb[0].mxu0 %v2069
        %v2286 = vpop.f32.mrb[0].mxu0
        %v2287 = vadd.f32 0.0, %v2286
        %v2288 = vpop.f32.mrb[0].mxu0
        %2289 = vmatprep.mubr.f32.mxu0 0.0
        %2290 = vmatmul.mubr.f32.gmra.mrb[0].mxu0 %v2072
        %v2291 = vpop.f32.mrb[0].mxu0
        %v2292 = vadd.f32 0.0, %v2291
        %v2293 = vpop.f32.mrb[0].mxu0
        %2294 = vmatprep.mubr.f32.mxu0 0.0
        %2295 = vmatmul.mubr.f32.gmra.mrb[0].mxu0 %v2075
        %v2296 = vpop.f32.mrb[0].mxu0
        %v2297 = vadd.f32 0.0, %v2296
        %v2298 = vpop.f32.mrb[0].mxu0
        %2299 = vmatprep.mubr.f32.mxu0 0.0
        %2300 = vmatmul.mubr.f32.gmra.mrb[0].mxu0 %v2078
        %v2301 = vpop.f32.mrb[0].mxu0
        %v2302 = vadd.f32 0.0, %v2301
        %v2303 = vpop.f32.mrb[0].mxu0
        %2304 = vdwg.mxu0
        %2305 = vst.msk [vmem:[%s365 + $0x1] sm:$0xff] %vm277, %v2147
        %2306 = vst.msk [vmem:[%s365 + $0x9] sm:$0xff] %vm277, %v2152
        %2307 = vst.msk [vmem:[%s365 + $0x19] sm:$0xff] %vm277, %v2157
        %2308 = vst.msk [vmem:[%s365 + $0x21] sm:$0xff] %vm277, %v2162
        %2309 = vst.msk [vmem:[%s365 + $0x31] sm:$0xff] %vm277, %v2167
        %2310 = vst.msk [vmem:[%s365 + $0x39] sm:$0xff] %vm277, %v2172
        %2311 = vst.msk [vmem:[%s365 + $0x49] sm:$0xff] %vm277, %v2177
        %2312 = vst.msk [vmem:[%s365 + $0x51] sm:$0xff] %vm277, %v2182
        %2313 = vst.msk [vmem:[%s365 + $0x61] sm:$0xff] %vm277, %v2187
        %2314 = vst.msk [vmem:[%s365 + $0x69] sm:$0xff] %vm277, %v2192
        %2315 = vst.msk [vmem:[%s365 + $0x79] sm:$0xff] %vm277, %v2197
        %2316 = vst.msk [vmem:[%s365 + $0x81] sm:$0xff] %vm277, %v2202
        %2317 = vst.msk [vmem:[%s365 + $0x91] sm:$0xff] %vm277, %v2207
        %2318 = vst.msk [vmem:[%s365 + $0x99] sm:$0xff] %vm277, %v2212
        %2319 = vst.msk [vmem:[%s365 + $0xa9] sm:$0xff] %vm277, %v2217
        %2320 = vst.msk [vmem:[%s365 + $0xb1] sm:$0xff] %vm277, %v2222
        %2321 = vst.msk [vmem:[%s365 + $0xc1] sm:$0xff] %vm277, %v2227
        %2322 = vst.msk [vmem:[%s365 + $0xc9] sm:$0xff] %vm277, %v2232
        %2323 = vst.msk [vmem:[%s365 + $0xd9] sm:$0xff] %vm277, %v2237
        %2324 = vst.msk [vmem:[%s365 + $0xe1] sm:$0xff] %vm277, %v2242
        %2325 = vst.msk [vmem:[%s365 + $0xf1] sm:$0xff] %vm277, %v2247
        %2326 = vst.msk [vmem:[%s365 + $0xf9] sm:$0xff] %vm277, %v2252
        %2327 = vst.msk [vmem:[%s365 + $0x109] sm:$0xff] %vm277, %v2257
        %2328 = vst.msk [vmem:[%s365 + $0x111] sm:$0xff] %vm277, %v2262
        %2329 = vst.msk [vmem:[%s365 + $0x121] sm:$0xff] %vm277, %v2267
        %2330 = vst.msk [vmem:[%s365 + $0x129] sm:$0xff] %vm277, %v2272
        %2331 = vst.msk [vmem:[%s365 + $0x139] sm:$0xff] %vm277, %v2277
        %2332 = vst.msk [vmem:[%s365 + $0x141] sm:$0xff] %vm277, %v2282
        %2333 = vst.msk [vmem:[%s365 + $0x151] sm:$0xff] %vm277, %v2287
        %2334 = vst.msk [vmem:[%s365 + $0x159] sm:$0xff] %vm277, %v2292
        %2335 = vst.msk [vmem:[%s365 + $0x169] sm:$0xff] %vm277, %v2297
        %2336 = vst.msk [vmem:[%s365 + $0x171] sm:$0xff] %vm277, %v2302
        %v2337 = vld [vmem:[#allocation2] sm:$0xff]
        %v2338 = vld [vmem:[#allocation2 + $0x8] sm:$0xff]
        %v2339 = vld [vmem:[#allocation2 + $0x18] sm:$0xff]
        %v2340 = vld [vmem:[#allocation2 + $0x20] sm:$0xff]
        %v2341 = vld [vmem:[#allocation2 + $0x30] sm:$0xff]
        %v2342 = vld [vmem:[#allocation2 + $0x38] sm:$0xff]
        %v2343 = vld [vmem:[#allocation2 + $0x48] sm:$0xff]
        %v2344 = vld [vmem:[#allocation2 + $0x50] sm:$0xff]
        %v2345 = vld [vmem:[#allocation2 + $0x60] sm:$0xff]
        %v2346 = vld [vmem:[#allocation2 + $0x68] sm:$0xff]
        %v2347 = vld [vmem:[#allocation2 + $0x78] sm:$0xff]
        %v2348 = vld [vmem:[#allocation2 + $0x80] sm:$0xff]
        %v2349 = vld [vmem:[#allocation2 + $0x90] sm:$0xff]
        %v2350 = vld [vmem:[#allocation2 + $0x98] sm:$0xff]
        %v2351 = vld [vmem:[#allocation2 + $0xa8] sm:$0xff]
        %v2352 = vld [vmem:[#allocation2 + $0xb0] sm:$0xff]
        %v2353 = vld [vmem:[#allocation2 + $0xc0] sm:$0xff]
        %v2354 = vld [vmem:[#allocation2 + $0xc8] sm:$0xff]
        %v2355 = vld [vmem:[#allocation2 + $0xd8] sm:$0xff]
        %v2356 = vld [vmem:[#allocation2 + $0xe0] sm:$0xff]
        %v2357 = vld [vmem:[#allocation2 + $0xf0] sm:$0xff]
        %v2358 = vld [vmem:[#allocation2 + $0xf8] sm:$0xff]
        %v2359 = vld [vmem:[#allocation2 + $0x108] sm:$0xff]
        %v2360 = vld [vmem:[#allocation2 + $0x110] sm:$0xff]
        %v2361 = vld [vmem:[#allocation2 + $0x120] sm:$0xff]
        %v2362 = vld [vmem:[#allocation2 + $0x128] sm:$0xff]
        %v2363 = vld [vmem:[#allocation2 + $0x138] sm:$0xff]
        %v2364 = vld [vmem:[#allocation2 + $0x140] sm:$0xff]
        %v2365 = vld [vmem:[#allocation2 + $0x150] sm:$0xff]
        %v2366 = vld [vmem:[#allocation2 + $0x158] sm:$0xff]
        %v2367 = vld [vmem:[#allocation2 + $0x168] sm:$0xff]
        %v2368 = vld [vmem:[#allocation2 + $0x170] sm:$0xff]
        %v2369 = vld [vmem:[#allocation2 + $0x1] sm:$0xff]
        %v2370 = vld [vmem:[#allocation2 + $0x9] sm:$0xff]
        %v2371 = vld [vmem:[#allocation2 + $0x19] sm:$0xff]
        %v2372 = vld [vmem:[#allocation2 + $0x21] sm:$0xff]
        %v2373 = vld [vmem:[#allocation2 + $0x31] sm:$0xff]
        %v2374 = vld [vmem:[#allocation2 + $0x39] sm:$0xff]
        %v2375 = vld [vmem:[#allocation2 + $0x49] sm:$0xff]
        %v2376 = vld [vmem:[#allocation2 + $0x51] sm:$0xff]
        %v2377 = vld [vmem:[#allocation2 + $0x61] sm:$0xff]
        %v2378 = vld [vmem:[#allocation2 + $0x69] sm:$0xff]
        %v2379 = vld [vmem:[#allocation2 + $0x79] sm:$0xff]
        %v2380 = vld [vmem:[#allocation2 + $0x81] sm:$0xff]
        %v2381 = vld [vmem:[#allocation2 + $0x91] sm:$0xff]
        %v2382 = vld [vmem:[#allocation2 + $0x99] sm:$0xff]
        %v2383 = vld [vmem:[#allocation2 + $0xa9] sm:$0xff]
        %v2384 = vld [vmem:[#allocation2 + $0xb1] sm:$0xff]
        %v2385 = vld [vmem:[#allocation2 + $0xc1] sm:$0xff]
        %v2386 = vld [vmem:[#allocation2 + $0xc9] sm:$0xff]
        %v2387 = vld [vmem:[#allocation2 + $0xd9] sm:$0xff]
        %v2388 = vld [vmem:[#allocation2 + $0xe1] sm:$0xff]
        %v2389 = vld [vmem:[#allocation2 + $0xf1] sm:$0xff]
        %v2390 = vld [vmem:[#allocation2 + $0xf9] sm:$0xff]
        %v2391 = vld [vmem:[#allocation2 + $0x109] sm:$0xff]
        %v2392 = vld [vmem:[#allocation2 + $0x111] sm:$0xff]
        %v2393 = vld [vmem:[#allocation2 + $0x121] sm:$0xff]
        %v2394 = vld [vmem:[#allocation2 + $0x129] sm:$0xff]
        %v2395 = vld [vmem:[#allocation2 + $0x139] sm:$0xff]
        %v2396 = vld [vmem:[#allocation2 + $0x141] sm:$0xff]
        %v2397 = vld [vmem:[#allocation2 + $0x151] sm:$0xff]
        %v2398 = vld [vmem:[#allocation2 + $0x159] sm:$0xff]
        %v2399 = vld [vmem:[#allocation2 + $0x169] sm:$0xff]
        %v2400 = vld [vmem:[#allocation2 + $0x171] sm:$0xff]
        %v2401 = vld [vmem:[#allocation2 + $0x2] sm:$0xff]
        %v2402 = vld [vmem:[#allocation2 + $0xa] sm:$0xff]
        %v2403 = vld [vmem:[#allocation2 + $0x1a] sm:$0xff]
        %v2404 = vld [vmem:[#allocation2 + $0x22] sm:$0xff]
        %v2405 = vld [vmem:[#allocation2 + $0x32] sm:$0xff]
        %v2406 = vld [vmem:[#allocation2 + $0x3a] sm:$0xff]
        %v2407 = vld [vmem:[#allocation2 + $0x4a] sm:$0xff]
        %v2408 = vld [vmem:[#allocation2 + $0x52] sm:$0xff]
        %v2409 = vld [vmem:[#allocation2 + $0x62] sm:$0xff]
        %v2410 = vld [vmem:[#allocation2 + $0x6a] sm:$0xff]
        %v2411 = vld [vmem:[#allocation2 + $0x7a] sm:$0xff]
        %v2412 = vld [vmem:[#allocation2 + $0x82] sm:$0xff]
        %v2413 = vld [vmem:[#allocation2 + $0x92] sm:$0xff]
        %v2414 = vld [vmem:[#allocation2 + $0x9a] sm:$0xff]
        %v2415 = vld [vmem:[#allocation2 + $0xaa] sm:$0xff]
        %v2416 = vld [vmem:[#allocation2 + $0xb2] sm:$0xff]
        %v2417 = vld [vmem:[#allocation2 + $0xc2] sm:$0xff]
        %v2418 = vld [vmem:[#allocation2 + $0xca] sm:$0xff]
        %v2419 = vld [vmem:[#allocation2 + $0xda] sm:$0xff]
        %v2420 = vld [vmem:[#allocation2 + $0xe2] sm:$0xff]
        %v2421 = vld [vmem:[#allocation2 + $0xf2] sm:$0xff]
        %v2422 = vld [vmem:[#allocation2 + $0xfa] sm:$0xff]
        %v2423 = vld [vmem:[#allocation2 + $0x10a] sm:$0xff]
        %v2424 = vld [vmem:[#allocation2 + $0x112] sm:$0xff]
        %v2425 = vld [vmem:[#allocation2 + $0x122] sm:$0xff]
        %v2426 = vld [vmem:[#allocation2 + $0x12a] sm:$0xff]
        %v2427 = vld [vmem:[#allocation2 + $0x13a] sm:$0xff]
        %v2428 = vld [vmem:[#allocation2 + $0x142] sm:$0xff]
        %v2429 = vld [vmem:[#allocation2 + $0x152] sm:$0xff]
        %v2430 = vld [vmem:[#allocation2 + $0x15a] sm:$0xff]
        %v2431 = vld [vmem:[#allocation2 + $0x16a] sm:$0xff]
        %v2432 = vld [vmem:[#allocation2 + $0x172] sm:$0xff]
        %v2433 = vld [vmem:[%s365] sm:$0xff]
        %v2434 = vld [vmem:[%s365 + $0x8] sm:$0xff]
        %v2435 = vld [vmem:[%s365 + $0x18] sm:$0xff]
        %v2436 = vld [vmem:[%s365 + $0x20] sm:$0xff]
        %v2437 = vld [vmem:[%s365 + $0x30] sm:$0xff]
        %v2438 = vld [vmem:[%s365 + $0x38] sm:$0xff]
        %v2439 = vld [vmem:[%s365 + $0x48] sm:$0xff]
        %v2440 = vld [vmem:[%s365 + $0x50] sm:$0xff]
        %v2441 = vld [vmem:[%s365 + $0x60] sm:$0xff]
        %v2442 = vld [vmem:[%s365 + $0x68] sm:$0xff]
        %v2443 = vld [vmem:[%s365 + $0x78] sm:$0xff]
        %v2444 = vld [vmem:[%s365 + $0x80] sm:$0xff]
        %v2445 = vld [vmem:[%s365 + $0x90] sm:$0xff]
        %v2446 = vld [vmem:[%s365 + $0x98] sm:$0xff]
        %v2447 = vld [vmem:[%s365 + $0xa8] sm:$0xff]
        %v2448 = vld [vmem:[%s365 + $0xb0] sm:$0xff]
        %v2449 = vld [vmem:[%s365 + $0xc0] sm:$0xff]
        %v2450 = vld [vmem:[%s365 + $0xc8] sm:$0xff]
        %v2451 = vld [vmem:[%s365 + $0xd8] sm:$0xff]
        %v2452 = vld [vmem:[%s365 + $0xe0] sm:$0xff]
        %v2453 = vld [vmem:[%s365 + $0xf0] sm:$0xff]
        %v2454 = vld [vmem:[%s365 + $0xf8] sm:$0xff]
        %v2455 = vld [vmem:[%s365 + $0x108] sm:$0xff]
        %v2456 = vld [vmem:[%s365 + $0x110] sm:$0xff]
        %v2457 = vld [vmem:[%s365 + $0x120] sm:$0xff]
        %v2458 = vld [vmem:[%s365 + $0x128] sm:$0xff]
        %v2459 = vld [vmem:[%s365 + $0x138] sm:$0xff]
        %v2460 = vld [vmem:[%s365 + $0x140] sm:$0xff]
        %v2461 = vld [vmem:[%s365 + $0x150] sm:$0xff]
        %v2462 = vld [vmem:[%s365 + $0x158] sm:$0xff]
        %v2463 = vld [vmem:[%s365 + $0x168] sm:$0xff]
        %v2464 = vld [vmem:[%s365 + $0x170] sm:$0xff]
        %v2465 = vld [vmem:[%s365 + $0x1] sm:$0xff]
        %v2466 = vld [vmem:[%s365 + $0x9] sm:$0xff]
        %v2467 = vld [vmem:[%s365 + $0x19] sm:$0xff]
        %v2468 = vld [vmem:[%s365 + $0x21] sm:$0xff]
        %v2469 = vld [vmem:[%s365 + $0x31] sm:$0xff]
        %v2470 = vld [vmem:[%s365 + $0x39] sm:$0xff]
        %v2471 = vld [vmem:[%s365 + $0x49] sm:$0xff]
        %v2472 = vld [vmem:[%s365 + $0x51] sm:$0xff]
        %v2473 = vld [vmem:[%s365 + $0x61] sm:$0xff]
        %v2474 = vld [vmem:[%s365 + $0x69] sm:$0xff]
        %v2475 = vld [vmem:[%s365 + $0x79] sm:$0xff]
        %v2476 = vld [vmem:[%s365 + $0x81] sm:$0xff]
        %v2477 = vld [vmem:[%s365 + $0x91] sm:$0xff]
        %v2478 = vld [vmem:[%s365 + $0x99] sm:$0xff]
        %v2479 = vld [vmem:[%s365 + $0xa9] sm:$0xff]
        %v2480 = vld [vmem:[%s365 + $0xb1] sm:$0xff]
        %v2481 = vld [vmem:[%s365 + $0xc1] sm:$0xff]
        %v2482 = vld [vmem:[%s365 + $0xc9] sm:$0xff]
        %v2483 = vld [vmem:[%s365 + $0xd9] sm:$0xff]
        %v2484 = vld [vmem:[%s365 + $0xe1] sm:$0xff]
        %v2485 = vld [vmem:[%s365 + $0xf1] sm:$0xff]
        %v2486 = vld [vmem:[%s365 + $0xf9] sm:$0xff]
        %v2487 = vld [vmem:[%s365 + $0x109] sm:$0xff]
        %v2488 = vld [vmem:[%s365 + $0x111] sm:$0xff]
        %v2489 = vld [vmem:[%s365 + $0x121] sm:$0xff]
        %v2490 = vld [vmem:[%s365 + $0x129] sm:$0xff]
        %v2491 = vld [vmem:[%s365 + $0x139] sm:$0xff]
        %v2492 = vld [vmem:[%s365 + $0x141] sm:$0xff]
        %v2493 = vld [vmem:[%s365 + $0x151] sm:$0xff]
        %v2494 = vld [vmem:[%s365 + $0x159] sm:$0xff]
        %v2495 = vld [vmem:[%s365 + $0x169] sm:$0xff]
        %v2496 = vld [vmem:[%s365 + $0x171] sm:$0xff]
        %v2497 = vld [vmem:[%s365 + $0x2] sm:$0xff]
        %v2498 = vld [vmem:[%s365 + $0xa] sm:$0xff]
        %v2499 = vld [vmem:[%s365 + $0x1a] sm:$0xff]
        %v2500 = vld [vmem:[%s365 + $0x22] sm:$0xff]
        %v2501 = vld [vmem:[%s365 + $0x32] sm:$0xff]
        %v2502 = vld [vmem:[%s365 + $0x3a] sm:$0xff]
        %v2503 = vld [vmem:[%s365 + $0x4a] sm:$0xff]
        %v2504 = vld [vmem:[%s365 + $0x52] sm:$0xff]
        %v2505 = vld [vmem:[%s365 + $0x62] sm:$0xff]
        %v2506 = vld [vmem:[%s365 + $0x6a] sm:$0xff]
        %v2507 = vld [vmem:[%s365 + $0x7a] sm:$0xff]
        %v2508 = vld [vmem:[%s365 + $0x82] sm:$0xff]
        %v2509 = vld [vmem:[%s365 + $0x92] sm:$0xff]
        %v2510 = vld [vmem:[%s365 + $0x9a] sm:$0xff]
        %v2511 = vld [vmem:[%s365 + $0xaa] sm:$0xff]
        %v2512 = vld [vmem:[%s365 + $0xb2] sm:$0xff]
        %v2513 = vld [vmem:[%s365 + $0xc2] sm:$0xff]
        %v2514 = vld [vmem:[%s365 + $0xca] sm:$0xff]
        %v2515 = vld [vmem:[%s365 + $0xda] sm:$0xff]
        %v2516 = vld [vmem:[%s365 + $0xe2] sm:$0xff]
        %v2517 = vld [vmem:[%s365 + $0xf2] sm:$0xff]
        %v2518 = vld [vmem:[%s365 + $0xfa] sm:$0xff]
        %v2519 = vld [vmem:[%s365 + $0x10a] sm:$0xff]
        %v2520 = vld [vmem:[%s365 + $0x112] sm:$0xff]
        %v2521 = vld [vmem:[%s365 + $0x122] sm:$0xff]
        %v2522 = vld [vmem:[%s365 + $0x12a] sm:$0xff]
        %v2523 = vld [vmem:[%s365 + $0x13a] sm:$0xff]
        %v2524 = vld [vmem:[%s365 + $0x142] sm:$0xff]
        %v2525 = vld [vmem:[%s365 + $0x152] sm:$0xff]
        %v2526 = vld [vmem:[%s365 + $0x15a] sm:$0xff]
        %v2527 = vld [vmem:[%s365 + $0x16a] sm:$0xff]
        %v2528 = vld [vmem:[%s365 + $0x172] sm:$0xff]
        %v2529 = vld [vmem:[%s590] sm:$0xff]
        %v2530 = vld [vmem:[%s590 + $0x8] sm:$0xff]
        %v2531 = vld [vmem:[%s590 + $0x18] sm:$0xff]
        %v2532 = vld [vmem:[%s590 + $0x20] sm:$0xff]
        %v2533 = vld [vmem:[%s590 + $0x30] sm:$0xff]
        %v2534 = vld [vmem:[%s590 + $0x38] sm:$0xff]
        %v2535 = vld [vmem:[%s590 + $0x48] sm:$0xff]
        %v2536 = vld [vmem:[%s590 + $0x50] sm:$0xff]
        %v2537 = vld [vmem:[%s590 + $0x60] sm:$0xff]
        %v2538 = vld [vmem:[%s590 + $0x68] sm:$0xff]
        %v2539 = vld [vmem:[%s590 + $0x78] sm:$0xff]
        %v2540 = vld [vmem:[%s590 + $0x80] sm:$0xff]
        %v2541 = vld [vmem:[%s590 + $0x90] sm:$0xff]
        %v2542 = vld [vmem:[%s590 + $0x98] sm:$0xff]
        %v2543 = vld [vmem:[%s590 + $0xa8] sm:$0xff]
        %v2544 = vld [vmem:[%s590 + $0xb0] sm:$0xff]
        %v2545 = vld [vmem:[%s590 + $0xc0] sm:$0xff]
        %v2546 = vld [vmem:[%s590 + $0xc8] sm:$0xff]
        %v2547 = vld [vmem:[%s590 + $0xd8] sm:$0xff]
        %v2548 = vld [vmem:[%s590 + $0xe0] sm:$0xff]
        %v2549 = vld [vmem:[%s590 + $0xf0] sm:$0xff]
        %v2550 = vld [vmem:[%s590 + $0xf8] sm:$0xff]
        %v2551 = vld [vmem:[%s590 + $0x108] sm:$0xff]
        %v2552 = vld [vmem:[%s590 + $0x110] sm:$0xff]
        %v2553 = vld [vmem:[%s590 + $0x120] sm:$0xff]
        %v2554 = vld [vmem:[%s590 + $0x128] sm:$0xff]
        %v2555 = vld [vmem:[%s590 + $0x138] sm:$0xff]
        %v2556 = vld [vmem:[%s590 + $0x140] sm:$0xff]
        %v2557 = vld [vmem:[%s590 + $0x150] sm:$0xff]
        %v2558 = vld [vmem:[%s590 + $0x158] sm:$0xff]
        %v2559 = vld [vmem:[%s590 + $0x168] sm:$0xff]
        %v2560 = vld [vmem:[%s590 + $0x170] sm:$0xff]
        %v2561 = vld [vmem:[%s590 + $0x1] sm:$0xff]
        %v2562 = vld [vmem:[%s590 + $0x9] sm:$0xff]
        %v2563 = vld [vmem:[%s590 + $0x19] sm:$0xff]
        %v2564 = vld [vmem:[%s590 + $0x21] sm:$0xff]
        %v2565 = vld [vmem:[%s590 + $0x31] sm:$0xff]
        %v2566 = vld [vmem:[%s590 + $0x39] sm:$0xff]
        %v2567 = vld [vmem:[%s590 + $0x49] sm:$0xff]
        %v2568 = vld [vmem:[%s590 + $0x51] sm:$0xff]
        %v2569 = vld [vmem:[%s590 + $0x61] sm:$0xff]
        %v2570 = vld [vmem:[%s590 + $0x69] sm:$0xff]
        %v2571 = vld [vmem:[%s590 + $0x79] sm:$0xff]
        %v2572 = vld [vmem:[%s590 + $0x81] sm:$0xff]
        %v2573 = vld [vmem:[%s590 + $0x91] sm:$0xff]
        %v2574 = vld [vmem:[%s590 + $0x99] sm:$0xff]
        %v2575 = vld [vmem:[%s590 + $0xa9] sm:$0xff]
        %v2576 = vld [vmem:[%s590 + $0xb1] sm:$0xff]
        %v2577 = vld [vmem:[%s590 + $0xc1] sm:$0xff]
        %v2578 = vld [vmem:[%s590 + $0xc9] sm:$0xff]
        %v2579 = vld [vmem:[%s590 + $0xd9] sm:$0xff]
        %v2580 = vld [vmem:[%s590 + $0xe1] sm:$0xff]
        %v2581 = vld [vmem:[%s590 + $0xf1] sm:$0xff]
        %v2582 = vld [vmem:[%s590 + $0xf9] sm:$0xff]
        %v2583 = vld [vmem:[%s590 + $0x109] sm:$0xff]
        %v2584 = vld [vmem:[%s590 + $0x111] sm:$0xff]
        %v2585 = vld [vmem:[%s590 + $0x121] sm:$0xff]
        %v2586 = vld [vmem:[%s590 + $0x129] sm:$0xff]
        %v2587 = vld [vmem:[%s590 + $0x139] sm:$0xff]
        %v2588 = vld [vmem:[%s590 + $0x141] sm:$0xff]
        %v2589 = vld [vmem:[%s590 + $0x151] sm:$0xff]
        %v2590 = vld [vmem:[%s590 + $0x159] sm:$0xff]
        %v2591 = vld [vmem:[%s590 + $0x169] sm:$0xff]
        %v2592 = vld [vmem:[%s590 + $0x171] sm:$0xff]
        %v2593 = vld [vmem:[%s590 + $0x2] sm:$0xff]
        %v2594 = vld [vmem:[%s590 + $0xa] sm:$0xff]
        %v2595 = vld [vmem:[%s590 + $0x1a] sm:$0xff]
        %v2596 = vld [vmem:[%s590 + $0x22] sm:$0xff]
        %v2597 = vld [vmem:[%s590 + $0x32] sm:$0xff]
        %v2598 = vld [vmem:[%s590 + $0x3a] sm:$0xff]
        %v2599 = vld [vmem:[%s590 + $0x4a] sm:$0xff]
        %v2600 = vld [vmem:[%s590 + $0x52] sm:$0xff]
        %v2601 = vld [vmem:[%s590 + $0x62] sm:$0xff]
        %v2602 = vld [vmem:[%s590 + $0x6a] sm:$0xff]
        %v2603 = vld [vmem:[%s590 + $0x7a] sm:$0xff]
        %v2604 = vld [vmem:[%s590 + $0x82] sm:$0xff]
        %v2605 = vld [vmem:[%s590 + $0x92] sm:$0xff]
        %v2606 = vld [vmem:[%s590 + $0x9a] sm:$0xff]
        %v2607 = vld [vmem:[%s590 + $0xaa] sm:$0xff]
        %v2608 = vld [vmem:[%s590 + $0xb2] sm:$0xff]
        %v2609 = vld [vmem:[%s590 + $0xc2] sm:$0xff]
        %v2610 = vld [vmem:[%s590 + $0xca] sm:$0xff]
        %v2611 = vld [vmem:[%s590 + $0xda] sm:$0xff]
        %v2612 = vld [vmem:[%s590 + $0xe2] sm:$0xff]
        %v2613 = vld [vmem:[%s590 + $0xf2] sm:$0xff]
        %v2614 = vld [vmem:[%s590 + $0xfa] sm:$0xff]
        %v2615 = vld [vmem:[%s590 + $0x10a] sm:$0xff]
        %v2616 = vld [vmem:[%s590 + $0x112] sm:$0xff]
        %v2617 = vld [vmem:[%s590 + $0x122] sm:$0xff]
        %v2618 = vld [vmem:[%s590 + $0x12a] sm:$0xff]
        %v2619 = vld [vmem:[%s590 + $0x13a] sm:$0xff]
        %v2620 = vld [vmem:[%s590 + $0x142] sm:$0xff]
        %v2621 = vld [vmem:[%s590 + $0x152] sm:$0xff]
        %v2622 = vld [vmem:[%s590 + $0x15a] sm:$0xff]
        %v2623 = vld [vmem:[%s590 + $0x16a] sm:$0xff]
        %v2624 = vld [vmem:[%s590 + $0x172] sm:$0xff]
        %2657 = vrot.lane.b32.xlu0 %v2369, 8
        %v2658 = vpop.permute.xlu0 %2657
        %2659 = vrot.lane.b32.xlu0 %v2370, 8
        %v2660 = vpop.permute.xlu0 %2659
        %2661 = vrot.lane.b32.xlu0 %v2371, 8
        %v2662 = vpop.permute.xlu0 %2661
        %2663 = vrot.lane.b32.xlu0 %v2372, 8
        %v2664 = vpop.permute.xlu0 %2663
        %2665 = vrot.lane.b32.xlu0 %v2373, 8
        %v2666 = vpop.permute.xlu0 %2665
        %2667 = vrot.lane.b32.xlu0 %v2374, 8
        %v2668 = vpop.permute.xlu0 %2667
        %2669 = vrot.lane.b32.xlu0 %v2375, 8
        %v2670 = vpop.permute.xlu0 %2669
        %2671 = vrot.lane.b32.xlu0 %v2376, 8
        %v2672 = vpop.permute.xlu0 %2671
        %2673 = vrot.lane.b32.xlu0 %v2377, 8
        %v2674 = vpop.permute.xlu0 %2673
        %2675 = vrot.lane.b32.xlu0 %v2378, 8
        %v2676 = vpop.permute.xlu0 %2675
        %2677 = vrot.lane.b32.xlu0 %v2379, 8
        %v2678 = vpop.permute.xlu0 %2677
        %2679 = vrot.lane.b32.xlu0 %v2380, 8
        %v2680 = vpop.permute.xlu0 %2679
        %2681 = vrot.lane.b32.xlu0 %v2381, 8
        %v2682 = vpop.permute.xlu0 %2681
        %2683 = vrot.lane.b32.xlu0 %v2382, 8
        %v2684 = vpop.permute.xlu0 %2683
        %2685 = vrot.lane.b32.xlu0 %v2383, 8
        %v2686 = vpop.permute.xlu0 %2685
        %2687 = vrot.lane.b32.xlu0 %v2384, 8
        %v2688 = vpop.permute.xlu0 %2687
        %2689 = vrot.lane.b32.xlu0 %v2385, 8
        %v2690 = vpop.permute.xlu0 %2689
        %2691 = vrot.lane.b32.xlu0 %v2386, 8
        %v2692 = vpop.permute.xlu0 %2691
        %2693 = vrot.lane.b32.xlu0 %v2387, 8
        %v2694 = vpop.permute.xlu0 %2693
        %2695 = vrot.lane.b32.xlu0 %v2388, 8
        %v2696 = vpop.permute.xlu0 %2695
        %2697 = vrot.lane.b32.xlu0 %v2389, 8
        %v2698 = vpop.permute.xlu0 %2697
        %2699 = vrot.lane.b32.xlu0 %v2390, 8
        %v2700 = vpop.permute.xlu0 %2699
        %2701 = vrot.lane.b32.xlu0 %v2391, 8
        %v2702 = vpop.permute.xlu0 %2701
        %2703 = vrot.lane.b32.xlu0 %v2392, 8
        %v2704 = vpop.permute.xlu0 %2703
        %2705 = vrot.lane.b32.xlu0 %v2393, 8
        %v2706 = vpop.permute.xlu0 %2705
        %2707 = vrot.lane.b32.xlu0 %v2394, 8
        %v2708 = vpop.permute.xlu0 %2707
        %2709 = vrot.lane.b32.xlu0 %v2395, 8
        %v2710 = vpop.permute.xlu0 %2709
        %2711 = vrot.lane.b32.xlu0 %v2396, 8
        %v2712 = vpop.permute.xlu0 %2711
        %2713 = vrot.lane.b32.xlu0 %v2397, 8
        %v2714 = vpop.permute.xlu0 %2713
        %2715 = vrot.lane.b32.xlu0 %v2398, 8
        %v2716 = vpop.permute.xlu0 %2715
        %2717 = vrot.lane.b32.xlu0 %v2399, 8
        %v2718 = vpop.permute.xlu0 %2717
        %2719 = vrot.lane.b32.xlu0 %v2400, 8
        %v2720 = vpop.permute.xlu0 %2719
        %2785 = vrot.lane.b32.xlu0 %v2401, 16
        %v2786 = vpop.permute.xlu0 %2785
        %2787 = vrot.lane.b32.xlu0 %v2402, 16
        %v2788 = vpop.permute.xlu0 %2787
        %2789 = vrot.lane.b32.xlu0 %v2403, 16
        %v2790 = vpop.permute.xlu0 %2789
        %2791 = vrot.lane.b32.xlu0 %v2404, 16
        %v2792 = vpop.permute.xlu0 %2791
        %2793 = vrot.lane.b32.xlu0 %v2405, 16
        %v2794 = vpop.permute.xlu0 %2793
        %2795 = vrot.lane.b32.xlu0 %v2406, 16
        %v2796 = vpop.permute.xlu0 %2795
        %2797 = vrot.lane.b32.xlu0 %v2407, 16
        %v2798 = vpop.permute.xlu0 %2797
        %2799 = vrot.lane.b32.xlu0 %v2408, 16
        %v2800 = vpop.permute.xlu0 %2799
        %2801 = vrot.lane.b32.xlu0 %v2409, 16
        %v2802 = vpop.permute.xlu0 %2801
        %2803 = vrot.lane.b32.xlu0 %v2410, 16
        %v2804 = vpop.permute.xlu0 %2803
        %2805 = vrot.lane.b32.xlu0 %v2411, 16
        %v2806 = vpop.permute.xlu0 %2805
        %2807 = vrot.lane.b32.xlu0 %v2412, 16
        %v2808 = vpop.permute.xlu0 %2807
        %2809 = vrot.lane.b32.xlu0 %v2413, 16
        %v2810 = vpop.permute.xlu0 %2809
        %2811 = vrot.lane.b32.xlu0 %v2414, 16
        %v2812 = vpop.permute.xlu0 %2811
        %2813 = vrot.lane.b32.xlu0 %v2415, 16
        %v2814 = vpop.permute.xlu0 %2813
        %2815 = vrot.lane.b32.xlu0 %v2416, 16
        %v2816 = vpop.permute.xlu0 %2815
        %2817 = vrot.lane.b32.xlu0 %v2417, 16
        %v2818 = vpop.permute.xlu0 %2817
        %2819 = vrot.lane.b32.xlu0 %v2418, 16
        %v2820 = vpop.permute.xlu0 %2819
        %2821 = vrot.lane.b32.xlu0 %v2419, 16
        %v2822 = vpop.permute.xlu0 %2821
        %2823 = vrot.lane.b32.xlu0 %v2420, 16
        %v2824 = vpop.permute.xlu0 %2823
        %2825 = vrot.lane.b32.xlu0 %v2421, 16
        %v2826 = vpop.permute.xlu0 %2825
        %2827 = vrot.lane.b32.xlu0 %v2422, 16
        %v2828 = vpop.permute.xlu0 %2827
        %2829 = vrot.lane.b32.xlu0 %v2423, 16
        %v2830 = vpop.permute.xlu0 %2829
        %2831 = vrot.lane.b32.xlu0 %v2424, 16
        %v2832 = vpop.permute.xlu0 %2831
        %2833 = vrot.lane.b32.xlu0 %v2425, 16
        %v2834 = vpop.permute.xlu0 %2833
        %2835 = vrot.lane.b32.xlu0 %v2426, 16
        %v2836 = vpop.permute.xlu0 %2835
        %2837 = vrot.lane.b32.xlu0 %v2427, 16
        %v2838 = vpop.permute.xlu0 %2837
        %2839 = vrot.lane.b32.xlu0 %v2428, 16
        %v2840 = vpop.permute.xlu0 %2839
        %2841 = vrot.lane.b32.xlu0 %v2429, 16
        %v2842 = vpop.permute.xlu0 %2841
        %2843 = vrot.lane.b32.xlu0 %v2430, 16
        %v2844 = vpop.permute.xlu0 %2843
        %2845 = vrot.lane.b32.xlu0 %v2431, 16
        %v2846 = vpop.permute.xlu0 %2845
        %2847 = vrot.lane.b32.xlu0 %v2432, 16
        %v2848 = vpop.permute.xlu0 %2847
        %2913 = vrot.lane.b32.xlu0 %v2433, 24
        %v2914 = vpop.permute.xlu0 %2913
        %2915 = vrot.lane.b32.xlu0 %v2434, 24
        %v2916 = vpop.permute.xlu0 %2915
        %2917 = vrot.lane.b32.xlu0 %v2435, 24
        %v2918 = vpop.permute.xlu0 %2917
        %2919 = vrot.lane.b32.xlu0 %v2436, 24
        %v2920 = vpop.permute.xlu0 %2919
        %2921 = vrot.lane.b32.xlu0 %v2437, 24
        %v2922 = vpop.permute.xlu0 %2921
        %2923 = vrot.lane.b32.xlu0 %v2438, 24
        %v2924 = vpop.permute.xlu0 %2923
        %2925 = vrot.lane.b32.xlu0 %v2439, 24
        %v2926 = vpop.permute.xlu0 %2925
        %2927 = vrot.lane.b32.xlu0 %v2440, 24
        %v2928 = vpop.permute.xlu0 %2927
        %2929 = vrot.lane.b32.xlu0 %v2441, 24
        %v2930 = vpop.permute.xlu0 %2929
        %2931 = vrot.lane.b32.xlu0 %v2442, 24
        %v2932 = vpop.permute.xlu0 %2931
        %2933 = vrot.lane.b32.xlu0 %v2443, 24
        %v2934 = vpop.permute.xlu0 %2933
        %2935 = vrot.lane.b32.xlu0 %v2444, 24
        %v2936 = vpop.permute.xlu0 %2935
        %2937 = vrot.lane.b32.xlu0 %v2445, 24
        %v2938 = vpop.permute.xlu0 %2937
        %2939 = vrot.lane.b32.xlu0 %v2446, 24
        %v2940 = vpop.permute.xlu0 %2939
        %2941 = vrot.lane.b32.xlu0 %v2447, 24
        %v2942 = vpop.permute.xlu0 %2941
        %2943 = vrot.lane.b32.xlu0 %v2448, 24
        %v2944 = vpop.permute.xlu0 %2943
        %2945 = vrot.lane.b32.xlu0 %v2449, 24
        %v2946 = vpop.permute.xlu0 %2945
        %2947 = vrot.lane.b32.xlu0 %v2450, 24
        %v2948 = vpop.permute.xlu0 %2947
        %2949 = vrot.lane.b32.xlu0 %v2451, 24
        %v2950 = vpop.permute.xlu0 %2949
        %2951 = vrot.lane.b32.xlu0 %v2452, 24
        %v2952 = vpop.permute.xlu0 %2951
        %2953 = vrot.lane.b32.xlu0 %v2453, 24
        %v2954 = vpop.permute.xlu0 %2953
        %2955 = vrot.lane.b32.xlu0 %v2454, 24
        %v2956 = vpop.permute.xlu0 %2955
        %2957 = vrot.lane.b32.xlu0 %v2455, 24
        %v2958 = vpop.permute.xlu0 %2957
        %2959 = vrot.lane.b32.xlu0 %v2456, 24
        %v2960 = vpop.permute.xlu0 %2959
        %2961 = vrot.lane.b32.xlu0 %v2457, 24
        %v2962 = vpop.permute.xlu0 %2961
        %2963 = vrot.lane.b32.xlu0 %v2458, 24
        %v2964 = vpop.permute.xlu0 %2963
        %2965 = vrot.lane.b32.xlu0 %v2459, 24
        %v2966 = vpop.permute.xlu0 %2965
        %2967 = vrot.lane.b32.xlu0 %v2460, 24
        %v2968 = vpop.permute.xlu0 %2967
        %2969 = vrot.lane.b32.xlu0 %v2461, 24
        %v2970 = vpop.permute.xlu0 %2969
        %2971 = vrot.lane.b32.xlu0 %v2462, 24
        %v2972 = vpop.permute.xlu0 %2971
        %2973 = vrot.lane.b32.xlu0 %v2463, 24
        %v2974 = vpop.permute.xlu0 %2973
        %2975 = vrot.lane.b32.xlu0 %v2464, 24
        %v2976 = vpop.permute.xlu0 %2975
        %3041 = vrot.lane.b32.xlu0 %v2465, 32
        %v3042 = vpop.permute.xlu0 %3041
        %3043 = vrot.lane.b32.xlu0 %v2466, 32
        %v3044 = vpop.permute.xlu0 %3043
        %3045 = vrot.lane.b32.xlu0 %v2467, 32
        %v3046 = vpop.permute.xlu0 %3045
        %3047 = vrot.lane.b32.xlu0 %v2468, 32
        %v3048 = vpop.permute.xlu0 %3047
        %3049 = vrot.lane.b32.xlu0 %v2469, 32
        %v3050 = vpop.permute.xlu0 %3049
        %3051 = vrot.lane.b32.xlu0 %v2470, 32
        %v3052 = vpop.permute.xlu0 %3051
        %3053 = vrot.lane.b32.xlu0 %v2471, 32
        %v3054 = vpop.permute.xlu0 %3053
        %3055 = vrot.lane.b32.xlu0 %v2472, 32
        %v3056 = vpop.permute.xlu0 %3055
        %3057 = vrot.lane.b32.xlu0 %v2473, 32
        %v3058 = vpop.permute.xlu0 %3057
        %3059 = vrot.lane.b32.xlu0 %v2474, 32
        %v3060 = vpop.permute.xlu0 %3059
        %3061 = vrot.lane.b32.xlu0 %v2475, 32
        %v3062 = vpop.permute.xlu0 %3061
        %3063 = vrot.lane.b32.xlu0 %v2476, 32
        %v3064 = vpop.permute.xlu0 %3063
        %3065 = vrot.lane.b32.xlu0 %v2477, 32
        %v3066 = vpop.permute.xlu0 %3065
        %3067 = vrot.lane.b32.xlu0 %v2478, 32
        %v3068 = vpop.permute.xlu0 %3067
        %3069 = vrot.lane.b32.xlu0 %v2479, 32
        %v3070 = vpop.permute.xlu0 %3069
        %3071 = vrot.lane.b32.xlu0 %v2480, 32
        %v3072 = vpop.permute.xlu0 %3071
        %3073 = vrot.lane.b32.xlu0 %v2481, 32
        %v3074 = vpop.permute.xlu0 %3073
        %3075 = vrot.lane.b32.xlu0 %v2482, 32
        %v3076 = vpop.permute.xlu0 %3075
        %3077 = vrot.lane.b32.xlu0 %v2483, 32
        %v3078 = vpop.permute.xlu0 %3077
        %3079 = vrot.lane.b32.xlu0 %v2484, 32
        %v3080 = vpop.permute.xlu0 %3079
        %3081 = vrot.lane.b32.xlu0 %v2485, 32
        %v3082 = vpop.permute.xlu0 %3081
        %3083 = vrot.lane.b32.xlu0 %v2486, 32
        %v3084 = vpop.permute.xlu0 %3083
        %3085 = vrot.lane.b32.xlu0 %v2487, 32
        %v3086 = vpop.permute.xlu0 %3085
        %3087 = vrot.lane.b32.xlu0 %v2488, 32
        %v3088 = vpop.permute.xlu0 %3087
        %3089 = vrot.lane.b32.xlu0 %v2489, 32
        %v3090 = vpop.permute.xlu0 %3089
        %3091 = vrot.lane.b32.xlu0 %v2490, 32
        %v3092 = vpop.permute.xlu0 %3091
        %3093 = vrot.lane.b32.xlu0 %v2491, 32
        %v3094 = vpop.permute.xlu0 %3093
        %3095 = vrot.lane.b32.xlu0 %v2492, 32
        %v3096 = vpop.permute.xlu0 %3095
        %3097 = vrot.lane.b32.xlu0 %v2493, 32
        %v3098 = vpop.permute.xlu0 %3097
        %3099 = vrot.lane.b32.xlu0 %v2494, 32
        %v3100 = vpop.permute.xlu0 %3099
        %3101 = vrot.lane.b32.xlu0 %v2495, 32
        %v3102 = vpop.permute.xlu0 %3101
        %3103 = vrot.lane.b32.xlu0 %v2496, 32
        %v3104 = vpop.permute.xlu0 %3103
        %3169 = vrot.lane.b32.xlu0 %v2497, 40
        %v3170 = vpop.permute.xlu0 %3169
        %3171 = vrot.lane.b32.xlu0 %v2498, 40
        %v3172 = vpop.permute.xlu0 %3171
        %3173 = vrot.lane.b32.xlu0 %v2499, 40
        %v3174 = vpop.permute.xlu0 %3173
        %3175 = vrot.lane.b32.xlu0 %v2500, 40
        %v3176 = vpop.permute.xlu0 %3175
        %3177 = vrot.lane.b32.xlu0 %v2501, 40
        %v3178 = vpop.permute.xlu0 %3177
        %3179 = vrot.lane.b32.xlu0 %v2502, 40
        %v3180 = vpop.permute.xlu0 %3179
        %3181 = vrot.lane.b32.xlu0 %v2503, 40
        %v3182 = vpop.permute.xlu0 %3181
        %3183 = vrot.lane.b32.xlu0 %v2504, 40
        %v3184 = vpop.permute.xlu0 %3183
        %3185 = vrot.lane.b32.xlu0 %v2505, 40
        %v3186 = vpop.permute.xlu0 %3185
        %3187 = vrot.lane.b32.xlu0 %v2506, 40
        %v3188 = vpop.permute.xlu0 %3187
        %3189 = vrot.lane.b32.xlu0 %v2507, 40
        %v3190 = vpop.permute.xlu0 %3189
        %3191 = vrot.lane.b32.xlu0 %v2508, 40
        %v3192 = vpop.permute.xlu0 %3191
        %3193 = vrot.lane.b32.xlu0 %v2509, 40
        %v3194 = vpop.permute.xlu0 %3193
        %3195 = vrot.lane.b32.xlu0 %v2510, 40
        %v3196 = vpop.permute.xlu0 %3195
        %3197 = vrot.lane.b32.xlu0 %v2511, 40
        %v3198 = vpop.permute.xlu0 %3197
        %3199 = vrot.lane.b32.xlu0 %v2512, 40
        %v3200 = vpop.permute.xlu0 %3199
        %3201 = vrot.lane.b32.xlu0 %v2513, 40
        %v3202 = vpop.permute.xlu0 %3201
        %3203 = vrot.lane.b32.xlu0 %v2514, 40
        %v3204 = vpop.permute.xlu0 %3203
        %3205 = vrot.lane.b32.xlu0 %v2515, 40
        %v3206 = vpop.permute.xlu0 %3205
        %3207 = vrot.lane.b32.xlu0 %v2516, 40
        %v3208 = vpop.permute.xlu0 %3207
        %3209 = vrot.lane.b32.xlu0 %v2517, 40
        %v3210 = vpop.permute.xlu0 %3209
        %3211 = vrot.lane.b32.xlu0 %v2518, 40
        %v3212 = vpop.permute.xlu0 %3211
        %3213 = vrot.lane.b32.xlu0 %v2519, 40
        %v3214 = vpop.permute.xlu0 %3213
        %3215 = vrot.lane.b32.xlu0 %v2520, 40
        %v3216 = vpop.permute.xlu0 %3215
        %3217 = vrot.lane.b32.xlu0 %v2521, 40
        %v3218 = vpop.permute.xlu0 %3217
        %3219 = vrot.lane.b32.xlu0 %v2522, 40
        %v3220 = vpop.permute.xlu0 %3219
        %3221 = vrot.lane.b32.xlu0 %v2523, 40
        %v3222 = vpop.permute.xlu0 %3221
        %3223 = vrot.lane.b32.xlu0 %v2524, 40
        %v3224 = vpop.permute.xlu0 %3223
        %3225 = vrot.lane.b32.xlu0 %v2525, 40
        %v3226 = vpop.permute.xlu0 %3225
        %3227 = vrot.lane.b32.xlu0 %v2526, 40
        %v3228 = vpop.permute.xlu0 %3227
        %3229 = vrot.lane.b32.xlu0 %v2527, 40
        %v3230 = vpop.permute.xlu0 %3229
        %3231 = vrot.lane.b32.xlu0 %v2528, 40
        %v3232 = vpop.permute.xlu0 %3231
        %3297 = vrot.lane.b32.xlu0 %v2529, 48
        %v3298 = vpop.permute.xlu0 %3297
        %3299 = vrot.lane.b32.xlu0 %v2530, 48
        %v3300 = vpop.permute.xlu0 %3299
        %3301 = vrot.lane.b32.xlu0 %v2531, 48
        %v3302 = vpop.permute.xlu0 %3301
        %3303 = vrot.lane.b32.xlu0 %v2532, 48
        %v3304 = vpop.permute.xlu0 %3303
        %3305 = vrot.lane.b32.xlu0 %v2533, 48
        %v3306 = vpop.permute.xlu0 %3305
        %3307 = vrot.lane.b32.xlu0 %v2534, 48
        %v3308 = vpop.permute.xlu0 %3307
        %3309 = vrot.lane.b32.xlu0 %v2535, 48
        %v3310 = vpop.permute.xlu0 %3309
        %3311 = vrot.lane.b32.xlu0 %v2536, 48
        %v3312 = vpop.permute.xlu0 %3311
        %3313 = vrot.lane.b32.xlu0 %v2537, 48
        %v3314 = vpop.permute.xlu0 %3313
        %3315 = vrot.lane.b32.xlu0 %v2538, 48
        %v3316 = vpop.permute.xlu0 %3315
        %3317 = vrot.lane.b32.xlu0 %v2539, 48
        %v3318 = vpop.permute.xlu0 %3317
        %3319 = vrot.lane.b32.xlu0 %v2540, 48
        %v3320 = vpop.permute.xlu0 %3319
        %3321 = vrot.lane.b32.xlu0 %v2541, 48
        %v3322 = vpop.permute.xlu0 %3321
        %3323 = vrot.lane.b32.xlu0 %v2542, 48
        %v3324 = vpop.permute.xlu0 %3323
        %3325 = vrot.lane.b32.xlu0 %v2543, 48
        %v3326 = vpop.permute.xlu0 %3325
        %3327 = vrot.lane.b32.xlu0 %v2544, 48
        %v3328 = vpop.permute.xlu0 %3327
        %3329 = vrot.lane.b32.xlu0 %v2545, 48
        %v3330 = vpop.permute.xlu0 %3329
        %3331 = vrot.lane.b32.xlu0 %v2546, 48
        %v3332 = vpop.permute.xlu0 %3331
        %3333 = vrot.lane.b32.xlu0 %v2547, 48
        %v3334 = vpop.permute.xlu0 %3333
        %3335 = vrot.lane.b32.xlu0 %v2548, 48
        %v3336 = vpop.permute.xlu0 %3335
        %3337 = vrot.lane.b32.xlu0 %v2549, 48
        %v3338 = vpop.permute.xlu0 %3337
        %3339 = vrot.lane.b32.xlu0 %v2550, 48
        %v3340 = vpop.permute.xlu0 %3339
        %3341 = vrot.lane.b32.xlu0 %v2551, 48
        %v3342 = vpop.permute.xlu0 %3341
        %3343 = vrot.lane.b32.xlu0 %v2552, 48
        %v3344 = vpop.permute.xlu0 %3343
        %3345 = vrot.lane.b32.xlu0 %v2553, 48
        %v3346 = vpop.permute.xlu0 %3345
        %3347 = vrot.lane.b32.xlu0 %v2554, 48
        %v3348 = vpop.permute.xlu0 %3347
        %3349 = vrot.lane.b32.xlu0 %v2555, 48
        %v3350 = vpop.permute.xlu0 %3349
        %3351 = vrot.lane.b32.xlu0 %v2556, 48
        %v3352 = vpop.permute.xlu0 %3351
        %3353 = vrot.lane.b32.xlu0 %v2557, 48
        %v3354 = vpop.permute.xlu0 %3353
        %3355 = vrot.lane.b32.xlu0 %v2558, 48
        %v3356 = vpop.permute.xlu0 %3355
        %3357 = vrot.lane.b32.xlu0 %v2559, 48
        %v3358 = vpop.permute.xlu0 %3357
        %3359 = vrot.lane.b32.xlu0 %v2560, 48
        %v3360 = vpop.permute.xlu0 %3359
        %3425 = vrot.lane.b32.xlu0 %v2561, 56
        %v3426 = vpop.permute.xlu0 %3425
        %3427 = vrot.lane.b32.xlu0 %v2562, 56
        %v3428 = vpop.permute.xlu0 %3427
        %3429 = vrot.lane.b32.xlu0 %v2563, 56
        %v3430 = vpop.permute.xlu0 %3429
        %3431 = vrot.lane.b32.xlu0 %v2564, 56
        %v3432 = vpop.permute.xlu0 %3431
        %3433 = vrot.lane.b32.xlu0 %v2565, 56
        %v3434 = vpop.permute.xlu0 %3433
        %3435 = vrot.lane.b32.xlu0 %v2566, 56
        %v3436 = vpop.permute.xlu0 %3435
        %3437 = vrot.lane.b32.xlu0 %v2567, 56
        %v3438 = vpop.permute.xlu0 %3437
        %3439 = vrot.lane.b32.xlu0 %v2568, 56
        %v3440 = vpop.permute.xlu0 %3439
        %3441 = vrot.lane.b32.xlu0 %v2569, 56
        %v3442 = vpop.permute.xlu0 %3441
        %3443 = vrot.lane.b32.xlu0 %v2570, 56
        %v3444 = vpop.permute.xlu0 %3443
        %3445 = vrot.lane.b32.xlu0 %v2571, 56
        %v3446 = vpop.permute.xlu0 %3445
        %3447 = vrot.lane.b32.xlu0 %v2572, 56
        %v3448 = vpop.permute.xlu0 %3447
        %3449 = vrot.lane.b32.xlu0 %v2573, 56
        %v3450 = vpop.permute.xlu0 %3449
        %3451 = vrot.lane.b32.xlu0 %v2574, 56
        %v3452 = vpop.permute.xlu0 %3451
        %3453 = vrot.lane.b32.xlu0 %v2575, 56
        %v3454 = vpop.permute.xlu0 %3453
        %3455 = vrot.lane.b32.xlu0 %v2576, 56
        %v3456 = vpop.permute.xlu0 %3455
        %3457 = vrot.lane.b32.xlu0 %v2577, 56
        %v3458 = vpop.permute.xlu0 %3457
        %3459 = vrot.lane.b32.xlu0 %v2578, 56
        %v3460 = vpop.permute.xlu0 %3459
        %3461 = vrot.lane.b32.xlu0 %v2579, 56
        %v3462 = vpop.permute.xlu0 %3461
        %3463 = vrot.lane.b32.xlu0 %v2580, 56
        %v3464 = vpop.permute.xlu0 %3463
        %3465 = vrot.lane.b32.xlu0 %v2581, 56
        %v3466 = vpop.permute.xlu0 %3465
        %3467 = vrot.lane.b32.xlu0 %v2582, 56
        %v3468 = vpop.permute.xlu0 %3467
        %3469 = vrot.lane.b32.xlu0 %v2583, 56
        %v3470 = vpop.permute.xlu0 %3469
        %3471 = vrot.lane.b32.xlu0 %v2584, 56
        %v3472 = vpop.permute.xlu0 %3471
        %3473 = vrot.lane.b32.xlu0 %v2585, 56
        %v3474 = vpop.permute.xlu0 %3473
        %3475 = vrot.lane.b32.xlu0 %v2586, 56
        %v3476 = vpop.permute.xlu0 %3475
        %3477 = vrot.lane.b32.xlu0 %v2587, 56
        %v3478 = vpop.permute.xlu0 %3477
        %3479 = vrot.lane.b32.xlu0 %v2588, 56
        %v3480 = vpop.permute.xlu0 %3479
        %3481 = vrot.lane.b32.xlu0 %v2589, 56
        %v3482 = vpop.permute.xlu0 %3481
        %3483 = vrot.lane.b32.xlu0 %v2590, 56
        %v3484 = vpop.permute.xlu0 %3483
        %3485 = vrot.lane.b32.xlu0 %v2591, 56
        %v3486 = vpop.permute.xlu0 %3485
        %3487 = vrot.lane.b32.xlu0 %v2592, 56
        %v3488 = vpop.permute.xlu0 %3487
        %3553 = vrot.lane.b32.xlu0 %v2593, 64
        %v3554 = vpop.permute.xlu0 %3553
        %3555 = vrot.lane.b32.xlu0 %v2594, 64
        %v3556 = vpop.permute.xlu0 %3555
        %3557 = vrot.lane.b32.xlu0 %v2595, 64
        %v3558 = vpop.permute.xlu0 %3557
        %3559 = vrot.lane.b32.xlu0 %v2596, 64
        %v3560 = vpop.permute.xlu0 %3559
        %3561 = vrot.lane.b32.xlu0 %v2597, 64
        %v3562 = vpop.permute.xlu0 %3561
        %3563 = vrot.lane.b32.xlu0 %v2598, 64
        %v3564 = vpop.permute.xlu0 %3563
        %3565 = vrot.lane.b32.xlu0 %v2599, 64
        %v3566 = vpop.permute.xlu0 %3565
        %3567 = vrot.lane.b32.xlu0 %v2600, 64
        %v3568 = vpop.permute.xlu0 %3567
        %3569 = vrot.lane.b32.xlu0 %v2601, 64
        %v3570 = vpop.permute.xlu0 %3569
        %3571 = vrot.lane.b32.xlu0 %v2602, 64
        %v3572 = vpop.permute.xlu0 %3571
        %3573 = vrot.lane.b32.xlu0 %v2603, 64
        %v3574 = vpop.permute.xlu0 %3573
        %3575 = vrot.lane.b32.xlu0 %v2604, 64
        %v3576 = vpop.permute.xlu0 %3575
        %3577 = vrot.lane.b32.xlu0 %v2605, 64
        %v3578 = vpop.permute.xlu0 %3577
        %3579 = vrot.lane.b32.xlu0 %v2606, 64
        %v3580 = vpop.permute.xlu0 %3579
        %3581 = vrot.lane.b32.xlu0 %v2607, 64
        %v3582 = vpop.permute.xlu0 %3581
        %3583 = vrot.lane.b32.xlu0 %v2608, 64
        %v3584 = vpop.permute.xlu0 %3583
        %3585 = vrot.lane.b32.xlu0 %v2609, 64
        %v3586 = vpop.permute.xlu0 %3585
        %3587 = vrot.lane.b32.xlu0 %v2610, 64
        %v3588 = vpop.permute.xlu0 %3587
        %3589 = vrot.lane.b32.xlu0 %v2611, 64
        %v3590 = vpop.permute.xlu0 %3589
        %3591 = vrot.lane.b32.xlu0 %v2612, 64
        %v3592 = vpop.permute.xlu0 %3591
        %3593 = vrot.lane.b32.xlu0 %v2613, 64
        %v3594 = vpop.permute.xlu0 %3593
        %3595 = vrot.lane.b32.xlu0 %v2614, 64
        %v3596 = vpop.permute.xlu0 %3595
        %3597 = vrot.lane.b32.xlu0 %v2615, 64
        %v3598 = vpop.permute.xlu0 %3597
        %3599 = vrot.lane.b32.xlu0 %v2616, 64
        %v3600 = vpop.permute.xlu0 %3599
        %3601 = vrot.lane.b32.xlu0 %v2617, 64
        %v3602 = vpop.permute.xlu0 %3601
        %3603 = vrot.lane.b32.xlu0 %v2618, 64
        %v3604 = vpop.permute.xlu0 %3603
        %3605 = vrot.lane.b32.xlu0 %v2619, 64
        %v3606 = vpop.permute.xlu0 %3605
        %3607 = vrot.lane.b32.xlu0 %v2620, 64
        %v3608 = vpop.permute.xlu0 %3607
        %3609 = vrot.lane.b32.xlu0 %v2621, 64
        %v3610 = vpop.permute.xlu0 %3609
        %3611 = vrot.lane.b32.xlu0 %v2622, 64
        %v3612 = vpop.permute.xlu0 %3611
        %3613 = vrot.lane.b32.xlu0 %v2623, 64
        %v3614 = vpop.permute.xlu0 %3613
        %3615 = vrot.lane.b32.xlu0 %v2624, 64
        %v3616 = vpop.permute.xlu0 %3615
        %v3649 = vsel %vm277, %v2337, %v2658
        %v3650 = vsel %vm277, %v2338, %v2660
        %v3651 = vsel %vm277, %v2339, %v2662
        %v3652 = vsel %vm277, %v2340, %v2664
        %v3653 = vsel %vm277, %v2341, %v2666
        %v3654 = vsel %vm277, %v2342, %v2668
        %v3655 = vsel %vm277, %v2343, %v2670
        %v3656 = vsel %vm277, %v2344, %v2672
        %v3657 = vsel %vm277, %v2345, %v2674
        %v3658 = vsel %vm277, %v2346, %v2676
        %v3659 = vsel %vm277, %v2347, %v2678
        %v3660 = vsel %vm277, %v2348, %v2680
        %v3661 = vsel %vm277, %v2349, %v2682
        %v3662 = vsel %vm277, %v2350, %v2684
        %v3663 = vsel %vm277, %v2351, %v2686
        %v3664 = vsel %vm277, %v2352, %v2688
        %v3665 = vsel %vm277, %v2353, %v2690
        %v3666 = vsel %vm277, %v2354, %v2692
        %v3667 = vsel %vm277, %v2355, %v2694
        %v3668 = vsel %vm277, %v2356, %v2696
        %v3669 = vsel %vm277, %v2357, %v2698
        %v3670 = vsel %vm277, %v2358, %v2700
        %v3671 = vsel %vm277, %v2359, %v2702
        %v3672 = vsel %vm277, %v2360, %v2704
        %v3673 = vsel %vm277, %v2361, %v2706
        %v3674 = vsel %vm277, %v2362, %v2708
        %v3675 = vsel %vm277, %v2363, %v2710
        %v3676 = vsel %vm277, %v2364, %v2712
        %v3677 = vsel %vm277, %v2365, %v2714
        %v3678 = vsel %vm277, %v2366, %v2716
        %v3679 = vsel %vm277, %v2367, %v2718
        %v3680 = vsel %vm277, %v2368, %v2720
        %v3681 = vsel %vm1743, %v3649, %v2786
        %v3682 = vsel %vm1743, %v3650, %v2788
        %v3683 = vsel %vm1743, %v3651, %v2790
        %v3684 = vsel %vm1743, %v3652, %v2792
        %v3685 = vsel %vm1743, %v3653, %v2794
        %v3686 = vsel %vm1743, %v3654, %v2796
        %v3687 = vsel %vm1743, %v3655, %v2798
        %v3688 = vsel %vm1743, %v3656, %v2800
        %v3689 = vsel %vm1743, %v3657, %v2802
        %v3690 = vsel %vm1743, %v3658, %v2804
        %v3691 = vsel %vm1743, %v3659, %v2806
        %v3692 = vsel %vm1743, %v3660, %v2808
        %v3693 = vsel %vm1743, %v3661, %v2810
        %v3694 = vsel %vm1743, %v3662, %v2812
        %v3695 = vsel %vm1743, %v3663, %v2814
        %v3696 = vsel %vm1743, %v3664, %v2816
        %v3697 = vsel %vm1743, %v3665, %v2818
        %v3698 = vsel %vm1743, %v3666, %v2820
        %v3699 = vsel %vm1743, %v3667, %v2822
        %v3700 = vsel %vm1743, %v3668, %v2824
        %v3701 = vsel %vm1743, %v3669, %v2826
        %v3702 = vsel %vm1743, %v3670, %v2828
        %v3703 = vsel %vm1743, %v3671, %v2830
        %v3704 = vsel %vm1743, %v3672, %v2832
        %v3705 = vsel %vm1743, %v3673, %v2834
        %v3706 = vsel %vm1743, %v3674, %v2836
        %v3707 = vsel %vm1743, %v3675, %v2838
        %v3708 = vsel %vm1743, %v3676, %v2840
        %v3709 = vsel %vm1743, %v3677, %v2842
        %v3710 = vsel %vm1743, %v3678, %v2844
        %v3711 = vsel %vm1743, %v3679, %v2846
        %v3712 = vsel %vm1743, %v3680, %v2848
        %v3713 = vsel %vm1776, %v3681, %v2914
        %v3714 = vsel %vm1776, %v3682, %v2916
        %v3715 = vsel %vm1776, %v3683, %v2918
        %v3716 = vsel %vm1776, %v3684, %v2920
        %v3717 = vsel %vm1776, %v3685, %v2922
        %v3718 = vsel %vm1776, %v3686, %v2924
        %v3719 = vsel %vm1776, %v3687, %v2926
        %v3720 = vsel %vm1776, %v3688, %v2928
        %v3721 = vsel %vm1776, %v3689, %v2930
        %v3722 = vsel %vm1776, %v3690, %v2932
        %v3723 = vsel %vm1776, %v3691, %v2934
        %v3724 = vsel %vm1776, %v3692, %v2936
        %v3725 = vsel %vm1776, %v3693, %v2938
        %v3726 = vsel %vm1776, %v3694, %v2940
        %v3727 = vsel %vm1776, %v3695, %v2942
        %v3728 = vsel %vm1776, %v3696, %v2944
        %v3729 = vsel %vm1776, %v3697, %v2946
        %v3730 = vsel %vm1776, %v3698, %v2948
        %v3731 = vsel %vm1776, %v3699, %v2950
        %v3732 = vsel %vm1776, %v3700, %v2952
        %v3733 = vsel %vm1776, %v3701, %v2954
        %v3734 = vsel %vm1776, %v3702, %v2956
        %v3735 = vsel %vm1776, %v3703, %v2958
        %v3736 = vsel %vm1776, %v3704, %v2960
        %v3737 = vsel %vm1776, %v3705, %v2962
        %v3738 = vsel %vm1776, %v3706, %v2964
        %v3739 = vsel %vm1776, %v3707, %v2966
        %v3740 = vsel %vm1776, %v3708, %v2968
        %v3741 = vsel %vm1776, %v3709, %v2970
        %v3742 = vsel %vm1776, %v3710, %v2972
        %v3743 = vsel %vm1776, %v3711, %v2974
        %v3744 = vsel %vm1776, %v3712, %v2976
        %v3745 = vsel %vm1809, %v3713, %v3042
        %v3746 = vsel %vm1809, %v3714, %v3044
        %v3747 = vsel %vm1809, %v3715, %v3046
        %v3748 = vsel %vm1809, %v3716, %v3048
        %v3749 = vsel %vm1809, %v3717, %v3050
        %v3750 = vsel %vm1809, %v3718, %v3052
        %v3751 = vsel %vm1809, %v3719, %v3054
        %v3752 = vsel %vm1809, %v3720, %v3056
        %v3753 = vsel %vm1809, %v3721, %v3058
        %v3754 = vsel %vm1809, %v3722, %v3060
        %v3755 = vsel %vm1809, %v3723, %v3062
        %v3756 = vsel %vm1809, %v3724, %v3064
        %v3757 = vsel %vm1809, %v3725, %v3066
        %v3758 = vsel %vm1809, %v3726, %v3068
        %v3759 = vsel %vm1809, %v3727, %v3070
        %v3760 = vsel %vm1809, %v3728, %v3072
        %v3761 = vsel %vm1809, %v3729, %v3074
        %v3762 = vsel %vm1809, %v3730, %v3076
        %v3763 = vsel %vm1809, %v3731, %v3078
        %v3764 = vsel %vm1809, %v3732, %v3080
        %v3765 = vsel %vm1809, %v3733, %v3082
        %v3766 = vsel %vm1809, %v3734, %v3084
        %v3767 = vsel %vm1809, %v3735, %v3086
        %v3768 = vsel %vm1809, %v3736, %v3088
        %v3769 = vsel %vm1809, %v3737, %v3090
        %v3770 = vsel %vm1809, %v3738, %v3092
        %v3771 = vsel %vm1809, %v3739, %v3094
        %v3772 = vsel %vm1809, %v3740, %v3096
        %v3773 = vsel %vm1809, %v3741, %v3098
        %v3774 = vsel %vm1809, %v3742, %v3100
        %v3775 = vsel %vm1809, %v3743, %v3102
        %v3776 = vsel %vm1809, %v3744, %v3104
        %v3777 = vsel %vm1842, %v3745, %v3170
        %v3778 = vsel %vm1842, %v3746, %v3172
        %v3779 = vsel %vm1842, %v3747, %v3174
        %v3780 = vsel %vm1842, %v3748, %v3176
        %v3781 = vsel %vm1842, %v3749, %v3178
        %v3782 = vsel %vm1842, %v3750, %v3180
        %v3783 = vsel %vm1842, %v3751, %v3182
        %v3784 = vsel %vm1842, %v3752, %v3184
        %v3785 = vsel %vm1842, %v3753, %v3186
        %v3786 = vsel %vm1842, %v3754, %v3188
        %v3787 = vsel %vm1842, %v3755, %v3190
        %v3788 = vsel %vm1842, %v3756, %v3192
        %v3789 = vsel %vm1842, %v3757, %v3194
        %v3790 = vsel %vm1842, %v3758, %v3196
        %v3791 = vsel %vm1842, %v3759, %v3198
        %v3792 = vsel %vm1842, %v3760, %v3200
        %v3793 = vsel %vm1842, %v3761, %v3202
        %v3794 = vsel %vm1842, %v3762, %v3204
        %v3795 = vsel %vm1842, %v3763, %v3206
        %v3796 = vsel %vm1842, %v3764, %v3208
        %v3797 = vsel %vm1842, %v3765, %v3210
        %v3798 = vsel %vm1842, %v3766, %v3212
        %v3799 = vsel %vm1842, %v3767, %v3214
        %v3800 = vsel %vm1842, %v3768, %v3216
        %v3801 = vsel %vm1842, %v3769, %v3218
        %v3802 = vsel %vm1842, %v3770, %v3220
        %v3803 = vsel %vm1842, %v3771, %v3222
        %v3804 = vsel %vm1842, %v3772, %v3224
        %v3805 = vsel %vm1842, %v3773, %v3226
        %v3806 = vsel %vm1842, %v3774, %v3228
        %v3807 = vsel %vm1842, %v3775, %v3230
        %v3808 = vsel %vm1842, %v3776, %v3232
        %v3809 = vsel %vm1875, %v3777, %v3298
        %v3810 = vsel %vm1875, %v3778, %v3300
        %v3811 = vsel %vm1875, %v3779, %v3302
        %v3812 = vsel %vm1875, %v3780, %v3304
        %v3813 = vsel %vm1875, %v3781, %v3306
        %v3814 = vsel %vm1875, %v3782, %v3308
        %v3815 = vsel %vm1875, %v3783, %v3310
        %v3816 = vsel %vm1875, %v3784, %v3312
        %v3817 = vsel %vm1875, %v3785, %v3314
        %v3818 = vsel %vm1875, %v3786, %v3316
        %v3819 = vsel %vm1875, %v3787, %v3318
        %v3820 = vsel %vm1875, %v3788, %v3320
        %v3821 = vsel %vm1875, %v3789, %v3322
        %v3822 = vsel %vm1875, %v3790, %v3324
        %v3823 = vsel %vm1875, %v3791, %v3326
        %v3824 = vsel %vm1875, %v3792, %v3328
        %v3825 = vsel %vm1875, %v3793, %v3330
        %v3826 = vsel %vm1875, %v3794, %v3332
        %v3827 = vsel %vm1875, %v3795, %v3334
        %v3828 = vsel %vm1875, %v3796, %v3336
        %v3829 = vsel %vm1875, %v3797, %v3338
        %v3830 = vsel %vm1875, %v3798, %v3340
        %v3831 = vsel %vm1875, %v3799, %v3342
        %v3832 = vsel %vm1875, %v3800, %v3344
        %v3833 = vsel %vm1875, %v3801, %v3346
        %v3834 = vsel %vm1875, %v3802, %v3348
        %v3835 = vsel %vm1875, %v3803, %v3350
        %v3836 = vsel %vm1875, %v3804, %v3352
        %v3837 = vsel %vm1875, %v3805, %v3354
        %v3838 = vsel %vm1875, %v3806, %v3356
        %v3839 = vsel %vm1875, %v3807, %v3358
        %v3840 = vsel %vm1875, %v3808, %v3360
        %v3841 = vsel %vm1908, %v3809, %v3426
        %v3842 = vsel %vm1908, %v3810, %v3428
        %v3843 = vsel %vm1908, %v3811, %v3430
        %v3844 = vsel %vm1908, %v3812, %v3432
        %v3845 = vsel %vm1908, %v3813, %v3434
        %v3846 = vsel %vm1908, %v3814, %v3436
        %v3847 = vsel %vm1908, %v3815, %v3438
        %v3848 = vsel %vm1908, %v3816, %v3440
        %v3849 = vsel %vm1908, %v3817, %v3442
        %v3850 = vsel %vm1908, %v3818, %v3444
        %v3851 = vsel %vm1908, %v3819, %v3446
        %v3852 = vsel %vm1908, %v3820, %v3448
        %v3853 = vsel %vm1908, %v3821, %v3450
        %v3854 = vsel %vm1908, %v3822, %v3452
        %v3855 = vsel %vm1908, %v3823, %v3454
        %v3856 = vsel %vm1908, %v3824, %v3456
        %v3857 = vsel %vm1908, %v3825, %v3458
        %v3858 = vsel %vm1908, %v3826, %v3460
        %v3859 = vsel %vm1908, %v3827, %v3462
        %v3860 = vsel %vm1908, %v3828, %v3464
        %v3861 = vsel %vm1908, %v3829, %v3466
        %v3862 = vsel %vm1908, %v3830, %v3468
        %v3863 = vsel %vm1908, %v3831, %v3470
        %v3864 = vsel %vm1908, %v3832, %v3472
        %v3865 = vsel %vm1908, %v3833, %v3474
        %v3866 = vsel %vm1908, %v3834, %v3476
        %v3867 = vsel %vm1908, %v3835, %v3478
        %v3868 = vsel %vm1908, %v3836, %v3480
        %v3869 = vsel %vm1908, %v3837, %v3482
        %v3870 = vsel %vm1908, %v3838, %v3484
        %v3871 = vsel %vm1908, %v3839, %v3486
        %v3872 = vsel %vm1908, %v3840, %v3488
        %v3873 = vsel %vm1941, %v3841, %v3554
        %v3874 = vsel %vm1941, %v3842, %v3556
        %v3875 = vsel %vm1941, %v3843, %v3558
        %v3876 = vsel %vm1941, %v3844, %v3560
        %v3877 = vsel %vm1941, %v3845, %v3562
        %v3878 = vsel %vm1941, %v3846, %v3564
        %v3879 = vsel %vm1941, %v3847, %v3566
        %v3880 = vsel %vm1941, %v3848, %v3568
        %v3881 = vsel %vm1941, %v3849, %v3570
        %v3882 = vsel %vm1941, %v3850, %v3572
        %v3883 = vsel %vm1941, %v3851, %v3574
        %v3884 = vsel %vm1941, %v3852, %v3576
        %v3885 = vsel %vm1941, %v3853, %v3578
        %v3886 = vsel %vm1941, %v3854, %v3580
        %v3887 = vsel %vm1941, %v3855, %v3582
        %v3888 = vsel %vm1941, %v3856, %v3584
        %v3889 = vsel %vm1941, %v3857, %v3586
        %v3890 = vsel %vm1941, %v3858, %v3588
        %v3891 = vsel %vm1941, %v3859, %v3590
        %v3892 = vsel %vm1941, %v3860, %v3592
        %v3893 = vsel %vm1941, %v3861, %v3594
        %v3894 = vsel %vm1941, %v3862, %v3596
        %v3895 = vsel %vm1941, %v3863, %v3598
        %v3896 = vsel %vm1941, %v3864, %v3600
        %v3897 = vsel %vm1941, %v3865, %v3602
        %v3898 = vsel %vm1941, %v3866, %v3604
        %v3899 = vsel %vm1941, %v3867, %v3606
        %v3900 = vsel %vm1941, %v3868, %v3608
        %v3901 = vsel %vm1941, %v3869, %v3610
        %v3902 = vsel %vm1941, %v3870, %v3612
        %v3903 = vsel %vm1941, %v3871, %v3614
        %v3904 = vsel %vm1941, %v3872, %v3616
        %s3905 = scalar_lea.vmem %s1, 72
        %v3906 = vld [vmem:[%s3905] sm:$0xff]
        %v3907 = vld [vmem:[%s3905 + $0x8] sm:$0xff]
        %v3908 = vld [vmem:[%s3905 + $0x10] sm:$0xff]
        %v3909 = vld [vmem:[%s3905 + $0x18] sm:$0xff]
        %v3910 = vld [vmem:[%s3905 + $0x20] sm:$0xff]
        %v3911 = vld [vmem:[%s3905 + $0x28] sm:$0xff]
        %v3912 = vld [vmem:[%s3905 + $0x30] sm:$0xff]
        %v3913 = vld [vmem:[%s3905 + $0x38] sm:$0xff]
        %v3914 = vld [vmem:[%s3905 + $0x40] sm:$0xff]
        %v3916 = vsel %vm1983, %v3873, 0
        %v3919 = vsel %vm1983, %v3874, 0
        %v3922 = vsel %vm1983, %v3875, 0
        %v3925 = vsel %vm1983, %v3876, 0
        %v3928 = vsel %vm1983, %v3877, 0
        %v3931 = vsel %vm1983, %v3878, 0
        %v3934 = vsel %vm1983, %v3879, 0
        %v3937 = vsel %vm1983, %v3880, 0
        %v3940 = vsel %vm1983, %v3881, 0
        %v3943 = vsel %vm1983, %v3882, 0
        %v3946 = vsel %vm1983, %v3883, 0
        %v3949 = vsel %vm1983, %v3884, 0
        %v3952 = vsel %vm1983, %v3885, 0
        %v3955 = vsel %vm1983, %v3886, 0
        %v3958 = vsel %vm1983, %v3887, 0
        %v3961 = vsel %vm1983, %v3888, 0
        %v3964 = vsel %vm1983, %v3889, 0
        %v3967 = vsel %vm1983, %v3890, 0
        %v3970 = vsel %vm1983, %v3891, 0
        %v3973 = vsel %vm1983, %v3892, 0
        %v3976 = vsel %vm1983, %v3893, 0
        %v3979 = vsel %vm1983, %v3894, 0
        %v3982 = vsel %vm1983, %v3895, 0
        %v3985 = vsel %vm1983, %v3896, 0
        %v3988 = vsel %vm1983, %v3897, 0
        %v3991 = vsel %vm1983, %v3898, 0
        %v3994 = vsel %vm1983, %v3899, 0
        %v3997 = vsel %vm1983, %v3900, 0
        %v4000 = vsel %vm1983, %v3901, 0
        %v4003 = vsel %vm1983, %v3902, 0
        %v4006 = vsel %vm1983, %v3903, 0
        %v4009 = vsel %vm1983, %v3904, 0
        %4011 = vmatprep.subr.mxu0 0.0
        %4012 = vmatpush1.msra.mxu0 %v3906
        %4013 = vmatprep.subr.mxu0 0.0
        %4014 = vmatpush1.msra.mxu0 %v3907
        %4015 = vmatprep.subr.mxu0 0.0
        %4016 = vmatpush1.msra.mxu0 %v3908
        %4017 = vmatprep.subr.mxu0 0.0
        %4018 = vmatpush1.msra.mxu0 %v3909
        %4019 = vmatprep.subr.mxu0 0.0
        %4020 = vmatpush1.msra.mxu0 %v3910
        %4021 = vmatprep.subr.mxu0 0.0
        %4022 = vmatpush1.msra.mxu0 %v3911
        %4023 = vmatprep.subr.mxu0 0.0
        %4024 = vmatpush1.msra.mxu0 %v3912
        %4025 = vmatprep.subr.mxu0 0.0
        %4026 = vmatpush1.msra.mxu0 %v3913
        %4027 = vmatprep.subr.mxu0 0.0
        %4028 = vmatpush1.msra.mxu0 %v3914
        %4029 = vmatprep.subr.mxu0 0.0
        %4030 = vmatpush1.msra.mxu0 0.0
        %4031 = vmatprep.subr.mxu0 0.0
        %4032 = vmatpush1.msra.mxu0 0.0
        %4033 = vmatprep.subr.mxu0 0.0
        %4034 = vmatpush1.msra.mxu0 0.0
        %4035 = vmatprep.subr.mxu0 0.0
        %4036 = vmatpush1.msra.mxu0 0.0
        %4037 = vmatprep.subr.mxu0 0.0
        %4038 = vmatpush1.msra.mxu0 0.0
        %4039 = vmatprep.subr.mxu0 0.0
        %4040 = vmatpush1.msra.mxu0 0.0
        %4041 = vmatprep.subr.mxu0 0.0
        %4042 = vmatpush1.msra.mxu0 0.0
        %4043 = vmatprep.subr.mxu0 0.0
        %4044 = vmatpush1.msra.mxu0 0.0
        %4045 = vmatprep.subr.mxu0 0.0
        %4046 = vmatpush1.msra.mxu0 0.0
        %4047 = vmatprep.subr.mxu0 0.0
        %4048 = vmatpush1.msra.mxu0 0.0
        %4049 = vmatprep.subr.mxu0 0.0
        %4050 = vmatpush1.msra.mxu0 0.0
        %4051 = vmatprep.subr.mxu0 0.0
        %4052 = vmatpush1.msra.mxu0 0.0
        %4053 = vmatprep.subr.mxu0 0.0
        %4054 = vmatpush1.msra.mxu0 0.0
        %4055 = vmatprep.subr.mxu0 0.0
        %4056 = vmatpush1.msra.mxu0 0.0
        %4057 = vmatprep.subr.mxu0 0.0
        %4058 = vmatpush1.msra.mxu0 0.0
        %4059 = vmatprep.subr.mxu0 0.0
        %4060 = vmatpush1.msra.mxu0 0.0
        %4061 = vmatprep.subr.mxu0 0.0
        %4062 = vmatpush1.msra.mxu0 0.0
        %4063 = vmatprep.subr.mxu0 0.0
        %4064 = vmatpush1.msra.mxu0 0.0
        %4065 = vmatprep.subr.mxu0 0.0
        %4066 = vmatpush1.msra.mxu0 0.0
        %4067 = vmatprep.subr.mxu0 0.0
        %4068 = vmatpush1.msra.mxu0 0.0
        %4069 = vmatprep.subr.mxu0 0.0
        %4070 = vmatpush1.msra.mxu0 0.0
        %4071 = vmatprep.subr.mxu0 0.0
        %4072 = vmatpush1.msra.mxu0 0.0
        %4073 = vmatprep.subr.mxu0 0.0
        %4074 = vmatpush1.msra.mxu0 0.0
        %4075 = vmatprep.mubr.f32.mxu0 0.0
        %4076 = vmatmul.mubr.f32.gmra.mrb[0].mxu0 %v3916
        %v4077 = vpop.f32.mrb[0].mxu0
        %v4078 = vadd.f32 0.0, %v4077
        %v4079 = vpop.f32.mrb[0].mxu0
        %4080 = vmatprep.mubr.f32.mxu0 0.0
        %4081 = vmatmul.mubr.f32.gmra.mrb[0].mxu0 %v3919
        %v4082 = vpop.f32.mrb[0].mxu0
        %v4083 = vadd.f32 0.0, %v4082
        %v4084 = vpop.f32.mrb[0].mxu0
        %4085 = vmatprep.mubr.f32.mxu0 0.0
        %4086 = vmatmul.mubr.f32.gmra.mrb[0].mxu0 %v3922
        %v4087 = vpop.f32.mrb[0].mxu0
        %v4088 = vadd.f32 0.0, %v4087
        %v4089 = vpop.f32.mrb[0].mxu0
        %4090 = vmatprep.mubr.f32.mxu0 0.0
        %4091 = vmatmul.mubr.f32.gmra.mrb[0].mxu0 %v3925
        %v4092 = vpop.f32.mrb[0].mxu0
        %v4093 = vadd.f32 0.0, %v4092
        %v4094 = vpop.f32.mrb[0].mxu0
        %4095 = vmatprep.mubr.f32.mxu0 0.0
        %4096 = vmatmul.mubr.f32.gmra.mrb[0].mxu0 %v3928
        %v4097 = vpop.f32.mrb[0].mxu0
        %v4098 = vadd.f32 0.0, %v4097
        %v4099 = vpop.f32.mrb[0].mxu0
        %4100 = vmatprep.mubr.f32.mxu0 0.0
        %4101 = vmatmul.mubr.f32.gmra.mrb[0].mxu0 %v3931
        %v4102 = vpop.f32.mrb[0].mxu0
        %v4103 = vadd.f32 0.0, %v4102
        %v4104 = vpop.f32.mrb[0].mxu0
        %4105 = vmatprep.mubr.f32.mxu0 0.0
        %4106 = vmatmul.mubr.f32.gmra.mrb[0].mxu0 %v3934
        %v4107 = vpop.f32.mrb[0].mxu0
        %v4108 = vadd.f32 0.0, %v4107
        %v4109 = vpop.f32.mrb[0].mxu0
        %4110 = vmatprep.mubr.f32.mxu0 0.0
        %4111 = vmatmul.mubr.f32.gmra.mrb[0].mxu0 %v3937
        %v4112 = vpop.f32.mrb[0].mxu0
        %v4113 = vadd.f32 0.0, %v4112
        %v4114 = vpop.f32.mrb[0].mxu0
        %4115 = vmatprep.mubr.f32.mxu0 0.0
        %4116 = vmatmul.mubr.f32.gmra.mrb[0].mxu0 %v3940
        %v4117 = vpop.f32.mrb[0].mxu0
        %v4118 = vadd.f32 0.0, %v4117
        %v4119 = vpop.f32.mrb[0].mxu0
        %4120 = vmatprep.mubr.f32.mxu0 0.0
        %4121 = vmatmul.mubr.f32.gmra.mrb[0].mxu0 %v3943
        %v4122 = vpop.f32.mrb[0].mxu0
        %v4123 = vadd.f32 0.0, %v4122
        %v4124 = vpop.f32.mrb[0].mxu0
        %4125 = vmatprep.mubr.f32.mxu0 0.0
        %4126 = vmatmul.mubr.f32.gmra.mrb[0].mxu0 %v3946
        %v4127 = vpop.f32.mrb[0].mxu0
        %v4128 = vadd.f32 0.0, %v4127
        %v4129 = vpop.f32.mrb[0].mxu0
        %4130 = vmatprep.mubr.f32.mxu0 0.0
        %4131 = vmatmul.mubr.f32.gmra.mrb[0].mxu0 %v3949
        %v4132 = vpop.f32.mrb[0].mxu0
        %v4133 = vadd.f32 0.0, %v4132
        %v4134 = vpop.f32.mrb[0].mxu0
        %4135 = vmatprep.mubr.f32.mxu0 0.0
        %4136 = vmatmul.mubr.f32.gmra.mrb[0].mxu0 %v3952
        %v4137 = vpop.f32.mrb[0].mxu0
        %v4138 = vadd.f32 0.0, %v4137
        %v4139 = vpop.f32.mrb[0].mxu0
        %4140 = vmatprep.mubr.f32.mxu0 0.0
        %4141 = vmatmul.mubr.f32.gmra.mrb[0].mxu0 %v3955
        %v4142 = vpop.f32.mrb[0].mxu0
        %v4143 = vadd.f32 0.0, %v4142
        %v4144 = vpop.f32.mrb[0].mxu0
        %4145 = vmatprep.mubr.f32.mxu0 0.0
        %4146 = vmatmul.mubr.f32.gmra.mrb[0].mxu0 %v3958
        %v4147 = vpop.f32.mrb[0].mxu0
        %v4148 = vadd.f32 0.0, %v4147
        %v4149 = vpop.f32.mrb[0].mxu0
        %4150 = vmatprep.mubr.f32.mxu0 0.0
        %4151 = vmatmul.mubr.f32.gmra.mrb[0].mxu0 %v3961
        %v4152 = vpop.f32.mrb[0].mxu0
        %v4153 = vadd.f32 0.0, %v4152
        %v4154 = vpop.f32.mrb[0].mxu0
        %4155 = vmatprep.mubr.f32.mxu0 0.0
        %4156 = vmatmul.mubr.f32.gmra.mrb[0].mxu0 %v3964
        %v4157 = vpop.f32.mrb[0].mxu0
        %v4158 = vadd.f32 0.0, %v4157
        %v4159 = vpop.f32.mrb[0].mxu0
        %4160 = vmatprep.mubr.f32.mxu0 0.0
        %4161 = vmatmul.mubr.f32.gmra.mrb[0].mxu0 %v3967
        %v4162 = vpop.f32.mrb[0].mxu0
        %v4163 = vadd.f32 0.0, %v4162
        %v4164 = vpop.f32.mrb[0].mxu0
        %4165 = vmatprep.mubr.f32.mxu0 0.0
        %4166 = vmatmul.mubr.f32.gmra.mrb[0].mxu0 %v3970
        %v4167 = vpop.f32.mrb[0].mxu0
        %v4168 = vadd.f32 0.0, %v4167
        %v4169 = vpop.f32.mrb[0].mxu0
        %4170 = vmatprep.mubr.f32.mxu0 0.0
        %4171 = vmatmul.mubr.f32.gmra.mrb[0].mxu0 %v3973
        %v4172 = vpop.f32.mrb[0].mxu0
        %v4173 = vadd.f32 0.0, %v4172
        %v4174 = vpop.f32.mrb[0].mxu0
        %4175 = vmatprep.mubr.f32.mxu0 0.0
        %4176 = vmatmul.mubr.f32.gmra.mrb[0].mxu0 %v3976
        %v4177 = vpop.f32.mrb[0].mxu0
        %v4178 = vadd.f32 0.0, %v4177
        %v4179 = vpop.f32.mrb[0].mxu0
        %4180 = vmatprep.mubr.f32.mxu0 0.0
        %4181 = vmatmul.mubr.f32.gmra.mrb[0].mxu0 %v3979
        %v4182 = vpop.f32.mrb[0].mxu0
        %v4183 = vadd.f32 0.0, %v4182
        %v4184 = vpop.f32.mrb[0].mxu0
        %4185 = vmatprep.mubr.f32.mxu0 0.0
        %4186 = vmatmul.mubr.f32.gmra.mrb[0].mxu0 %v3982
        %v4187 = vpop.f32.mrb[0].mxu0
        %v4188 = vadd.f32 0.0, %v4187
        %v4189 = vpop.f32.mrb[0].mxu0
        %4190 = vmatprep.mubr.f32.mxu0 0.0
        %4191 = vmatmul.mubr.f32.gmra.mrb[0].mxu0 %v3985
        %v4192 = vpop.f32.mrb[0].mxu0
        %v4193 = vadd.f32 0.0, %v4192
        %v4194 = vpop.f32.mrb[0].mxu0
        %4195 = vmatprep.mubr.f32.mxu0 0.0
        %4196 = vmatmul.mubr.f32.gmra.mrb[0].mxu0 %v3988
        %v4197 = vpop.f32.mrb[0].mxu0
        %v4198 = vadd.f32 0.0, %v4197
        %v4199 = vpop.f32.mrb[0].mxu0
        %4200 = vmatprep.mubr.f32.mxu0 0.0
        %4201 = vmatmul.mubr.f32.gmra.mrb[0].mxu0 %v3991
        %v4202 = vpop.f32.mrb[0].mxu0
        %v4203 = vadd.f32 0.0, %v4202
        %v4204 = vpop.f32.mrb[0].mxu0
        %4205 = vmatprep.mubr.f32.mxu0 0.0
        %4206 = vmatmul.mubr.f32.gmra.mrb[0].mxu0 %v3994
        %v4207 = vpop.f32.mrb[0].mxu0
        %v4208 = vadd.f32 0.0, %v4207
        %v4209 = vpop.f32.mrb[0].mxu0
        %4210 = vmatprep.mubr.f32.mxu0 0.0
        %4211 = vmatmul.mubr.f32.gmra.mrb[0].mxu0 %v3997
        %v4212 = vpop.f32.mrb[0].mxu0
        %v4213 = vadd.f32 0.0, %v4212
        %v4214 = vpop.f32.mrb[0].mxu0
        %4215 = vmatprep.mubr.f32.mxu0 0.0
        %4216 = vmatmul.mubr.f32.gmra.mrb[0].mxu0 %v4000
        %v4217 = vpop.f32.mrb[0].mxu0
        %v4218 = vadd.f32 0.0, %v4217
        %v4219 = vpop.f32.mrb[0].mxu0
        %4220 = vmatprep.mubr.f32.mxu0 0.0
        %4221 = vmatmul.mubr.f32.gmra.mrb[0].mxu0 %v4003
        %v4222 = vpop.f32.mrb[0].mxu0
        %v4223 = vadd.f32 0.0, %v4222
        %v4224 = vpop.f32.mrb[0].mxu0
        %4225 = vmatprep.mubr.f32.mxu0 0.0
        %4226 = vmatmul.mubr.f32.gmra.mrb[0].mxu0 %v4006
        %v4227 = vpop.f32.mrb[0].mxu0
        %v4228 = vadd.f32 0.0, %v4227
        %v4229 = vpop.f32.mrb[0].mxu0
        %4230 = vmatprep.mubr.f32.mxu0 0.0
        %4231 = vmatmul.mubr.f32.gmra.mrb[0].mxu0 %v4009
        %v4232 = vpop.f32.mrb[0].mxu0
        %v4233 = vadd.f32 0.0, %v4232
        %v4234 = vpop.f32.mrb[0].mxu0
        %4235 = vdwg.mxu0
        %v4236 = vsel %vm277, %v4078, 0.0
        %v4237 = vsel %vm277, %v4083, 0.0
        %v4238 = vadd.f32 %v4236, %v4237
        %v4239 = vsel %vm277, %v4088, 0.0
        %v4240 = vadd.f32 %v4238, %v4239
        %v4241 = vsel %vm277, %v4093, 0.0
        %v4242 = vadd.f32 %v4240, %v4241
        %v4243 = vsel %vm277, %v4098, 0.0
        %v4244 = vadd.f32 %v4242, %v4243
        %v4245 = vsel %vm277, %v4103, 0.0
        %v4246 = vadd.f32 %v4244, %v4245
        %v4247 = vsel %vm277, %v4108, 0.0
        %v4248 = vadd.f32 %v4246, %v4247
        %v4249 = vsel %vm277, %v4113, 0.0
        %v4250 = vadd.f32 %v4248, %v4249
        %v4251 = vsel %vm277, %v4118, 0.0
        %v4252 = vadd.f32 %v4250, %v4251
        %v4253 = vsel %vm277, %v4123, 0.0
        %v4254 = vadd.f32 %v4252, %v4253
        %v4255 = vsel %vm277, %v4128, 0.0
        %v4256 = vadd.f32 %v4254, %v4255
        %v4257 = vsel %vm277, %v4133, 0.0
        %v4258 = vadd.f32 %v4256, %v4257
        %v4259 = vsel %vm277, %v4138, 0.0
        %v4260 = vadd.f32 %v4258, %v4259
        %v4261 = vsel %vm277, %v4143, 0.0
        %v4262 = vadd.f32 %v4260, %v4261
        %v4263 = vsel %vm277, %v4148, 0.0
        %v4264 = vadd.f32 %v4262, %v4263
        %v4265 = vsel %vm277, %v4153, 0.0
        %v4266 = vadd.f32 %v4264, %v4265
        %v4267 = vsel %vm277, %v4158, 0.0
        %v4268 = vadd.f32 %v4266, %v4267
        %v4269 = vsel %vm277, %v4163, 0.0
        %v4270 = vadd.f32 %v4268, %v4269
        %v4271 = vsel %vm277, %v4168, 0.0
        %v4272 = vadd.f32 %v4270, %v4271
        %v4273 = vsel %vm277, %v4173, 0.0
        %v4274 = vadd.f32 %v4272, %v4273
        %v4275 = vsel %vm277, %v4178, 0.0
        %v4276 = vadd.f32 %v4274, %v4275
        %v4277 = vsel %vm277, %v4183, 0.0
        %v4278 = vadd.f32 %v4276, %v4277
        %v4279 = vsel %vm277, %v4188, 0.0
        %v4280 = vadd.f32 %v4278, %v4279
        %v4281 = vsel %vm277, %v4193, 0.0
        %v4282 = vadd.f32 %v4280, %v4281
        %v4283 = vsel %vm277, %v4198, 0.0
        %v4284 = vadd.f32 %v4282, %v4283
        %v4285 = vsel %vm277, %v4203, 0.0
        %v4286 = vadd.f32 %v4284, %v4285
        %v4287 = vsel %vm277, %v4208, 0.0
        %v4288 = vadd.f32 %v4286, %v4287
        %v4289 = vsel %vm277, %v4213, 0.0
        %v4290 = vadd.f32 %v4288, %v4289
        %v4291 = vsel %vm277, %v4218, 0.0
        %v4292 = vadd.f32 %v4290, %v4291
        %v4293 = vsel %vm277, %v4223, 0.0
        %v4294 = vadd.f32 %v4292, %v4293
        %v4295 = vsel %vm277, %v4228, 0.0
        %v4296 = vadd.f32 %v4294, %v4295
        %v4297 = vsel %vm277, %v4233, 0.0
        %v4298 = vadd.f32 %v4296, %v4297
        %4299 = vadd.xlane.f32.xlu0 %v4298
        %v4300 = vpop.xlane.xlu0 %4299
        %v4301 = vrot.slane %v4300, 4
        %v4302 = vadd.f32 %v4300, %v4301
        %v4303 = vrot.slane %v4302, 2
        %v4304 = vadd.f32 %v4302, %v4303
        %v4305 = vrot.slane %v4304, 1
        %v4306 = vadd.f32 %v4304, %v4305
        %s4307 = vtos %v4306
        %v4308 = vmul.f32 %v4078, %v4078
        %v4309 = vmul.f32 %v4083, %v4083
        %v4310 = vmul.f32 %v4088, %v4088
        %v4311 = vmul.f32 %v4093, %v4093
        %v4312 = vmul.f32 %v4098, %v4098
        %v4313 = vmul.f32 %v4103, %v4103
        %v4314 = vmul.f32 %v4108, %v4108
        %v4315 = vmul.f32 %v4113, %v4113
        %v4316 = vmul.f32 %v4118, %v4118
        %v4317 = vmul.f32 %v4123, %v4123
        %v4318 = vmul.f32 %v4128, %v4128
        %v4319 = vmul.f32 %v4133, %v4133
        %v4320 = vmul.f32 %v4138, %v4138
        %v4321 = vmul.f32 %v4143, %v4143
        %v4322 = vmul.f32 %v4148, %v4148
        %v4323 = vmul.f32 %v4153, %v4153
        %v4324 = vmul.f32 %v4158, %v4158
        %v4325 = vmul.f32 %v4163, %v4163
        %v4326 = vmul.f32 %v4168, %v4168
        %v4327 = vmul.f32 %v4173, %v4173
        %v4328 = vmul.f32 %v4178, %v4178
        %v4329 = vmul.f32 %v4183, %v4183
        %v4330 = vmul.f32 %v4188, %v4188
        %v4331 = vmul.f32 %v4193, %v4193
        %v4332 = vmul.f32 %v4198, %v4198
        %v4333 = vmul.f32 %v4203, %v4203
        %v4334 = vmul.f32 %v4208, %v4208
        %v4335 = vmul.f32 %v4213, %v4213
        %v4336 = vmul.f32 %v4218, %v4218
        %v4337 = vmul.f32 %v4223, %v4223
        %v4338 = vmul.f32 %v4228, %v4228
        %v4339 = vmul.f32 %v4233, %v4233
        %v4340 = vsel %vm277, %v4308, 0.0
        %v4341 = vsel %vm277, %v4309, 0.0
        %v4342 = vadd.f32 %v4340, %v4341
        %v4343 = vsel %vm277, %v4310, 0.0
        %v4344 = vadd.f32 %v4342, %v4343
        %v4345 = vsel %vm277, %v4311, 0.0
        %v4346 = vadd.f32 %v4344, %v4345
        %v4347 = vsel %vm277, %v4312, 0.0
        %v4348 = vadd.f32 %v4346, %v4347
        %v4349 = vsel %vm277, %v4313, 0.0
        %v4350 = vadd.f32 %v4348, %v4349
        %v4351 = vsel %vm277, %v4314, 0.0
        %v4352 = vadd.f32 %v4350, %v4351
        %v4353 = vsel %vm277, %v4315, 0.0
        %v4354 = vadd.f32 %v4352, %v4353
        %v4355 = vsel %vm277, %v4316, 0.0
        %v4356 = vadd.f32 %v4354, %v4355
        %v4357 = vsel %vm277, %v4317, 0.0
        %v4358 = vadd.f32 %v4356, %v4357
        %v4359 = vsel %vm277, %v4318, 0.0
        %v4360 = vadd.f32 %v4358, %v4359
        %v4361 = vsel %vm277, %v4319, 0.0
        %v4362 = vadd.f32 %v4360, %v4361
        %v4363 = vsel %vm277, %v4320, 0.0
        %v4364 = vadd.f32 %v4362, %v4363
        %v4365 = vsel %vm277, %v4321, 0.0
        %v4366 = vadd.f32 %v4364, %v4365
        %v4367 = vsel %vm277, %v4322, 0.0
        %v4368 = vadd.f32 %v4366, %v4367
        %v4369 = vsel %vm277, %v4323, 0.0
        %v4370 = vadd.f32 %v4368, %v4369
        %v4371 = vsel %vm277, %v4324, 0.0
        %v4372 = vadd.f32 %v4370, %v4371
        %v4373 = vsel %vm277, %v4325, 0.0
        %v4374 = vadd.f32 %v4372, %v4373
        %v4375 = vsel %vm277, %v4326, 0.0
        %v4376 = vadd.f32 %v4374, %v4375
        %v4377 = vsel %vm277, %v4327, 0.0
        %v4378 = vadd.f32 %v4376, %v4377
        %v4379 = vsel %vm277, %v4328, 0.0
        %v4380 = vadd.f32 %v4378, %v4379
        %v4381 = vsel %vm277, %v4329, 0.0
        %v4382 = vadd.f32 %v4380, %v4381
        %v4383 = vsel %vm277, %v4330, 0.0
        %v4384 = vadd.f32 %v4382, %v4383
        %v4385 = vsel %vm277, %v4331, 0.0
        %v4386 = vadd.f32 %v4384, %v4385
        %v4387 = vsel %vm277, %v4332, 0.0
        %v4388 = vadd.f32 %v4386, %v4387
        %v4389 = vsel %vm277, %v4333, 0.0
        %v4390 = vadd.f32 %v4388, %v4389
        %v4391 = vsel %vm277, %v4334, 0.0
        %v4392 = vadd.f32 %v4390, %v4391
        %v4393 = vsel %vm277, %v4335, 0.0
        %v4394 = vadd.f32 %v4392, %v4393
        %v4395 = vsel %vm277, %v4336, 0.0
        %v4396 = vadd.f32 %v4394, %v4395
        %v4397 = vsel %vm277, %v4337, 0.0
        %v4398 = vadd.f32 %v4396, %v4397
        %v4399 = vsel %vm277, %v4338, 0.0
        %v4400 = vadd.f32 %v4398, %v4399
        %v4401 = vsel %vm277, %v4339, 0.0
        %v4402 = vadd.f32 %v4400, %v4401
        %4403 = vadd.xlane.f32.xlu0 %v4402
        %v4404 = vpop.xlane.xlu0 %4403
        %v4405 = vrot.slane %v4404, 4
        %v4406 = vadd.f32 %v4404, %v4405
        %v4407 = vrot.slane %v4406, 2
        %v4408 = vadd.f32 %v4406, %v4407
        %v4409 = vrot.slane %v4408, 1
        %v4410 = vadd.f32 %v4408, %v4409
        %s4411 = vtos %v4410
        %s4412 = smul.f32 %s4307, 0.00048828125
        %s4413 = smul.f32 %s4411, 0.00048828125
        %s4414 = smul.f32 %s4412, %s4412
        %s4415 = ssub.f32 %s4413, %s4414
        %v4416 = vstv %s4412
        %v4417 = vsub.f32 %v4078, %v4416
        %v4418 = vsub.f32 %v4083, %v4416
        %v4419 = vsub.f32 %v4088, %v4416
        %v4420 = vsub.f32 %v4093, %v4416
        %v4421 = vsub.f32 %v4098, %v4416
        %v4422 = vsub.f32 %v4103, %v4416
        %v4423 = vsub.f32 %v4108, %v4416
        %v4424 = vsub.f32 %v4113, %v4416
        %v4425 = vsub.f32 %v4118, %v4416
        %v4426 = vsub.f32 %v4123, %v4416
        %v4427 = vsub.f32 %v4128, %v4416
        %v4428 = vsub.f32 %v4133, %v4416
        %v4429 = vsub.f32 %v4138, %v4416
        %v4430 = vsub.f32 %v4143, %v4416
        %v4431 = vsub.f32 %v4148, %v4416
        %v4432 = vsub.f32 %v4153, %v4416
        %v4433 = vsub.f32 %v4158, %v4416
        %v4434 = vsub.f32 %v4163, %v4416
        %v4435 = vsub.f32 %v4168, %v4416
        %v4436 = vsub.f32 %v4173, %v4416
        %v4437 = vsub.f32 %v4178, %v4416
        %v4438 = vsub.f32 %v4183, %v4416
        %v4439 = vsub.f32 %v4188, %v4416
        %v4440 = vsub.f32 %v4193, %v4416
        %v4441 = vsub.f32 %v4198, %v4416
        %v4442 = vsub.f32 %v4203, %v4416
        %v4443 = vsub.f32 %v4208, %v4416
        %v4444 = vsub.f32 %v4213, %v4416
        %v4445 = vsub.f32 %v4218, %v4416
        %v4446 = vsub.f32 %v4223, %v4416
        %v4447 = vsub.f32 %v4228, %v4416
        %v4448 = vsub.f32 %v4233, %v4416
        %s4449 = sadd.f32 %s4415, 1e-05
        %v4450 = vstv %s4449
        %v4451 = vrsqrt.pop %v4450
        %s4452 = vtos %v4451
        %v4453 = vstv %s4452
        %v4454 = vmul.f32 %v4417, %v4453
        %v4455 = vmul.f32 %v4418, %v4453
        %v4456 = vmul.f32 %v4419, %v4453
        %v4457 = vmul.f32 %v4420, %v4453
        %v4458 = vmul.f32 %v4421, %v4453
        %v4459 = vmul.f32 %v4422, %v4453
        %v4460 = vmul.f32 %v4423, %v4453
        %v4461 = vmul.f32 %v4424, %v4453
        %v4462 = vmul.f32 %v4425, %v4453
        %v4463 = vmul.f32 %v4426, %v4453
        %v4464 = vmul.f32 %v4427, %v4453
        %v4465 = vmul.f32 %v4428, %v4453
        %v4466 = vmul.f32 %v4429, %v4453
        %v4467 = vmul.f32 %v4430, %v4453
        %v4468 = vmul.f32 %v4431, %v4453
        %v4469 = vmul.f32 %v4432, %v4453
        %v4470 = vmul.f32 %v4433, %v4453
        %v4471 = vmul.f32 %v4434, %v4453
        %v4472 = vmul.f32 %v4435, %v4453
        %v4473 = vmul.f32 %v4436, %v4453
        %v4474 = vmul.f32 %v4437, %v4453
        %v4475 = vmul.f32 %v4438, %v4453
        %v4476 = vmul.f32 %v4439, %v4453
        %v4477 = vmul.f32 %v4440, %v4453
        %v4478 = vmul.f32 %v4441, %v4453
        %v4479 = vmul.f32 %v4442, %v4453
        %v4480 = vmul.f32 %v4443, %v4453
        %v4481 = vmul.f32 %v4444, %v4453
        %v4482 = vmul.f32 %v4445, %v4453
        %v4483 = vmul.f32 %v4446, %v4453
        %v4484 = vmul.f32 %v4447, %v4453
        %v4485 = vmul.f32 %v4448, %v4453
        %v4486 = vld [vmem:[%s2] sm:$0x1]
        %v4488 = vlaneseq
        %v4489 = vshrl.u32 %v4488, 7
        %v4490 = vsub.s32 0, %v4489
        %v4491 = vrot.slane %v4486, %v4490
        %v4493 = vmul.f32 %v4454, %v4491
        %v4494 = vmul.f32 %v4455, %v4491
        %v4495 = vmul.f32 %v4456, %v4491
        %v4496 = vmul.f32 %v4457, %v4491
        %v4497 = vmul.f32 %v4458, %v4491
        %v4498 = vmul.f32 %v4459, %v4491
        %v4499 = vmul.f32 %v4460, %v4491
        %v4500 = vmul.f32 %v4461, %v4491
        %v4501 = vmul.f32 %v4462, %v4491
        %v4502 = vmul.f32 %v4463, %v4491
        %v4503 = vmul.f32 %v4464, %v4491
        %v4504 = vmul.f32 %v4465, %v4491
        %v4505 = vmul.f32 %v4466, %v4491
        %v4506 = vmul.f32 %v4467, %v4491
        %v4507 = vmul.f32 %v4468, %v4491
        %v4508 = vmul.f32 %v4469, %v4491
        %v4509 = vmul.f32 %v4470, %v4491
        %v4510 = vmul.f32 %v4471, %v4491
        %v4511 = vmul.f32 %v4472, %v4491
        %v4512 = vmul.f32 %v4473, %v4491
        %v4513 = vmul.f32 %v4474, %v4491
        %v4514 = vmul.f32 %v4475, %v4491
        %v4515 = vmul.f32 %v4476, %v4491
        %v4516 = vmul.f32 %v4477, %v4491
        %v4517 = vmul.f32 %v4478, %v4491
        %v4518 = vmul.f32 %v4479, %v4491
        %v4519 = vmul.f32 %v4480, %v4491
        %v4520 = vmul.f32 %v4481, %v4491
        %v4521 = vmul.f32 %v4482, %v4491
        %v4522 = vmul.f32 %v4483, %v4491
        %v4523 = vmul.f32 %v4484, %v4491
        %v4524 = vmul.f32 %v4485, %v4491
        %v4525 = vld [vmem:[%s3] sm:$0x1]
        %v4527 = vlaneseq
        %v4528 = vshrl.u32 %v4527, 7
        %v4529 = vsub.s32 0, %v4528
        %v4530 = vrot.slane %v4525, %v4529
        %v4532 = vadd.f32 %v4493, %v4530
        %v4533 = vadd.f32 %v4494, %v4530
        %v4534 = vadd.f32 %v4495, %v4530
        %v4535 = vadd.f32 %v4496, %v4530
        %v4536 = vadd.f32 %v4497, %v4530
        %v4537 = vadd.f32 %v4498, %v4530
        %v4538 = vadd.f32 %v4499, %v4530
        %v4539 = vadd.f32 %v4500, %v4530
        %v4540 = vadd.f32 %v4501, %v4530
        %v4541 = vadd.f32 %v4502, %v4530
        %v4542 = vadd.f32 %v4503, %v4530
        %v4543 = vadd.f32 %v4504, %v4530
        %v4544 = vadd.f32 %v4505, %v4530
        %v4545 = vadd.f32 %v4506, %v4530
        %v4546 = vadd.f32 %v4507, %v4530
        %v4547 = vadd.f32 %v4508, %v4530
        %v4548 = vadd.f32 %v4509, %v4530
        %v4549 = vadd.f32 %v4510, %v4530
        %v4550 = vadd.f32 %v4511, %v4530
        %v4551 = vadd.f32 %v4512, %v4530
        %v4552 = vadd.f32 %v4513, %v4530
        %v4553 = vadd.f32 %v4514, %v4530
        %v4554 = vadd.f32 %v4515, %v4530
        %v4555 = vadd.f32 %v4516, %v4530
        %v4556 = vadd.f32 %v4517, %v4530
        %v4557 = vadd.f32 %v4518, %v4530
        %v4558 = vadd.f32 %v4519, %v4530
        %v4559 = vadd.f32 %v4520, %v4530
        %v4560 = vadd.f32 %v4521, %v4530
        %v4561 = vadd.f32 %v4522, %v4530
        %v4562 = vadd.f32 %v4523, %v4530
        %v4563 = vadd.f32 %v4524, %v4530
        %4564 = vst.msk [vmem:[%s365 + $0x1] sm:$0xff] %vm277, %v4532
        %4565 = vst.msk [vmem:[%s365 + $0x9] sm:$0xff] %vm277, %v4533
        %4566 = vst.msk [vmem:[%s365 + $0x19] sm:$0xff] %vm277, %v4534
        %4567 = vst.msk [vmem:[%s365 + $0x21] sm:$0xff] %vm277, %v4535
        %4568 = vst.msk [vmem:[%s365 + $0x31] sm:$0xff] %vm277, %v4536
        %4569 = vst.msk [vmem:[%s365 + $0x39] sm:$0xff] %vm277, %v4537
        %4570 = vst.msk [vmem:[%s365 + $0x49] sm:$0xff] %vm277, %v4538
        %4571 = vst.msk [vmem:[%s365 + $0x51] sm:$0xff] %vm277, %v4539
        %4572 = vst.msk [vmem:[%s365 + $0x61] sm:$0xff] %vm277, %v4540
        %4573 = vst.msk [vmem:[%s365 + $0x69] sm:$0xff] %vm277, %v4541
        %4574 = vst.msk [vmem:[%s365 + $0x79] sm:$0xff] %vm277, %v4542
        %4575 = vst.msk [vmem:[%s365 + $0x81] sm:$0xff] %vm277, %v4543
        %4576 = vst.msk [vmem:[%s365 + $0x91] sm:$0xff] %vm277, %v4544
        %4577 = vst.msk [vmem:[%s365 + $0x99] sm:$0xff] %vm277, %v4545
        %4578 = vst.msk [vmem:[%s365 + $0xa9] sm:$0xff] %vm277, %v4546
        %4579 = vst.msk [vmem:[%s365 + $0xb1] sm:$0xff] %vm277, %v4547
        %4580 = vst.msk [vmem:[%s365 + $0xc1] sm:$0xff] %vm277, %v4548
        %4581 = vst.msk [vmem:[%s365 + $0xc9] sm:$0xff] %vm277, %v4549
        %4582 = vst.msk [vmem:[%s365 + $0xd9] sm:$0xff] %vm277, %v4550
        %4583 = vst.msk [vmem:[%s365 + $0xe1] sm:$0xff] %vm277, %v4551
        %4584 = vst.msk [vmem:[%s365 + $0xf1] sm:$0xff] %vm277, %v4552
        %4585 = vst.msk [vmem:[%s365 + $0xf9] sm:$0xff] %vm277, %v4553
        %4586 = vst.msk [vmem:[%s365 + $0x109] sm:$0xff] %vm277, %v4554
        %4587 = vst.msk [vmem:[%s365 + $0x111] sm:$0xff] %vm277, %v4555
        %4588 = vst.msk [vmem:[%s365 + $0x121] sm:$0xff] %vm277, %v4556
        %4589 = vst.msk [vmem:[%s365 + $0x129] sm:$0xff] %vm277, %v4557
        %4590 = vst.msk [vmem:[%s365 + $0x139] sm:$0xff] %vm277, %v4558
        %4591 = vst.msk [vmem:[%s365 + $0x141] sm:$0xff] %vm277, %v4559
        %4592 = vst.msk [vmem:[%s365 + $0x151] sm:$0xff] %vm277, %v4560
        %4593 = vst.msk [vmem:[%s365 + $0x159] sm:$0xff] %vm277, %v4561
        %4594 = vst.msk [vmem:[%s365 + $0x169] sm:$0xff] %vm277, %v4562
        %4595 = vst.msk [vmem:[%s365 + $0x171] sm:$0xff] %vm277, %v4563
        %v4596 = vld [vmem:[#allocation2] ss:$2 sm:$0xff]
        %s4597 = scalar_lea.vmem [#allocation2], 48
        %v4598 = vld [vmem:[%s4597] ss:$2 sm:$0xff]
        %s4599 = scalar_lea.vmem [#allocation2], 96
        %v4600 = vld [vmem:[%s4599] ss:$2 sm:$0xff]
        %s4601 = scalar_lea.vmem [#allocation2], 144
        %v4602 = vld [vmem:[%s4601] ss:$2 sm:$0xff]
        %s4603 = scalar_lea.vmem [#allocation2], 192
        %v4604 = vld [vmem:[%s4603] ss:$2 sm:$0xff]
        %s4605 = scalar_lea.vmem [#allocation2], 240
        %v4606 = vld [vmem:[%s4605] ss:$2 sm:$0xff]
        %s4607 = scalar_lea.vmem [#allocation2], 288
        %v4608 = vld [vmem:[%s4607] ss:$2 sm:$0xff]
        %s4609 = scalar_lea.vmem [#allocation2], 336
        %v4610 = vld [vmem:[%s4609] ss:$2 sm:$0xff]
        %s4611 = scalar_lea.vmem [#allocation2], 1
        %v4612 = vld [vmem:[%s4611] ss:$2 sm:$0xff]
        %s4613 = scalar_lea.vmem [#allocation2], 49
        %v4614 = vld [vmem:[%s4613] ss:$2 sm:$0xff]
        %s4615 = scalar_lea.vmem [#allocation2], 97
        %v4616 = vld [vmem:[%s4615] ss:$2 sm:$0xff]
        %s4617 = scalar_lea.vmem [#allocation2], 145
        %v4618 = vld [vmem:[%s4617] ss:$2 sm:$0xff]
        %s4619 = scalar_lea.vmem [#allocation2], 193
        %v4620 = vld [vmem:[%s4619] ss:$2 sm:$0xff]
        %s4621 = scalar_lea.vmem [#allocation2], 241
        %v4622 = vld [vmem:[%s4621] ss:$2 sm:$0xff]
        %s4623 = scalar_lea.vmem [#allocation2], 289
        %v4624 = vld [vmem:[%s4623] ss:$2 sm:$0xff]
        %s4625 = scalar_lea.vmem [#allocation2], 337
        %v4626 = vld [vmem:[%s4625] ss:$2 sm:$0xff]
        %s4627 = scalar_lea.vmem [#allocation2], 2
        %v4628 = vld [vmem:[%s4627] ss:$2 sm:$0xff]
        %s4629 = scalar_lea.vmem [#allocation2], 50
        %v4630 = vld [vmem:[%s4629] ss:$2 sm:$0xff]
        %s4631 = scalar_lea.vmem [#allocation2], 98
        %v4632 = vld [vmem:[%s4631] ss:$2 sm:$0xff]
        %s4633 = scalar_lea.vmem [#allocation2], 146
        %v4634 = vld [vmem:[%s4633] ss:$2 sm:$0xff]
        %s4635 = scalar_lea.vmem [#allocation2], 194
        %v4636 = vld [vmem:[%s4635] ss:$2 sm:$0xff]
        %s4637 = scalar_lea.vmem [#allocation2], 242
        %v4638 = vld [vmem:[%s4637] ss:$2 sm:$0xff]
        %s4639 = scalar_lea.vmem [#allocation2], 290
        %v4640 = vld [vmem:[%s4639] ss:$2 sm:$0xff]
        %s4641 = scalar_lea.vmem [#allocation2], 338
        %v4642 = vld [vmem:[%s4641] ss:$2 sm:$0xff]
        %v4643 = vld [vmem:[%s365] ss:$2 sm:$0xff]
        %s4644 = scalar_lea.vmem %s365, 48 [#allocation2]
        %v4645 = vld [vmem:[%s4644] ss:$2 sm:$0xff]
        %s4646 = scalar_lea.vmem %s365, 96 [#allocation2]
        %v4647 = vld [vmem:[%s4646] ss:$2 sm:$0xff]
        %s4648 = scalar_lea.vmem %s365, 144 [#allocation2]
        %v4649 = vld [vmem:[%s4648] ss:$2 sm:$0xff]
        %s4650 = scalar_lea.vmem %s365, 192 [#allocation2]
        %v4651 = vld [vmem:[%s4650] ss:$2 sm:$0xff]
        %s4652 = scalar_lea.vmem %s365, 240 [#allocation2]
        %v4653 = vld [vmem:[%s4652] ss:$2 sm:$0xff]
        %s4654 = scalar_lea.vmem %s365, 288 [#allocation2]
        %v4655 = vld [vmem:[%s4654] ss:$2 sm:$0xff]
        %s4656 = scalar_lea.vmem %s365, 336 [#allocation2]
        %v4657 = vld [vmem:[%s4656] ss:$2 sm:$0xff]
        %s4658 = scalar_lea.vmem %s365, 1 [#allocation2]
        %v4659 = vld [vmem:[%s4658] ss:$2 sm:$0xff]
        %s4660 = scalar_lea.vmem %s365, 49 [#allocation2]
        %v4661 = vld [vmem:[%s4660] ss:$2 sm:$0xff]
        %s4662 = scalar_lea.vmem %s365, 97 [#allocation2]
        %v4663 = vld [vmem:[%s4662] ss:$2 sm:$0xff]
        %s4664 = scalar_lea.vmem %s365, 145 [#allocation2]
        %v4665 = vld [vmem:[%s4664] ss:$2 sm:$0xff]
        %s4666 = scalar_lea.vmem %s365, 193 [#allocation2]
        %v4667 = vld [vmem:[%s4666] ss:$2 sm:$0xff]
        %s4668 = scalar_lea.vmem %s365, 241 [#allocation2]
        %v4669 = vld [vmem:[%s4668] ss:$2 sm:$0xff]
        %s4670 = scalar_lea.vmem %s365, 289 [#allocation2]
        %v4671 = vld [vmem:[%s4670] ss:$2 sm:$0xff]
        %s4672 = scalar_lea.vmem %s365, 337 [#allocation2]
        %v4673 = vld [vmem:[%s4672] ss:$2 sm:$0xff]
        %s4674 = scalar_lea.vmem %s365, 2 [#allocation2]
        %v4675 = vld [vmem:[%s4674] ss:$2 sm:$0xff]
        %s4676 = scalar_lea.vmem %s365, 50 [#allocation2]
        %v4677 = vld [vmem:[%s4676] ss:$2 sm:$0xff]
        %s4678 = scalar_lea.vmem %s365, 98 [#allocation2]
        %v4679 = vld [vmem:[%s4678] ss:$2 sm:$0xff]
        %s4680 = scalar_lea.vmem %s365, 146 [#allocation2]
        %v4681 = vld [vmem:[%s4680] ss:$2 sm:$0xff]
        %s4682 = scalar_lea.vmem %s365, 194 [#allocation2]
        %v4683 = vld [vmem:[%s4682] ss:$2 sm:$0xff]
        %s4684 = scalar_lea.vmem %s365, 242 [#allocation2]
        %v4685 = vld [vmem:[%s4684] ss:$2 sm:$0xff]
        %s4686 = scalar_lea.vmem %s365, 290 [#allocation2]
        %v4687 = vld [vmem:[%s4686] ss:$2 sm:$0xff]
        %s4688 = scalar_lea.vmem %s365, 338 [#allocation2]
        %v4689 = vld [vmem:[%s4688] ss:$2 sm:$0xff]
        %v4690 = vld [vmem:[%s590] ss:$2 sm:$0xff]
        %s4691 = scalar_lea.vmem %s590, 48 [#allocation2]
        %v4692 = vld [vmem:[%s4691] ss:$2 sm:$0xff]
        %s4693 = scalar_lea.vmem %s590, 96 [#allocation2]
        %v4694 = vld [vmem:[%s4693] ss:$2 sm:$0xff]
        %s4695 = scalar_lea.vmem %s590, 144 [#allocation2]
        %v4696 = vld [vmem:[%s4695] ss:$2 sm:$0xff]
        %s4697 = scalar_lea.vmem %s590, 192 [#allocation2]
        %v4698 = vld [vmem:[%s4697] ss:$2 sm:$0xff]
        %s4699 = scalar_lea.vmem %s590, 240 [#allocation2]
        %v4700 = vld [vmem:[%s4699] ss:$2 sm:$0xff]
        %s4701 = scalar_lea.vmem %s590, 288 [#allocation2]
        %v4702 = vld [vmem:[%s4701] ss:$2 sm:$0xff]
        %s4703 = scalar_lea.vmem %s590, 336 [#allocation2]
        %v4704 = vld [vmem:[%s4703] ss:$2 sm:$0xff]
        %s4705 = scalar_lea.vmem %s590, 1 [#allocation2]
        %v4706 = vld [vmem:[%s4705] ss:$2 sm:$0xff]
        %s4707 = scalar_lea.vmem %s590, 49 [#allocation2]
        %v4708 = vld [vmem:[%s4707] ss:$2 sm:$0xff]
        %s4709 = scalar_lea.vmem %s590, 97 [#allocation2]
        %v4710 = vld [vmem:[%s4709] ss:$2 sm:$0xff]
        %s4711 = scalar_lea.vmem %s590, 145 [#allocation2]
        %v4712 = vld [vmem:[%s4711] ss:$2 sm:$0xff]
        %s4713 = scalar_lea.vmem %s590, 193 [#allocation2]
        %v4714 = vld [vmem:[%s4713] ss:$2 sm:$0xff]
        %s4715 = scalar_lea.vmem %s590, 241 [#allocation2]
        %v4716 = vld [vmem:[%s4715] ss:$2 sm:$0xff]
        %s4717 = scalar_lea.vmem %s590, 289 [#allocation2]
        %v4718 = vld [vmem:[%s4717] ss:$2 sm:$0xff]
        %s4719 = scalar_lea.vmem %s590, 337 [#allocation2]
        %v4720 = vld [vmem:[%s4719] ss:$2 sm:$0xff]
        %s4721 = scalar_lea.vmem %s590, 2 [#allocation2]
        %v4722 = vld [vmem:[%s4721] ss:$2 sm:$0xff]
        %s4723 = scalar_lea.vmem %s590, 50 [#allocation2]
        %v4724 = vld [vmem:[%s4723] ss:$2 sm:$0xff]
        %s4725 = scalar_lea.vmem %s590, 98 [#allocation2]
        %v4726 = vld [vmem:[%s4725] ss:$2 sm:$0xff]
        %s4727 = scalar_lea.vmem %s590, 146 [#allocation2]
        %v4728 = vld [vmem:[%s4727] ss:$2 sm:$0xff]
        %s4729 = scalar_lea.vmem %s590, 194 [#allocation2]
        %v4730 = vld [vmem:[%s4729] ss:$2 sm:$0xff]
        %s4731 = scalar_lea.vmem %s590, 242 [#allocation2]
        %v4732 = vld [vmem:[%s4731] ss:$2 sm:$0xff]
        %s4733 = scalar_lea.vmem %s590, 290 [#allocation2]
        %v4734 = vld [vmem:[%s4733] ss:$2 sm:$0xff]
        %s4735 = scalar_lea.vmem %s590, 338 [#allocation2]
        %v4736 = vld [vmem:[%s4735] ss:$2 sm:$0xff]
        %4745 = vrot.lane.b32.xlu0 %v4612, 8
        %v4746 = vpop.permute.xlu0 %4745
        %4747 = vrot.lane.b32.xlu0 %v4614, 8
        %v4748 = vpop.permute.xlu0 %4747
        %4749 = vrot.lane.b32.xlu0 %v4616, 8
        %v4750 = vpop.permute.xlu0 %4749
        %4751 = vrot.lane.b32.xlu0 %v4618, 8
        %v4752 = vpop.permute.xlu0 %4751
        %4753 = vrot.lane.b32.xlu0 %v4620, 8
        %v4754 = vpop.permute.xlu0 %4753
        %4755 = vrot.lane.b32.xlu0 %v4622, 8
        %v4756 = vpop.permute.xlu0 %4755
        %4757 = vrot.lane.b32.xlu0 %v4624, 8
        %v4758 = vpop.permute.xlu0 %4757
        %4759 = vrot.lane.b32.xlu0 %v4626, 8
        %v4760 = vpop.permute.xlu0 %4759
        %4777 = vrot.lane.b32.xlu0 %v4628, 16
        %v4778 = vpop.permute.xlu0 %4777
        %4779 = vrot.lane.b32.xlu0 %v4630, 16
        %v4780 = vpop.permute.xlu0 %4779
        %4781 = vrot.lane.b32.xlu0 %v4632, 16
        %v4782 = vpop.permute.xlu0 %4781
        %4783 = vrot.lane.b32.xlu0 %v4634, 16
        %v4784 = vpop.permute.xlu0 %4783
        %4785 = vrot.lane.b32.xlu0 %v4636, 16
        %v4786 = vpop.permute.xlu0 %4785
        %4787 = vrot.lane.b32.xlu0 %v4638, 16
        %v4788 = vpop.permute.xlu0 %4787
        %4789 = vrot.lane.b32.xlu0 %v4640, 16
        %v4790 = vpop.permute.xlu0 %4789
        %4791 = vrot.lane.b32.xlu0 %v4642, 16
        %v4792 = vpop.permute.xlu0 %4791
        %4809 = vrot.lane.b32.xlu0 %v4643, 24
        %v4810 = vpop.permute.xlu0 %4809
        %4811 = vrot.lane.b32.xlu0 %v4645, 24
        %v4812 = vpop.permute.xlu0 %4811
        %4813 = vrot.lane.b32.xlu0 %v4647, 24
        %v4814 = vpop.permute.xlu0 %4813
        %4815 = vrot.lane.b32.xlu0 %v4649, 24
        %v4816 = vpop.permute.xlu0 %4815
        %4817 = vrot.lane.b32.xlu0 %v4651, 24
        %v4818 = vpop.permute.xlu0 %4817
        %4819 = vrot.lane.b32.xlu0 %v4653, 24
        %v4820 = vpop.permute.xlu0 %4819
        %4821 = vrot.lane.b32.xlu0 %v4655, 24
        %v4822 = vpop.permute.xlu0 %4821
        %4823 = vrot.lane.b32.xlu0 %v4657, 24
        %v4824 = vpop.permute.xlu0 %4823
        %4841 = vrot.lane.b32.xlu0 %v4659, 32
        %v4842 = vpop.permute.xlu0 %4841
        %4843 = vrot.lane.b32.xlu0 %v4661, 32
        %v4844 = vpop.permute.xlu0 %4843
        %4845 = vrot.lane.b32.xlu0 %v4663, 32
        %v4846 = vpop.permute.xlu0 %4845
        %4847 = vrot.lane.b32.xlu0 %v4665, 32
        %v4848 = vpop.permute.xlu0 %4847
        %4849 = vrot.lane.b32.xlu0 %v4667, 32
        %v4850 = vpop.permute.xlu0 %4849
        %4851 = vrot.lane.b32.xlu0 %v4669, 32
        %v4852 = vpop.permute.xlu0 %4851
        %4853 = vrot.lane.b32.xlu0 %v4671, 32
        %v4854 = vpop.permute.xlu0 %4853
        %4855 = vrot.lane.b32.xlu0 %v4673, 32
        %v4856 = vpop.permute.xlu0 %4855
        %4873 = vrot.lane.b32.xlu0 %v4675, 40
        %v4874 = vpop.permute.xlu0 %4873
        %4875 = vrot.lane.b32.xlu0 %v4677, 40
        %v4876 = vpop.permute.xlu0 %4875
        %4877 = vrot.lane.b32.xlu0 %v4679, 40
        %v4878 = vpop.permute.xlu0 %4877
        %4879 = vrot.lane.b32.xlu0 %v4681, 40
        %v4880 = vpop.permute.xlu0 %4879
        %4881 = vrot.lane.b32.xlu0 %v4683, 40
        %v4882 = vpop.permute.xlu0 %4881
        %4883 = vrot.lane.b32.xlu0 %v4685, 40
        %v4884 = vpop.permute.xlu0 %4883
        %4885 = vrot.lane.b32.xlu0 %v4687, 40
        %v4886 = vpop.permute.xlu0 %4885
        %4887 = vrot.lane.b32.xlu0 %v4689, 40
        %v4888 = vpop.permute.xlu0 %4887
        %4905 = vrot.lane.b32.xlu0 %v4690, 48
        %v4906 = vpop.permute.xlu0 %4905
        %4907 = vrot.lane.b32.xlu0 %v4692, 48
        %v4908 = vpop.permute.xlu0 %4907
        %4909 = vrot.lane.b32.xlu0 %v4694, 48
        %v4910 = vpop.permute.xlu0 %4909
        %4911 = vrot.lane.b32.xlu0 %v4696, 48
        %v4912 = vpop.permute.xlu0 %4911
        %4913 = vrot.lane.b32.xlu0 %v4698, 48
        %v4914 = vpop.permute.xlu0 %4913
        %4915 = vrot.lane.b32.xlu0 %v4700, 48
        %v4916 = vpop.permute.xlu0 %4915
        %4917 = vrot.lane.b32.xlu0 %v4702, 48
        %v4918 = vpop.permute.xlu0 %4917
        %4919 = vrot.lane.b32.xlu0 %v4704, 48
        %v4920 = vpop.permute.xlu0 %4919
        %4937 = vrot.lane.b32.xlu0 %v4706, 56
        %v4938 = vpop.permute.xlu0 %4937
        %4939 = vrot.lane.b32.xlu0 %v4708, 56
        %v4940 = vpop.permute.xlu0 %4939
        %4941 = vrot.lane.b32.xlu0 %v4710, 56
        %v4942 = vpop.permute.xlu0 %4941
        %4943 = vrot.lane.b32.xlu0 %v4712, 56
        %v4944 = vpop.permute.xlu0 %4943
        %4945 = vrot.lane.b32.xlu0 %v4714, 56
        %v4946 = vpop.permute.xlu0 %4945
        %4947 = vrot.lane.b32.xlu0 %v4716, 56
        %v4948 = vpop.permute.xlu0 %4947
        %4949 = vrot.lane.b32.xlu0 %v4718, 56
        %v4950 = vpop.permute.xlu0 %4949
        %4951 = vrot.lane.b32.xlu0 %v4720, 56
        %v4952 = vpop.permute.xlu0 %4951
        %4969 = vrot.lane.b32.xlu0 %v4722, 64
        %v4970 = vpop.permute.xlu0 %4969
        %4971 = vrot.lane.b32.xlu0 %v4724, 64
        %v4972 = vpop.permute.xlu0 %4971
        %4973 = vrot.lane.b32.xlu0 %v4726, 64
        %v4974 = vpop.permute.xlu0 %4973
        %4975 = vrot.lane.b32.xlu0 %v4728, 64
        %v4976 = vpop.permute.xlu0 %4975
        %4977 = vrot.lane.b32.xlu0 %v4730, 64
        %v4978 = vpop.permute.xlu0 %4977
        %4979 = vrot.lane.b32.xlu0 %v4732, 64
        %v4980 = vpop.permute.xlu0 %4979
        %4981 = vrot.lane.b32.xlu0 %v4734, 64
        %v4982 = vpop.permute.xlu0 %4981
        %4983 = vrot.lane.b32.xlu0 %v4736, 64
        %v4984 = vpop.permute.xlu0 %4983
        %v4993 = vsel %vm277, %v4596, %v4746
        %v4994 = vsel %vm277, %v4598, %v4748
        %v4995 = vsel %vm277, %v4600, %v4750
        %v4996 = vsel %vm277, %v4602, %v4752
        %v4997 = vsel %vm277, %v4604, %v4754
        %v4998 = vsel %vm277, %v4606, %v4756
        %v4999 = vsel %vm277, %v4608, %v4758
        %v5000 = vsel %vm277, %v4610, %v4760
        %v5001 = vsel %vm1743, %v4993, %v4778
        %v5002 = vsel %vm1743, %v4994, %v4780
        %v5003 = vsel %vm1743, %v4995, %v4782
        %v5004 = vsel %vm1743, %v4996, %v4784
        %v5005 = vsel %vm1743, %v4997, %v4786
        %v5006 = vsel %vm1743, %v4998, %v4788
        %v5007 = vsel %vm1743, %v4999, %v4790
        %v5008 = vsel %vm1743, %v5000, %v4792
        %v5009 = vsel %vm1776, %v5001, %v4810
        %v5010 = vsel %vm1776, %v5002, %v4812
        %v5011 = vsel %vm1776, %v5003, %v4814
        %v5012 = vsel %vm1776, %v5004, %v4816
        %v5013 = vsel %vm1776, %v5005, %v4818
        %v5014 = vsel %vm1776, %v5006, %v4820
        %v5015 = vsel %vm1776, %v5007, %v4822
        %v5016 = vsel %vm1776, %v5008, %v4824
        %v5017 = vsel %vm1809, %v5009, %v4842
        %v5018 = vsel %vm1809, %v5010, %v4844
        %v5019 = vsel %vm1809, %v5011, %v4846
        %v5020 = vsel %vm1809, %v5012, %v4848
        %v5021 = vsel %vm1809, %v5013, %v4850
        %v5022 = vsel %vm1809, %v5014, %v4852
        %v5023 = vsel %vm1809, %v5015, %v4854
        %v5024 = vsel %vm1809, %v5016, %v4856
        %v5025 = vsel %vm1842, %v5017, %v4874
        %v5026 = vsel %vm1842, %v5018, %v4876
        %v5027 = vsel %vm1842, %v5019, %v4878
        %v5028 = vsel %vm1842, %v5020, %v4880
        %v5029 = vsel %vm1842, %v5021, %v4882
        %v5030 = vsel %vm1842, %v5022, %v4884
        %v5031 = vsel %vm1842, %v5023, %v4886
        %v5032 = vsel %vm1842, %v5024, %v4888
        %v5033 = vsel %vm1875, %v5025, %v4906
        %v5034 = vsel %vm1875, %v5026, %v4908
        %v5035 = vsel %vm1875, %v5027, %v4910
        %v5036 = vsel %vm1875, %v5028, %v4912
        %v5037 = vsel %vm1875, %v5029, %v4914
        %v5038 = vsel %vm1875, %v5030, %v4916
        %v5039 = vsel %vm1875, %v5031, %v4918
        %v5040 = vsel %vm1875, %v5032, %v4920
        %v5041 = vsel %vm1908, %v5033, %v4938
        %v5042 = vsel %vm1908, %v5034, %v4940
        %v5043 = vsel %vm1908, %v5035, %v4942
        %v5044 = vsel %vm1908, %v5036, %v4944
        %v5045 = vsel %vm1908, %v5037, %v4946
        %v5046 = vsel %vm1908, %v5038, %v4948
        %v5047 = vsel %vm1908, %v5039, %v4950
        %v5048 = vsel %vm1908, %v5040, %v4952
        %v5049 = vsel %vm1941, %v5041, %v4970
        %v5050 = vsel %vm1941, %v5042, %v4972
        %v5051 = vsel %vm1941, %v5043, %v4974
        %v5052 = vsel %vm1941, %v5044, %v4976
        %v5053 = vsel %vm1941, %v5045, %v4978
        %v5054 = vsel %vm1941, %v5046, %v4980
        %v5055 = vsel %vm1941, %v5047, %v4982
        %v5056 = vsel %vm1941, %v5048, %v4984
        %v5057 = vld [vmem:[%s4] sm:$0xff]
        %v5058 = vld [vmem:[%s4 + $0x8] sm:$0xff]
        %v5059 = vld [vmem:[%s4 + $0x10] sm:$0xff]
        %v5060 = vld [vmem:[%s4 + $0x18] sm:$0xff]
        %v5061 = vld [vmem:[%s4 + $0x20] sm:$0xff]
        %v5062 = vld [vmem:[%s4 + $0x28] sm:$0xff]
        %v5063 = vld [vmem:[%s4 + $0x30] sm:$0xff]
        %v5064 = vld [vmem:[%s4 + $0x38] sm:$0xff]
        %v5065 = vld [vmem:[%s4 + $0x40] sm:$0xff]
        %v5067 = vsel %vm1983, %v5049, 0
        %v5070 = vsel %vm1983, %v5050, 0
        %v5073 = vsel %vm1983, %v5051, 0
        %v5076 = vsel %vm1983, %v5052, 0
        %v5079 = vsel %vm1983, %v5053, 0
        %v5082 = vsel %vm1983, %v5054, 0
        %v5085 = vsel %vm1983, %v5055, 0
        %v5088 = vsel %vm1983, %v5056, 0
        %5090 = vmatprep.subr.mxu0 0.0
        %5091 = vmatpush1.msra.mxu0 %v5057
        %5092 = vmatprep.subr.mxu0 0.0
        %5093 = vmatpush1.msra.mxu0 %v5058
        %5094 = vmatprep.subr.mxu0 0.0
        %5095 = vmatpush1.msra.mxu0 %v5059
        %5096 = vmatprep.subr.mxu0 0.0
        %5097 = vmatpush1.msra.mxu0 %v5060
        %5098 = vmatprep.subr.mxu0 0.0
        %5099 = vmatpush1.msra.mxu0 %v5061
        %5100 = vmatprep.subr.mxu0 0.0
        %5101 = vmatpush1.msra.mxu0 %v5062
        %5102 = vmatprep.subr.mxu0 0.0
        %5103 = vmatpush1.msra.mxu0 %v5063
        %5104 = vmatprep.subr.mxu0 0.0
        %5105 = vmatpush1.msra.mxu0 %v5064
        %5106 = vmatprep.subr.mxu0 0.0
        %5107 = vmatpush1.msra.mxu0 %v5065
        %5108 = vmatprep.subr.mxu0 0.0
        %5109 = vmatpush1.msra.mxu0 0.0
        %5110 = vmatprep.subr.mxu0 0.0
        %5111 = vmatpush1.msra.mxu0 0.0
        %5112 = vmatprep.subr.mxu0 0.0
        %5113 = vmatpush1.msra.mxu0 0.0
        %5114 = vmatprep.subr.mxu0 0.0
        %5115 = vmatpush1.msra.mxu0 0.0
        %5116 = vmatprep.subr.mxu0 0.0
        %5117 = vmatpush1.msra.mxu0 0.0
        %5118 = vmatprep.subr.mxu0 0.0
        %5119 = vmatpush1.msra.mxu0 0.0
        %5120 = vmatprep.subr.mxu0 0.0
        %5121 = vmatpush1.msra.mxu0 0.0
        %5122 = vmatprep.subr.mxu0 0.0
        %5123 = vmatpush1.msra.mxu0 0.0
        %5124 = vmatprep.subr.mxu0 0.0
        %5125 = vmatpush1.msra.mxu0 0.0
        %5126 = vmatprep.subr.mxu0 0.0
        %5127 = vmatpush1.msra.mxu0 0.0
        %5128 = vmatprep.subr.mxu0 0.0
        %5129 = vmatpush1.msra.mxu0 0.0
        %5130 = vmatprep.subr.mxu0 0.0
        %5131 = vmatpush1.msra.mxu0 0.0
        %5132 = vmatprep.subr.mxu0 0.0
        %5133 = vmatpush1.msra.mxu0 0.0
        %5134 = vmatprep.subr.mxu0 0.0
        %5135 = vmatpush1.msra.mxu0 0.0
        %5136 = vmatprep.subr.mxu0 0.0
        %5137 = vmatpush1.msra.mxu0 0.0
        %5138 = vmatprep.subr.mxu0 0.0
        %5139 = vmatpush1.msra.mxu0 0.0
        %5140 = vmatprep.subr.mxu0 0.0
        %5141 = vmatpush1.msra.mxu0 0.0
        %5142 = vmatprep.subr.mxu0 0.0
        %5143 = vmatpush1.msra.mxu0 0.0
        %5144 = vmatprep.subr.mxu0 0.0
        %5145 = vmatpush1.msra.mxu0 0.0
        %5146 = vmatprep.subr.mxu0 0.0
        %5147 = vmatpush1.msra.mxu0 0.0
        %5148 = vmatprep.subr.mxu0 0.0
        %5149 = vmatpush1.msra.mxu0 0.0
        %5150 = vmatprep.subr.mxu0 0.0
        %5151 = vmatpush1.msra.mxu0 0.0
        %5152 = vmatprep.subr.mxu0 0.0
        %5153 = vmatpush1.msra.mxu0 0.0
        %5154 = vmatprep.mubr.f32.mxu0 0.0
        %5155 = vmatmul.mubr.f32.gmra.mrb[0].mxu0 %v5067
        %v5156 = vpop.f32.mrb[0].mxu0
        %v5157 = vadd.f32 0.0, %v5156
        %v5158 = vpop.f32.mrb[0].mxu0
        %5159 = vmatprep.mubr.f32.mxu0 0.0
        %5160 = vmatmul.mubr.f32.gmra.mrb[0].mxu0 %v5070
        %v5161 = vpop.f32.mrb[0].mxu0
        %v5162 = vadd.f32 0.0, %v5161
        %v5163 = vpop.f32.mrb[0].mxu0
        %5164 = vmatprep.mubr.f32.mxu0 0.0
        %5165 = vmatmul.mubr.f32.gmra.mrb[0].mxu0 %v5073
        %v5166 = vpop.f32.mrb[0].mxu0
        %v5167 = vadd.f32 0.0, %v5166
        %v5168 = vpop.f32.mrb[0].mxu0
        %5169 = vmatprep.mubr.f32.mxu0 0.0
        %5170 = vmatmul.mubr.f32.gmra.mrb[0].mxu0 %v5076
        %v5171 = vpop.f32.mrb[0].mxu0
        %v5172 = vadd.f32 0.0, %v5171
        %v5173 = vpop.f32.mrb[0].mxu0
        %5174 = vmatprep.mubr.f32.mxu0 0.0
        %5175 = vmatmul.mubr.f32.gmra.mrb[0].mxu0 %v5079
        %v5176 = vpop.f32.mrb[0].mxu0
        %v5177 = vadd.f32 0.0, %v5176
        %v5178 = vpop.f32.mrb[0].mxu0
        %5179 = vmatprep.mubr.f32.mxu0 0.0
        %5180 = vmatmul.mubr.f32.gmra.mrb[0].mxu0 %v5082
        %v5181 = vpop.f32.mrb[0].mxu0
        %v5182 = vadd.f32 0.0, %v5181
        %v5183 = vpop.f32.mrb[0].mxu0
        %5184 = vmatprep.mubr.f32.mxu0 0.0
        %5185 = vmatmul.mubr.f32.gmra.mrb[0].mxu0 %v5085
        %v5186 = vpop.f32.mrb[0].mxu0
        %v5187 = vadd.f32 0.0, %v5186
        %v5188 = vpop.f32.mrb[0].mxu0
        %5189 = vmatprep.mubr.f32.mxu0 0.0
        %5190 = vmatmul.mubr.f32.gmra.mrb[0].mxu0 %v5088
        %v5191 = vpop.f32.mrb[0].mxu0
        %v5192 = vadd.f32 0.0, %v5191
        %v5193 = vpop.f32.mrb[0].mxu0
        %5194 = vdwg.mxu0
        %v5195 = vsel %vm1743, %v5157, 0.0
        %v5196 = vsel %vm1743, %v5162, 0.0
        %v5197 = vadd.f32 %v5195, %v5196
        %v5198 = vsel %vm1743, %v5167, 0.0
        %v5199 = vadd.f32 %v5197, %v5198
        %v5200 = vsel %vm1743, %v5172, 0.0
        %v5201 = vadd.f32 %v5199, %v5200
        %v5202 = vsel %vm1743, %v5177, 0.0
        %v5203 = vadd.f32 %v5201, %v5202
        %v5204 = vsel %vm1743, %v5182, 0.0
        %v5205 = vadd.f32 %v5203, %v5204
        %v5206 = vsel %vm1743, %v5187, 0.0
        %v5207 = vadd.f32 %v5205, %v5206
        %v5208 = vsel %vm1743, %v5192, 0.0
        %v5209 = vadd.f32 %v5207, %v5208
        %5210 = vadd.xlane.f32.xlu0 %v5209
        %v5211 = vpop.xlane.xlu0 %5210
        %v5212 = vrot.slane %v5211, 4
        %v5213 = vadd.f32 %v5211, %v5212
        %v5214 = vrot.slane %v5213, 2
        %v5215 = vadd.f32 %v5213, %v5214
        %v5216 = vrot.slane %v5215, 1
        %v5217 = vadd.f32 %v5215, %v5216
        %s5218 = vtos %v5217
        %v5219 = vmul.f32 %v5157, %v5157
        %v5220 = vmul.f32 %v5162, %v5162
        %v5221 = vmul.f32 %v5167, %v5167
        %v5222 = vmul.f32 %v5172, %v5172
        %v5223 = vmul.f32 %v5177, %v5177
        %v5224 = vmul.f32 %v5182, %v5182
        %v5225 = vmul.f32 %v5187, %v5187
        %v5226 = vmul.f32 %v5192, %v5192
        %v5227 = vsel %vm1743, %v5219, 0.0
        %v5228 = vsel %vm1743, %v5220, 0.0
        %v5229 = vadd.f32 %v5227, %v5228
        %v5230 = vsel %vm1743, %v5221, 0.0
        %v5231 = vadd.f32 %v5229, %v5230
        %v5232 = vsel %vm1743, %v5222, 0.0
        %v5233 = vadd.f32 %v5231, %v5232
        %v5234 = vsel %vm1743, %v5223, 0.0
        %v5235 = vadd.f32 %v5233, %v5234
        %v5236 = vsel %vm1743, %v5224, 0.0
        %v5237 = vadd.f32 %v5235, %v5236
        %v5238 = vsel %vm1743, %v5225, 0.0
        %v5239 = vadd.f32 %v5237, %v5238
        %v5240 = vsel %vm1743, %v5226, 0.0
        %v5241 = vadd.f32 %v5239, %v5240
        %5242 = vadd.xlane.f32.xlu0 %v5241
        %v5243 = vpop.xlane.xlu0 %5242
        %v5244 = vrot.slane %v5243, 4
        %v5245 = vadd.f32 %v5243, %v5244
        %v5246 = vrot.slane %v5245, 2
        %v5247 = vadd.f32 %v5245, %v5246
        %v5248 = vrot.slane %v5247, 1
        %v5249 = vadd.f32 %v5247, %v5248
        %s5250 = vtos %v5249
        %s5251 = smul.f32 %s5218, 0.0009765625
        %s5252 = smul.f32 %s5250, 0.0009765625
        %s5253 = smul.f32 %s5251, %s5251
        %s5254 = ssub.f32 %s5252, %s5253
        %v5255 = vstv %s5251
        %v5256 = vsub.f32 %v5157, %v5255
        %v5257 = vsub.f32 %v5162, %v5255
        %v5258 = vsub.f32 %v5167, %v5255
        %v5259 = vsub.f32 %v5172, %v5255
        %v5260 = vsub.f32 %v5177, %v5255
        %v5261 = vsub.f32 %v5182, %v5255
        %v5262 = vsub.f32 %v5187, %v5255
        %v5263 = vsub.f32 %v5192, %v5255
        %s5264 = sadd.f32 %s5254, 1e-05
        %v5265 = vstv %s5264
        %v5266 = vrsqrt.pop %v5265
        %s5267 = vtos %v5266
        %v5268 = vstv %s5267
        %v5269 = vmul.f32 %v5256, %v5268
        %v5270 = vmul.f32 %v5257, %v5268
        %v5271 = vmul.f32 %v5258, %v5268
        %v5272 = vmul.f32 %v5259, %v5268
        %v5273 = vmul.f32 %v5260, %v5268
        %v5274 = vmul.f32 %v5261, %v5268
        %v5275 = vmul.f32 %v5262, %v5268
        %v5276 = vmul.f32 %v5263, %v5268
        %v5277 = vld [vmem:[%s5] sm:$0x1]
        %v5279 = vlaneseq
        %v5280 = vshrl.u32 %v5279, 7
        %v5281 = vsub.s32 0, %v5280
        %v5282 = vrot.slane %v5277, %v5281
        %v5284 = vmul.f32 %v5269, %v5282
        %v5285 = vmul.f32 %v5270, %v5282
        %v5286 = vmul.f32 %v5271, %v5282
        %v5287 = vmul.f32 %v5272, %v5282
        %v5288 = vmul.f32 %v5273, %v5282
        %v5289 = vmul.f32 %v5274, %v5282
        %v5290 = vmul.f32 %v5275, %v5282
        %v5291 = vmul.f32 %v5276, %v5282
        %v5292 = vld [vmem:[%s6] sm:$0x1]
        %v5294 = vlaneseq
        %v5295 = vshrl.u32 %v5294, 7
        %v5296 = vsub.s32 0, %v5295
        %v5297 = vrot.slane %v5292, %v5296
        %v5299 = vadd.f32 %v5284, %v5297
        %v5300 = vadd.f32 %v5285, %v5297
        %v5301 = vadd.f32 %v5286, %v5297
        %v5302 = vadd.f32 %v5287, %v5297
        %v5303 = vadd.f32 %v5288, %v5297
        %v5304 = vadd.f32 %v5289, %v5297
        %v5305 = vadd.f32 %v5290, %v5297
        %v5306 = vadd.f32 %v5291, %v5297
        %5307 = vst.msk [vmem:[%s271] sm:$0xff] %vm1743, %v5299
        %5308 = vst.msk [vmem:[%s271 + $0x8] sm:$0xff] %vm1743, %v5300
        %5309 = vst.msk [vmem:[%s271 + $0x10] sm:$0xff] %vm1743, %v5301
        %5310 = vst.msk [vmem:[%s271 + $0x18] sm:$0xff] %vm1743, %v5302
        %5311 = vst.msk [vmem:[%s271 + $0x20] sm:$0xff] %vm1743, %v5303
        %5312 = vst.msk [vmem:[%s271 + $0x28] sm:$0xff] %vm1743, %v5304
        %5313 = vst.msk [vmem:[%s271 + $0x30] sm:$0xff] %vm1743, %v5305
        %5314 = vst.msk [vmem:[%s271 + $0x38] sm:$0xff] %vm1743, %v5306
        %s5315 = sand.u32 %s181, 1
        %s5316 = scalar_lea.sflag [#allocation4], %s5315
        %s5317 = sand.u32 %s181, 1
        %s5318 = smul.addr %s5317, 64
        %s5319 = scalar_lea.vmem [#allocation3], %s5318
        // Predicated region
        $region49: #{tpu_custom_call.1} parent=47 // pred_check
          %p5320 = pneg %p191
        $region50: #{tpu_custom_call.1} parent=47 // pred_check_branch
          %5322 = sbr.rel (%p5320) target = $region52
        $region51: #{tpu_custom_call.1} parent=47 // pred_region
          %s5324 = ssub.s32 1024, 1024
          %5325 = vsyncadd %s5316, %s5324
          %s5326 = smul.addr %s21, 8
          %s5327 = smul.addr %s5326, 128
          %s5328 = scalar_lea.hbm %s7, %s5327
          %s5329 = sshll.u32 %s5319, 4
          %s5330 = int_to_ptr.vmem [resolvable:$true] %s5329
          %5335 = dma.vmem_to_hbm [thread:$0]  %s5330, 1024, %s5328, %s5316, 128, 128, 8
        $region52: #{tpu_custom_call.1} parent=47 // pred_fallthru
          _
      $region48: #{tpu_custom_call.1} parent=5 // pred_fallthru
        _
      %p5336 = scmp.le.s32.totalorder 2, %s16
      // Predicated region
      $region53: #{tpu_custom_call.1} parent=5 // pred_check
        %p5337 = pneg %p5336
      $region54: #{tpu_custom_call.1} parent=5 // pred_check_branch
        %5339 = sbr.rel (%p5337) target = $region56
      $region55: #{tpu_custom_call.1} parent=5 // pred_region
        %s5340 = ssub.s32 %s16, 2
        // Predicated region
        $region57: #{tpu_custom_call.1} parent=55 // pred_check
          %p5341 = pneg %p197
        $region58: #{tpu_custom_call.1} parent=55 // pred_check_branch
          %5343 = sbr.rel (%p5341) target = $region60
        $region59: #{tpu_custom_call.1} parent=55 // pred_region
          %s5344 = sand.u32 %s182, 1
          %s5345 = scalar_lea.sflag [#allocation4], %s5344
          %s5346 = sand.u32 %s182, 1
          %s5347 = smul.addr %s5346, 64
          %s5348 = scalar_lea.vmem [#allocation3], %s5347
          %5349 = dma.done %s5345, 1024
        $region60: #{tpu_custom_call.1} parent=55 // pred_fallthru
          _
      $region56: #{tpu_custom_call.1} parent=5 // pred_fallthru
        _
    $region6: #{tpu_custom_call.1} parent=1 // loop_footer
      %s20 = sadd.s32 1, %s16
    $region7: #{tpu_custom_call.1} parent=1 // loop_footer_branch
      %15 = sbr.rel target = $region3
    $region8: #{tpu_custom_call.1} parent=1 // loop_exit
      _
    %5350 = vsyncpa [#allocation4], 1
    %s5351 = scalar_lea.sflag [#allocation4], 1
    %5352 = vsyncpa %s5351, 1

</llo_original>
